<compile_context>
chip_gen: v7x
topology: tpu7x:2x2x1
jax: 0.10.0
libtpu: 0.0.40
codegen_flags: <defaults>
</compile_context>

<pallas_src>
import jax
import jax.numpy as jnp
from jax import lax
from jax.experimental import pallas as pl
from jax.experimental.pallas import tpu as pltpu


# --------------------------------------------------------------------------- #
# Kernel
# --------------------------------------------------------------------------- #
def se_basic_block_kernel(
    x_ref,            # (1, H, W, C) f32   one input image (NHWC)
    w1_ref,           # (9*C, C) bf16      conv1 weights (HWIO taps flattened)
    w2_ref,           # (9*C, C) bf16      conv2 weights
    s1_ref, o1_ref,   # (1, C) f32         bn1 folded scale / offset
    s2_ref, o2_ref,   # (1, C) f32         bn2 folded scale / offset (+conv1 bias)
    s3_ref, o3_ref,   # (1, C) f32         bn3 folded scale / offset (+conv2 bias)
    fc1w_ref,         # (Cr, C) f32        SE fc1 weight (torch nn.Linear layout)
    fc1b_ref,         # (1, Cr) f32
    fc2w_ref,         # (Cr, C) f32        SE fc2 weight (transposed)
    fc2b_ref,         # (1, C) f32
    out_ref,          # (1, H, W, C) f32
    patch_ref,        # VMEM scratch (H, W, 9*C) f32 : im2col patch matrix
):
    _, H, W, C = x_ref.shape
    HW = H * W
    Cr = fc1w_ref.shape[0]

    # Zero the im2col scratch once per invocation. Only the zero-padding halo
    # cells of each tap rely on it; they are never overwritten by either conv,
    # while the valid regions are fully rewritten per conv. Done per invocation
    # (not @program_id==0) so it stays correct when the "parallel" grid axis is
    # split across megacore TensorCores, each owning a private scratch.
    patch_ref[...] = jnp.zeros_like(patch_ref)

    x = x_ref[0].reshape(HW, C).astype(jnp.float32)           # (HW, C)

    def conv3x3(inp_flat, w_ref):
        """3x3 / stride 1 / pad 1 conv as a single (HW, 9C) x (9C, C) MXU matmul."""
        inp = inp_flat.reshape(H, W, C)
        # Scatter the 9 shifted taps straight into the im2col scratch
        # (no padded copy, no strided gathers; halo cells stay zero).
        for ky in range(3):
            dy = ky - 1
            sh0, sh1 = max(0, dy), H + min(0, dy)              # source rows
            th0, th1 = max(0, -dy), H + min(0, -dy)            # destination rows
            for kx in range(3):
                dx = kx - 1
                sw0, sw1 = max(0, dx), W + min(0, dx)
                tw0, tw1 = max(0, -dx), W + min(0, -dx)
                c0 = (ky * 3 + kx) * C
                patch_ref[th0:th1, tw0:tw1, c0:c0 + C] = inp[sh0:sh1, sw0:sw1, :]
        # bf16 operands on the MXU, f32 accumulation.
        patches = patch_ref[...].reshape(HW, 9 * C).astype(jnp.bfloat16)
        return jnp.dot(patches, w_ref[...], preferred_element_type=jnp.float32)

    # bn1 -> conv1 -> bn2 (conv1 bias folded in) -> ReLU -> Dropout2d(eval = identity)
    t = x * s1_ref[...] + o1_ref[...]
    y = conv3x3(t, w1_ref)
    y = jnp.maximum(y * s2_ref[...] + o2_ref[...], 0.0)
    # TODO(synk): Dropout2d(p=0.3) training-mode channel mask not modeled (eval only).

    # conv2 -> bn3 (conv2 bias folded in)
    y = conv3x3(y, w2_ref)
    y = y * s3_ref[...] + o3_ref[...]

    # SE: global average pool -> fc1 -> ReLU -> fc2 -> sigmoid -> channel scale.
    # Cr = C // reduction is tiny (2 here), so keep it on the VPU/EUP instead of
    # two degenerate MXU matmuls.
    pooled = jnp.mean(y, axis=0, keepdims=True)                # (1, C)
    fc1w = fc1w_ref[...]
    fc1b = fc1b_ref[...]
    fc2w = fc2w_ref[...]
    g = fc2b_ref[...]                                          # (1, C)
    for j in range(Cr):
        hj = jnp.sum(pooled * fc1w[j:j + 1, :], axis=-1, keepdims=True)
        hj = jnp.maximum(hj + fc1b[0:1, j:j + 1], 0.0)         # (1, 1)
        g = g + hj * fc2w[j:j + 1, :]
    g = jax.nn.sigmoid(g)                                      # (1, C)
    y = y * g

    # residual add + ReLU (downsample is None for this block configuration)
    out = jnp.maximum(y + x, 0.0)
    out_ref[0] = out.reshape(H, W, C).astype(out_ref.dtype)


# --------------------------------------------------------------------------- #
# Wrappers
# --------------------------------------------------------------------------- #
def se_basic_block_nhwc(x_nhwc, kp):
    """Fused SEBasicBlock forward (eval mode), NHWC activations."""
    N, H, W, C = x_nhwc.shape

    img_spec = pl.BlockSpec((1, H, W, C), lambda n: (n, 0, 0, 0))

    def param_spec(a):
        return pl.BlockSpec(a.shape, lambda n: (0,) * a.ndim)  # fetched once

    param_order = ("w1", "w2", "s1", "o1", "s2", "o2", "s3", "o3",
                   "fc1w", "fc1b", "fc2w", "fc2b")
    param_args = [kp[k] for k in param_order]

    grid_spec = pltpu.PrefetchScalarGridSpec(
        num_scalar_prefetch=0,
        grid=(N,),                                  # pipelined over images
        in_specs=[img_spec] + [param_spec(a) for a in param_args],
        out_specs=img_spec,
        scratch_shapes=[pltpu.VMEM((H, W, 9 * C), jnp.float32)],
    )
    return pl.pallas_call(
        se_basic_block_kernel,
        out_shape=jax.ShapeDtypeStruct((N, H, W, C), jnp.float32),
        grid_spec=grid_spec,
        compiler_params=pltpu.CompilerParams(
            dimension_semantics=("parallel",),      # shard images across v7x's 2 TCs
            vmem_limit_bytes=32 * 1024 * 1024,
        ),
    )(x_nhwc, *param_args)


def se_basic_block(x_nchw, kp):
    """PyTorch-interface wrapper (NCHW in / NCHW out).

    NOTE: in a full ResNet stack keep activations NHWC end-to-end and call
    se_basic_block_nhwc directly; these transposes exist only to match the
    PyTorch module's NCHW interface for the single-block test below.
    """
    x_nhwc = jnp.transpose(x_nchw, (0, 2, 3, 1))
    y = se_basic_block_nhwc(x_nhwc, kp)
    return jnp.transpose(y, (0, 3, 1, 2))


# --------------------------------------------------------------------------- #
# Parameter construction (deterministic, synthetic) + one-time prep
# --------------------------------------------------------------------------- #
def fold_bn(gamma, beta, mean, var, eps=1e-5):
    scale = gamma / jnp.sqrt(var + eps)
    return scale, beta - mean * scale


def make_params(key, C, Cr):
    """Synthetic eval-mode module parameters (BN folded to scale/offset)."""
    ks = iter(jax.random.split(key, 20))
    p = {}
    p["conv1_w"] = jax.random.normal(next(ks), (3, 3, C, C), jnp.float32) * 0.1   # HWIO
    p["conv1_b"] = jax.random.normal(next(ks), (C,), jnp.float32) * 0.1
    p["conv2_w"] = jax.random.normal(next(ks), (3, 3, C, C), jnp.float32) * 0.1
    p["conv2_b"] = jax.random.normal(next(ks), (C,), jnp.float32) * 0.1
    for name in ("1", "2", "3"):
        g = 1.0 + 0.1 * jax.random.normal(next(ks), (C,), jnp.float32)
        b = 0.1 * jax.random.normal(next(ks), (C,), jnp.float32)
        m = 0.1 * jax.random.normal(next(ks), (C,), jnp.float32)
        v = jax.random.uniform(next(ks), (C,), jnp.float32, minval=0.5, maxval=1.5)
        p["s" + name], p["o" + name] = fold_bn(g, b, m, v)
    p["fc1_w"] = jax.random.normal(next(ks), (Cr, C), jnp.float32) * 0.1   # nn.Linear(C, Cr)
    p["fc1_b"] = jax.random.normal(next(ks), (Cr,), jnp.float32) * 0.1
    p["fc2_w"] = jax.random.normal(next(ks), (C, Cr), jnp.float32) * 0.1   # nn.Linear(Cr, C)
    p["fc2_b"] = jax.random.normal(next(ks), (C,), jnp.float32) * 0.1
    return p


def prepare_kernel_params(p):
    """One-time parameter algebra done outside the hot path."""
    C = p["conv1_b"].shape[0]
    kp = {}
    # conv weights flattened for the im2col matmul, cast to bf16 for the MXU
    kp["w1"] = p["conv1_w"].reshape(9 * C, C).astype(jnp.bfloat16)
    kp["w2"] = p["conv2_w"].reshape(9 * C, C).astype(jnp.bfloat16)
    # eval-mode BN affines; conv biases folded into the *following* BN offset
    kp["s1"] = p["s1"].reshape(1, C)
    kp["o1"] = p["o1"].reshape(1, C)
    kp["s2"] = p["s2"].reshape(1, C)
    kp["o2"] = (p["o2"] + p["conv1_b"] * p["s2"]).reshape(1, C)
    kp["s3"] = p["s3"].reshape(1, C)
    kp["o3"] = (p["o3"] + p["conv2_b"] * p["s3"]).reshape(1, C)
    # SE weights, both row-major (Cr, C) so the kernel walks rows on the VPU
    kp["fc1w"] = p["fc1_w"]
    kp["fc1b"] = p["fc1_b"].reshape(1, -1)
    kp["fc2w"] = p["fc2_w"].T
    kp["fc2b"] = p["fc2_b"].reshape(1, C)
    return kp


# --------------------------------------------------------------------------- #
# Plain-JAX reference for validation (f32)
# --------------------------------------------------------------------------- #
def reference_nhwc(x, p):
    C = x.shape[-1]

    def bn(t, s, o):
        return t * s.reshape(1, 1, 1, C) + o.reshape(1, 1, 1, C)

    def conv(t, w, b):
        y = lax.conv_general_dilated(
            t, w, (1, 1), "SAME", dimension_numbers=("NHWC", "HWIO", "NHWC"))
        return y + b.reshape(1, 1, 1, C)

    t = bn(x, p["s1"], p["o1"])
    y = conv(t, p["conv1_w"], p["conv1_b"])
    y = jnp.maximum(bn(y, p["s2"], p["o2"]), 0.0)
    y = conv(y, p["conv2_w"], p["conv2_b"])
    y = bn(y, p["s3"], p["o3"])
    pooled = jnp.mean(y, axis=(1, 2))                                   # (N, C)
    h = jnp.maximum(pooled @ p["fc1_w"].T + p["fc1_b"][None, :], 0.0)   # (N, Cr)
    g = jax.nn.sigmoid(h @ p["fc2_w"].T + p["fc2_b"][None, :])          # (N, C)
    y = y * g[:, None, None, :]
    return jnp.maximum(y + x, 0.0)


if __name__ == "__main__":
    # SEBasicBlock(inplanes=32, planes=32, stride=1, downsample=None,
    #              reduction=16, shake_shake=False), eval mode.
    N, C, H, W = 2, 32, 16, 16
    reduction = 16
    Cr = C // reduction

    key = jax.random.PRNGKey(0)
    kx, kparam = jax.random.split(key)
    x_nchw = jax.random.normal(kx, (N, C, H, W), jnp.float32)
    params = make_params(kparam, C, Cr)
    kernel_params = prepare_kernel_params(params)

    out = jax.block_until_ready(se_basic_block(x_nchw, kernel_params))

    ref = jnp.transpose(
        reference_nhwc(jnp.transpose(x_nchw, (0, 2, 3, 1)), params), (0, 3, 1, 2))
    assert out.shape == (N, C, H, W)
    max_err = float(jnp.max(jnp.abs(out - ref)))
    # bf16 MXU operands (f32 accumulation) -> relaxed tolerance vs the f32 reference.
    assert jnp.allclose(out, ref, rtol=5e-2, atol=5e-2), max_err
    print("KERNEL_OK")
</pallas_src>

<mosaic_0001>
module attributes {stable_mosaic.version = 11 : i64} {
  func.func @se_basic_block_kernel(%arg0: i32, %arg1: memref<1x16x16x32xf32, #tpu.memory_space<vmem>>, %arg2: memref<288x32xbf16, #tpu.memory_space<vmem>>, %arg3: memref<288x32xbf16, #tpu.memory_space<vmem>>, %arg4: memref<1x32xf32, #tpu.memory_space<vmem>>, %arg5: memref<1x32xf32, #tpu.memory_space<vmem>>, %arg6: memref<1x32xf32, #tpu.memory_space<vmem>>, %arg7: memref<1x32xf32, #tpu.memory_space<vmem>>, %arg8: memref<1x32xf32, #tpu.memory_space<vmem>>, %arg9: memref<1x32xf32, #tpu.memory_space<vmem>>, %arg10: memref<2x32xf32, #tpu.memory_space<vmem>>, %arg11: memref<1x2xf32, #tpu.memory_space<vmem>>, %arg12: memref<2x32xf32, #tpu.memory_space<vmem>>, %arg13: memref<1x32xf32, #tpu.memory_space<vmem>>, %arg14: memref<1x16x16x32xf32, #tpu.memory_space<vmem>>, %arg15: memref<16x16x288xf32, #tpu.memory_space<vmem>>) attributes {dimension_semantics = [#tpu.dimension_semantics<parallel>], iteration_bounds = array<i64: 2>, scalar_prefetch = 0 : i64, scratch_operands = 1 : i64, tpu.core_type = #tpu.core_type<tc>, window_params = [{transform_indices = @transform_0, window_bounds = array<i64: 1, 16, 16, 32>}, {pipeline_mode = #tpu.pipeline_mode<synchronous>, transform_indices = @transform_1, window_bounds = array<i64: 288, 32>}, {pipeline_mode = #tpu.pipeline_mode<synchronous>, transform_indices = @transform_2, window_bounds = array<i64: 288, 32>}, {pipeline_mode = #tpu.pipeline_mode<synchronous>, transform_indices = @transform_3, window_bounds = array<i64: 1, 32>}, {pipeline_mode = #tpu.pipeline_mode<synchronous>, transform_indices = @transform_4, window_bounds = array<i64: 1, 32>}, {pipeline_mode = #tpu.pipeline_mode<synchronous>, transform_indices = @transform_5, window_bounds = array<i64: 1, 32>}, {pipeline_mode = #tpu.pipeline_mode<synchronous>, transform_indices = @transform_6, window_bounds = array<i64: 1, 32>}, {pipeline_mode = #tpu.pipeline_mode<synchronous>, transform_indices = @transform_7, window_bounds = array<i64: 1, 32>}, {pipeline_mode = #tpu.pipeline_mode<synchronous>, transform_indices = @transform_8, window_bounds = array<i64: 1, 32>}, {pipeline_mode = #tpu.pipeline_mode<synchronous>, transform_indices = @transform_9, window_bounds = array<i64: 2, 32>}, {pipeline_mode = #tpu.pipeline_mode<synchronous>, transform_indices = @transform_10, window_bounds = array<i64: 1, 2>}, {pipeline_mode = #tpu.pipeline_mode<synchronous>, transform_indices = @transform_11, window_bounds = array<i64: 2, 32>}, {pipeline_mode = #tpu.pipeline_mode<synchronous>, transform_indices = @transform_12, window_bounds = array<i64: 1, 32>}, {transform_indices = @transform_13, window_bounds = array<i64: 1, 16, 16, 32>}]} {
    %cst = arith.constant 0.000000e+00 : f32
    %0 = vector.broadcast %cst : f32 to vector<16x16x288xf32>
    %c0 = arith.constant 0 : index
    %c0_0 = arith.constant 0 : index
    %c0_1 = arith.constant 0 : index
    %1 = vector.load %arg15[%c0, %c0_0, %c0_1] : memref<16x16x288xf32, #tpu.memory_space<vmem>>, vector<16x16x288xf32>
    tpu.vector_store %arg15[%c0, %c0_0, %c0_1], %0 {strides = array<i32>} : memref<16x16x288xf32, #tpu.memory_space<vmem>>, vector<16x16x288xf32>,
    %c0_2 = arith.constant 0 : index
    %c0_3 = arith.constant 0 : index
    %c0_4 = arith.constant 0 : index
    %c0_5 = arith.constant 0 : index
    %2 = vector.load %arg1[%c0_2, %c0_3, %c0_4, %c0_5] : memref<1x16x16x32xf32, #tpu.memory_space<vmem>>, vector<1x16x16x32xf32>
    %3 = vector.shape_cast %2 : vector<1x16x16x32xf32> to vector<16x16x32xf32>
    %4 = vector.shape_cast %3 : vector<16x16x32xf32> to vector<256x32xf32>
    %c0_6 = arith.constant 0 : index
    %c0_7 = arith.constant 0 : index
    %5 = vector.load %arg4[%c0_6, %c0_7] : memref<1x32xf32, #tpu.memory_space<vmem>>, vector<1x32xf32>
    %6 = vector.broadcast %5 : vector<1x32xf32> to vector<256x32xf32>
    %7 = arith.mulf %4, %6 : vector<256x32xf32>
    %c0_8 = arith.constant 0 : index
    %c0_9 = arith.constant 0 : index
    %8 = vector.load %arg5[%c0_8, %c0_9] : memref<1x32xf32, #tpu.memory_space<vmem>>, vector<1x32xf32>
    %9 = vector.broadcast %8 : vector<1x32xf32> to vector<256x32xf32>
    %10 = arith.addf %7, %9 : vector<256x32xf32>
    %11 = vector.shape_cast %10 : vector<256x32xf32> to vector<16x16x32xf32>
    %12 = vector.extract_strided_slice %11 {offsets = [0, 0, 0], sizes = [15, 15, 32], strides = [1, 1, 1]} : vector<16x16x32xf32> to vector<15x15x32xf32>
    %c1 = arith.constant 1 : index
    %c1_10 = arith.constant 1 : index
    %c0_11 = arith.constant 0 : index
    %13 = vector.load %arg15[%c1, %c1_10, %c0_11] : memref<16x16x288xf32, #tpu.memory_space<vmem>>, vector<15x15x32xf32>
    tpu.vector_store %arg15[%c1, %c1_10, %c0_11], %12 {strides = array<i32>} : memref<16x16x288xf32, #tpu.memory_space<vmem>>, vector<15x15x32xf32>,
    %14 = vector.extract_strided_slice %11 {offsets = [0, 0, 0], sizes = [15, 16, 32], strides = [1, 1, 1]} : vector<16x16x32xf32> to vector<15x16x32xf32>
    %c1_12 = arith.constant 1 : index
    %c0_13 = arith.constant 0 : index
    %c32 = arith.constant 32 : index
    %15 = vector.load %arg15[%c1_12, %c0_13, %c32] : memref<16x16x288xf32, #tpu.memory_space<vmem>>, vector<15x16x32xf32>
    tpu.vector_store %arg15[%c1_12, %c0_13, %c32], %14 {strides = array<i32>} : memref<16x16x288xf32, #tpu.memory_space<vmem>>, vector<15x16x32xf32>,
    %16 = vector.extract_strided_slice %11 {offsets = [0, 1, 0], sizes = [15, 15, 32], strides = [1, 1, 1]} : vector<16x16x32xf32> to vector<15x15x32xf32>
    %c1_14 = arith.constant 1 : index
    %c0_15 = arith.constant 0 : index
    %c64 = arith.constant 64 : index
    %17 = vector.load %arg15[%c1_14, %c0_15, %c64] : memref<16x16x288xf32, #tpu.memory_space<vmem>>, vector<15x15x32xf32>
    tpu.vector_store %arg15[%c1_14, %c0_15, %c64], %16 {strides = array<i32>} : memref<16x16x288xf32, #tpu.memory_space<vmem>>, vector<15x15x32xf32>,
    %18 = vector.extract_strided_slice %11 {offsets = [0, 0, 0], sizes = [16, 15, 32], strides = [1, 1, 1]} : vector<16x16x32xf32> to vector<16x15x32xf32>
    %c0_16 = arith.constant 0 : index
    %c1_17 = arith.constant 1 : index
    %c96 = arith.constant 96 : index
    %19 = vector.load %arg15[%c0_16, %c1_17, %c96] : memref<16x16x288xf32, #tpu.memory_space<vmem>>, vector<16x15x32xf32>
    tpu.vector_store %arg15[%c0_16, %c1_17, %c96], %18 {strides = array<i32>} : memref<16x16x288xf32, #tpu.memory_space<vmem>>, vector<16x15x32xf32>,
    %c0_18 = arith.constant 0 : index
    %c0_19 = arith.constant 0 : index
    %c128 = arith.constant 128 : index
    %20 = vector.load %arg15[%c0_18, %c0_19, %c128] : memref<16x16x288xf32, #tpu.memory_space<vmem>>, vector<16x16x32xf32>
    tpu.vector_store %arg15[%c0_18, %c0_19, %c128], %11 {strides = array<i32>} : memref<16x16x288xf32, #tpu.memory_space<vmem>>, vector<16x16x32xf32>,
    %21 = vector.extract_strided_slice %11 {offsets = [0, 1, 0], sizes = [16, 15, 32], strides = [1, 1, 1]} : vector<16x16x32xf32> to vector<16x15x32xf32>
    %c0_20 = arith.constant 0 : index
    %c0_21 = arith.constant 0 : index
    %c160 = arith.constant 160 : index
    %22 = vector.load %arg15[%c0_20, %c0_21, %c160] : memref<16x16x288xf32, #tpu.memory_space<vmem>>, vector<16x15x32xf32>
    tpu.vector_store %arg15[%c0_20, %c0_21, %c160], %21 {strides = array<i32>} : memref<16x16x288xf32, #tpu.memory_space<vmem>>, vector<16x15x32xf32>,
    %23 = vector.extract_strided_slice %11 {offsets = [1, 0, 0], sizes = [15, 15, 32], strides = [1, 1, 1]} : vector<16x16x32xf32> to vector<15x15x32xf32>
    %c0_22 = arith.constant 0 : index
    %c1_23 = arith.constant 1 : index
    %c192 = arith.constant 192 : index
    %24 = vector.load %arg15[%c0_22, %c1_23, %c192] : memref<16x16x288xf32, #tpu.memory_space<vmem>>, vector<15x15x32xf32>
    tpu.vector_store %arg15[%c0_22, %c1_23, %c192], %23 {strides = array<i32>} : memref<16x16x288xf32, #tpu.memory_space<vmem>>, vector<15x15x32xf32>,
    %25 = vector.extract_strided_slice %11 {offsets = [1, 0, 0], sizes = [15, 16, 32], strides = [1, 1, 1]} : vector<16x16x32xf32> to vector<15x16x32xf32>
    %c0_24 = arith.constant 0 : index
    %c0_25 = arith.constant 0 : index
    %c224 = arith.constant 224 : index
    %26 = vector.load %arg15[%c0_24, %c0_25, %c224] : memref<16x16x288xf32, #tpu.memory_space<vmem>>, vector<15x16x32xf32>
    tpu.vector_store %arg15[%c0_24, %c0_25, %c224], %25 {strides = array<i32>} : memref<16x16x288xf32, #tpu.memory_space<vmem>>, vector<15x16x32xf32>,
    %27 = vector.extract_strided_slice %11 {offsets = [1, 1, 0], sizes = [15, 15, 32], strides = [1, 1, 1]} : vector<16x16x32xf32> to vector<15x15x32xf32>
    %c0_26 = arith.constant 0 : index
    %c0_27 = arith.constant 0 : index
    %c256 = arith.constant 256 : index
    %28 = vector.load %arg15[%c0_26, %c0_27, %c256] : memref<16x16x288xf32, #tpu.memory_space<vmem>>, vector<15x15x32xf32>
    tpu.vector_store %arg15[%c0_26, %c0_27, %c256], %27 {strides = array<i32>} : memref<16x16x288xf32, #tpu.memory_space<vmem>>, vector<15x15x32xf32>,
    %c0_28 = arith.constant 0 : index
    %c0_29 = arith.constant 0 : index
    %c0_30 = arith.constant 0 : index
    %29 = vector.load %arg15[%c0_28, %c0_29, %c0_30] : memref<16x16x288xf32, #tpu.memory_space<vmem>>, vector<16x16x288xf32>
    %30 = vector.shape_cast %29 : vector<16x16x288xf32> to vector<256x288xf32>
    %31 = arith.truncf %30 : vector<256x288xf32> to vector<256x288xbf16>
    %c0_31 = arith.constant 0 : index
    %c0_32 = arith.constant 0 : index
    %32 = vector.load %arg2[%c0_31, %c0_32] : memref<288x32xbf16, #tpu.memory_space<vmem>>, vector<288x32xbf16>
    %cst_33 = arith.constant dense<0.000000e+00> : vector<256x32xf32>
    %33 = tpu.matmul %31, %32, %cst_33 {dimension_numbers = #tpu.dot_dimension_numbers<[1], [0], [0], [1], [0, 0, 1, 1], [], []>} : vector<256x288xbf16>, vector<288x32xbf16>, vector<256x32xf32> -> vector<256x32xf32>
    %c0_34 = arith.constant 0 : index
    %c0_35 = arith.constant 0 : index
    %34 = vector.load %arg6[%c0_34, %c0_35] : memref<1x32xf32, #tpu.memory_space<vmem>>, vector<1x32xf32>
    %35 = vector.broadcast %34 : vector<1x32xf32> to vector<256x32xf32>
    %36 = arith.mulf %33, %35 : vector<256x32xf32>
    %c0_36 = arith.constant 0 : index
    %c0_37 = arith.constant 0 : index
    %37 = vector.load %arg7[%c0_36, %c0_37] : memref<1x32xf32, #tpu.memory_space<vmem>>, vector<1x32xf32>
    %38 = vector.broadcast %37 : vector<1x32xf32> to vector<256x32xf32>
    %39 = arith.addf %36, %38 : vector<256x32xf32>
    %cst_38 = arith.constant 0.000000e+00 : f32
    %40 = vector.broadcast %cst_38 : f32 to vector<256x32xf32>
    %41 = arith.maximumf %39, %40 : vector<256x32xf32>
    %42 = vector.shape_cast %41 : vector<256x32xf32> to vector<16x16x32xf32>
    %43 = vector.extract_strided_slice %42 {offsets = [0, 0, 0], sizes = [15, 15, 32], strides = [1, 1, 1]} : vector<16x16x32xf32> to vector<15x15x32xf32>
    %c1_39 = arith.constant 1 : index
    %c1_40 = arith.constant 1 : index
    %c0_41 = arith.constant 0 : index
    %44 = vector.load %arg15[%c1_39, %c1_40, %c0_41] : memref<16x16x288xf32, #tpu.memory_space<vmem>>, vector<15x15x32xf32>
    tpu.vector_store %arg15[%c1_39, %c1_40, %c0_41], %43 {strides = array<i32>} : memref<16x16x288xf32, #tpu.memory_space<vmem>>, vector<15x15x32xf32>,
    %45 = vector.extract_strided_slice %42 {offsets = [0, 0, 0], sizes = [15, 16, 32], strides = [1, 1, 1]} : vector<16x16x32xf32> to vector<15x16x32xf32>
    %c1_42 = arith.constant 1 : index
    %c0_43 = arith.constant 0 : index
    %c32_44 = arith.constant 32 : index
    %46 = vector.load %arg15[%c1_42, %c0_43, %c32_44] : memref<16x16x288xf32, #tpu.memory_space<vmem>>, vector<15x16x32xf32>
    tpu.vector_store %arg15[%c1_42, %c0_43, %c32_44], %45 {strides = array<i32>} : memref<16x16x288xf32, #tpu.memory_space<vmem>>, vector<15x16x32xf32>,
    %47 = vector.extract_strided_slice %42 {offsets = [0, 1, 0], sizes = [15, 15, 32], strides = [1, 1, 1]} : vector<16x16x32xf32> to vector<15x15x32xf32>
    %c1_45 = arith.constant 1 : index
    %c0_46 = arith.constant 0 : index
    %c64_47 = arith.constant 64 : index
    %48 = vector.load %arg15[%c1_45, %c0_46, %c64_47] : memref<16x16x288xf32, #tpu.memory_space<vmem>>, vector<15x15x32xf32>
    tpu.vector_store %arg15[%c1_45, %c0_46, %c64_47], %47 {strides = array<i32>} : memref<16x16x288xf32, #tpu.memory_space<vmem>>, vector<15x15x32xf32>,
    %49 = vector.extract_strided_slice %42 {offsets = [0, 0, 0], sizes = [16, 15, 32], strides = [1, 1, 1]} : vector<16x16x32xf32> to vector<16x15x32xf32>
    %c0_48 = arith.constant 0 : index
    %c1_49 = arith.constant 1 : index
    %c96_50 = arith.constant 96 : index
    %50 = vector.load %arg15[%c0_48, %c1_49, %c96_50] : memref<16x16x288xf32, #tpu.memory_space<vmem>>, vector<16x15x32xf32>
    tpu.vector_store %arg15[%c0_48, %c1_49, %c96_50], %49 {strides = array<i32>} : memref<16x16x288xf32, #tpu.memory_space<vmem>>, vector<16x15x32xf32>,
    %c0_51 = arith.constant 0 : index
    %c0_52 = arith.constant 0 : index
    %c128_53 = arith.constant 128 : index
    %51 = vector.load %arg15[%c0_51, %c0_52, %c128_53] : memref<16x16x288xf32, #tpu.memory_space<vmem>>, vector<16x16x32xf32>
    tpu.vector_store %arg15[%c0_51, %c0_52, %c128_53], %42 {strides = array<i32>} : memref<16x16x288xf32, #tpu.memory_space<vmem>>, vector<16x16x32xf32>,
    %52 = vector.extract_strided_slice %42 {offsets = [0, 1, 0], sizes = [16, 15, 32], strides = [1, 1, 1]} : vector<16x16x32xf32> to vector<16x15x32xf32>
    %c0_54 = arith.constant 0 : index
    %c0_55 = arith.constant 0 : index
    %c160_56 = arith.constant 160 : index
    %53 = vector.load %arg15[%c0_54, %c0_55, %c160_56] : memref<16x16x288xf32, #tpu.memory_space<vmem>>, vector<16x15x32xf32>
    tpu.vector_store %arg15[%c0_54, %c0_55, %c160_56], %52 {strides = array<i32>} : memref<16x16x288xf32, #tpu.memory_space<vmem>>, vector<16x15x32xf32>,
    %54 = vector.extract_strided_slice %42 {offsets = [1, 0, 0], sizes = [15, 15, 32], strides = [1, 1, 1]} : vector<16x16x32xf32> to vector<15x15x32xf32>
    %c0_57 = arith.constant 0 : index
    %c1_58 = arith.constant 1 : index
    %c192_59 = arith.constant 192 : index
    %55 = vector.load %arg15[%c0_57, %c1_58, %c192_59] : memref<16x16x288xf32, #tpu.memory_space<vmem>>, vector<15x15x32xf32>
    tpu.vector_store %arg15[%c0_57, %c1_58, %c192_59], %54 {strides = array<i32>} : memref<16x16x288xf32, #tpu.memory_space<vmem>>, vector<15x15x32xf32>,
    %56 = vector.extract_strided_slice %42 {offsets = [1, 0, 0], sizes = [15, 16, 32], strides = [1, 1, 1]} : vector<16x16x32xf32> to vector<15x16x32xf32>
    %c0_60 = arith.constant 0 : index
    %c0_61 = arith.constant 0 : index
    %c224_62 = arith.constant 224 : index
    %57 = vector.load %arg15[%c0_60, %c0_61, %c224_62] : memref<16x16x288xf32, #tpu.memory_space<vmem>>, vector<15x16x32xf32>
    tpu.vector_store %arg15[%c0_60, %c0_61, %c224_62], %56 {strides = array<i32>} : memref<16x16x288xf32, #tpu.memory_space<vmem>>, vector<15x16x32xf32>,
    %58 = vector.extract_strided_slice %42 {offsets = [1, 1, 0], sizes = [15, 15, 32], strides = [1, 1, 1]} : vector<16x16x32xf32> to vector<15x15x32xf32>
    %c0_63 = arith.constant 0 : index
    %c0_64 = arith.constant 0 : index
    %c256_65 = arith.constant 256 : index
    %59 = vector.load %arg15[%c0_63, %c0_64, %c256_65] : memref<16x16x288xf32, #tpu.memory_space<vmem>>, vector<15x15x32xf32>
    tpu.vector_store %arg15[%c0_63, %c0_64, %c256_65], %58 {strides = array<i32>} : memref<16x16x288xf32, #tpu.memory_space<vmem>>, vector<15x15x32xf32>,
    %c0_66 = arith.constant 0 : index
    %c0_67 = arith.constant 0 : index
    %c0_68 = arith.constant 0 : index
    %60 = vector.load %arg15[%c0_66, %c0_67, %c0_68] : memref<16x16x288xf32, #tpu.memory_space<vmem>>, vector<16x16x288xf32>
    %61 = vector.shape_cast %60 : vector<16x16x288xf32> to vector<256x288xf32>
    %62 = arith.truncf %61 : vector<256x288xf32> to vector<256x288xbf16>
    %c0_69 = arith.constant 0 : index
    %c0_70 = arith.constant 0 : index
    %63 = vector.load %arg3[%c0_69, %c0_70] : memref<288x32xbf16, #tpu.memory_space<vmem>>, vector<288x32xbf16>
    %cst_71 = arith.constant dense<0.000000e+00> : vector<256x32xf32>
    %64 = tpu.matmul %62, %63, %cst_71 {dimension_numbers = #tpu.dot_dimension_numbers<[1], [0], [0], [1], [0, 0, 1, 1], [], []>} : vector<256x288xbf16>, vector<288x32xbf16>, vector<256x32xf32> -> vector<256x32xf32>
    %c0_72 = arith.constant 0 : index
    %c0_73 = arith.constant 0 : index
    %65 = vector.load %arg8[%c0_72, %c0_73] : memref<1x32xf32, #tpu.memory_space<vmem>>, vector<1x32xf32>
    %66 = vector.broadcast %65 : vector<1x32xf32> to vector<256x32xf32>
    %67 = arith.mulf %64, %66 : vector<256x32xf32>
    %c0_74 = arith.constant 0 : index
    %c0_75 = arith.constant 0 : index
    %68 = vector.load %arg9[%c0_74, %c0_75] : memref<1x32xf32, #tpu.memory_space<vmem>>, vector<1x32xf32>
    %69 = vector.broadcast %68 : vector<1x32xf32> to vector<256x32xf32>
    %70 = arith.addf %67, %69 : vector<256x32xf32>
    %cst_76 = arith.constant dense<0.000000e+00> : vector<32xf32>
    %71 = vector.multi_reduction <add>, %70, %cst_76 [0] : vector<256x32xf32> to vector<32xf32>
    %72 = vector.shape_cast %71 : vector<32xf32> to vector<1x32xf32>
    %cst_77 = arith.constant 2.560000e+02 : f32
    %73 = vector.broadcast %cst_77 : f32 to vector<1x32xf32>
    %74 = arith.divf %72, %73 : vector<1x32xf32>
    %c0_78 = arith.constant 0 : index
    %c0_79 = arith.constant 0 : index
    %75 = vector.load %arg10[%c0_78, %c0_79] : memref<2x32xf32, #tpu.memory_space<vmem>>, vector<2x32xf32>
    %c0_80 = arith.constant 0 : index
    %c0_81 = arith.constant 0 : index
    %76 = vector.load %arg11[%c0_80, %c0_81] : memref<1x2xf32, #tpu.memory_space<vmem>>, vector<1x2xf32>
    %c0_82 = arith.constant 0 : index
    %c0_83 = arith.constant 0 : index
    %77 = vector.load %arg12[%c0_82, %c0_83] : memref<2x32xf32, #tpu.memory_space<vmem>>, vector<2x32xf32>
    %c0_84 = arith.constant 0 : index
    %c0_85 = arith.constant 0 : index
    %78 = vector.load %arg13[%c0_84, %c0_85] : memref<1x32xf32, #tpu.memory_space<vmem>>, vector<1x32xf32>
    %79 = vector.extract_strided_slice %75 {offsets = [0, 0], sizes = [1, 32], strides = [1, 1]} : vector<2x32xf32> to vector<1x32xf32>
    %80 = arith.mulf %74, %79 : vector<1x32xf32>
    %cst_86 = arith.constant dense<0.000000e+00> : vector<1xf32>
    %81 = vector.multi_reduction <add>, %80, %cst_86 [1] : vector<1x32xf32> to vector<1xf32>
    %82 = vector.shape_cast %81 : vector<1xf32> to vector<1x1xf32>
    %83 = vector.extract_strided_slice %76 {offsets = [0, 0], sizes = [1, 1], strides = [1, 1]} : vector<1x2xf32> to vector<1x1xf32>
    %84 = arith.addf %82, %83 : vector<1x1xf32>
    %cst_87 = arith.constant 0.000000e+00 : f32
    %85 = vector.broadcast %cst_87 : f32 to vector<1x1xf32>
    %86 = arith.maximumf %84, %85 : vector<1x1xf32>
    %87 = vector.extract_strided_slice %77 {offsets = [0, 0], sizes = [1, 32], strides = [1, 1]} : vector<2x32xf32> to vector<1x32xf32>
    %88 = vector.broadcast %86 : vector<1x1xf32> to vector<1x32xf32>
    %89 = arith.mulf %88, %87 : vector<1x32xf32>
    %90 = arith.addf %78, %89 : vector<1x32xf32>
    %91 = vector.extract_strided_slice %75 {offsets = [1, 0], sizes = [1, 32], strides = [1, 1]} : vector<2x32xf32> to vector<1x32xf32>
    %92 = arith.mulf %74, %91 : vector<1x32xf32>
    %cst_88 = arith.constant dense<0.000000e+00> : vector<1xf32>
    %93 = vector.multi_reduction <add>, %92, %cst_88 [1] : vector<1x32xf32> to vector<1xf32>
    %94 = vector.shape_cast %93 : vector<1xf32> to vector<1x1xf32>
    %95 = vector.extract_strided_slice %76 {offsets = [0, 1], sizes = [1, 1], strides = [1, 1]} : vector<1x2xf32> to vector<1x1xf32>
    %96 = arith.addf %94, %95 : vector<1x1xf32>
    %cst_89 = arith.constant 0.000000e+00 : f32
    %97 = vector.broadcast %cst_89 : f32 to vector<1x1xf32>
    %98 = arith.maximumf %96, %97 : vector<1x1xf32>
    %99 = vector.extract_strided_slice %77 {offsets = [1, 0], sizes = [1, 32], strides = [1, 1]} : vector<2x32xf32> to vector<1x32xf32>
    %100 = vector.broadcast %98 : vector<1x1xf32> to vector<1x32xf32>
    %101 = arith.mulf %100, %99 : vector<1x32xf32>
    %102 = arith.addf %90, %101 : vector<1x32xf32>
    %103 = arith.negf %102 : vector<1x32xf32>
    %104 = math.exp %103 : vector<1x32xf32>
    %cst_90 = arith.constant 1.000000e+00 : f32
    %105 = vector.broadcast %cst_90 : f32 to vector<1x32xf32>
    %106 = arith.addf %105, %104 : vector<1x32xf32>
    %107 = arith.divf %105, %106 : vector<1x32xf32>
    %108 = vector.broadcast %107 : vector<1x32xf32> to vector<256x32xf32>
    %109 = arith.mulf %70, %108 : vector<256x32xf32>
    %110 = arith.addf %109, %4 : vector<256x32xf32>
    %cst_91 = arith.constant 0.000000e+00 : f32
    %111 = vector.broadcast %cst_91 : f32 to vector<256x32xf32>
    %112 = arith.maximumf %110, %111 : vector<256x32xf32>
    %113 = vector.shape_cast %112 : vector<256x32xf32> to vector<16x16x32xf32>
    %c0_92 = arith.constant 0 : index
    %c0_93 = arith.constant 0 : index
    %c0_94 = arith.constant 0 : index
    %c0_95 = arith.constant 0 : index
    %114 = vector.load %arg14[%c0_92, %c0_93, %c0_94, %c0_95] : memref<1x16x16x32xf32, #tpu.memory_space<vmem>>, vector<1x16x16x32xf32>
    %115 = vector.shape_cast %114 : vector<1x16x16x32xf32> to vector<16x16x32xf32>
    %116 = vector.shape_cast %113 : vector<16x16x32xf32> to vector<1x16x16x32xf32>
    tpu.vector_store %arg14[%c0_92, %c0_93, %c0_94, %c0_95], %116 {strides = array<i32>} : memref<1x16x16x32xf32, #tpu.memory_space<vmem>>, vector<1x16x16x32xf32>,
    return
  }
  func.func @transform_0(%arg0: i32) -> (i32, i32, i32, i32) {
    %c0_i32 = arith.constant 0 : i32
    %c0_i32_0 = arith.constant 0 : i32
    %c0_i32_1 = arith.constant 0 : i32
    %c0_i32_2 = arith.constant 0 : i32
    return %arg0, %c0_i32, %c0_i32_0, %c0_i32_1 : i32, i32, i32, i32
  }
  func.func @transform_1(%arg0: i32) -> (i32, i32) {
    %c0_i32 = arith.constant 0 : i32
    %c0_i32_0 = arith.constant 0 : i32
    %c0_i32_1 = arith.constant 0 : i32
    return %c0_i32, %c0_i32_0 : i32, i32
  }
  func.func @transform_2(%arg0: i32) -> (i32, i32) {
    %c0_i32 = arith.constant 0 : i32
    %c0_i32_0 = arith.constant 0 : i32
    %c0_i32_1 = arith.constant 0 : i32
    return %c0_i32, %c0_i32_0 : i32, i32
  }
  func.func @transform_3(%arg0: i32) -> (i32, i32) {
    %c0_i32 = arith.constant 0 : i32
    %c0_i32_0 = arith.constant 0 : i32
    %c0_i32_1 = arith.constant 0 : i32
    return %c0_i32, %c0_i32_0 : i32, i32
  }
  func.func @transform_4(%arg0: i32) -> (i32, i32) {
    %c0_i32 = arith.constant 0 : i32
    %c0_i32_0 = arith.constant 0 : i32
    %c0_i32_1 = arith.constant 0 : i32
    return %c0_i32, %c0_i32_0 : i32, i32
  }
  func.func @transform_5(%arg0: i32) -> (i32, i32) {
    %c0_i32 = arith.constant 0 : i32
    %c0_i32_0 = arith.constant 0 : i32
    %c0_i32_1 = arith.constant 0 : i32
    return %c0_i32, %c0_i32_0 : i32, i32
  }
  func.func @transform_6(%arg0: i32) -> (i32, i32) {
    %c0_i32 = arith.constant 0 : i32
    %c0_i32_0 = arith.constant 0 : i32
    %c0_i32_1 = arith.constant 0 : i32
    return %c0_i32, %c0_i32_0 : i32, i32
  }
  func.func @transform_7(%arg0: i32) -> (i32, i32) {
    %c0_i32 = arith.constant 0 : i32
    %c0_i32_0 = arith.constant 0 : i32
    %c0_i32_1 = arith.constant 0 : i32
    return %c0_i32, %c0_i32_0 : i32, i32
  }
  func.func @transform_8(%arg0: i32) -> (i32, i32) {
    %c0_i32 = arith.constant 0 : i32
    %c0_i32_0 = arith.constant 0 : i32
    %c0_i32_1 = arith.constant 0 : i32
    return %c0_i32, %c0_i32_0 : i32, i32
  }
  func.func @transform_9(%arg0: i32) -> (i32, i32) {
    %c0_i32 = arith.constant 0 : i32
    %c0_i32_0 = arith.constant 0 : i32
    %c0_i32_1 = arith.constant 0 : i32
    return %c0_i32, %c0_i32_0 : i32, i32
  }
  func.func @transform_10(%arg0: i32) -> (i32, i32) {
    %c0_i32 = arith.constant 0 : i32
    %c0_i32_0 = arith.constant 0 : i32
    %c0_i32_1 = arith.constant 0 : i32
    return %c0_i32, %c0_i32_0 : i32, i32
  }
  func.func @transform_11(%arg0: i32) -> (i32, i32) {
    %c0_i32 = arith.constant 0 : i32
    %c0_i32_0 = arith.constant 0 : i32
    %c0_i32_1 = arith.constant 0 : i32
    return %c0_i32, %c0_i32_0 : i32, i32
  }
  func.func @transform_12(%arg0: i32) -> (i32, i32) {
    %c0_i32 = arith.constant 0 : i32
    %c0_i32_0 = arith.constant 0 : i32
    %c0_i32_1 = arith.constant 0 : i32
    return %c0_i32, %c0_i32_0 : i32, i32
  }
  func.func @transform_13(%arg0: i32) -> (i32, i32, i32, i32) {
    %c0_i32 = arith.constant 0 : i32
    %c0_i32_0 = arith.constant 0 : i32
    %c0_i32_1 = arith.constant 0 : i32
    %c0_i32_2 = arith.constant 0 : i32
    return %arg0, %c0_i32, %c0_i32_0, %c0_i32_1 : i32, i32, i32, i32
  }
}

</mosaic_0001>

<llo_original>
// kernel: tpu_custom_call.1
$region0: #{tpu_custom_call.1}
  #allocation0 [shape = 'u32[]', space=smem, size = 0x4, offset = 0x4, fixed_abs, tag = 'smem constant byte address 0x4 - core index']
  #allocation1 [shape = 'u32[144,128]{1,0:T(1,128)}', space=vmem, size = 0x12000, scoped, tag = 'internal scratch']
  #allocation2 [shape = 'f32[16,16,288]{2,1,0:T(8,128)}', space=vmem, size = 0x60000, scoped, tag = 'scratch operand']
  %s0 = inlined_call_operand.hbm [shape: f32[2,16,16,32], index: 0, kind: input, shape index: {}]
  %s1 = inlined_call_operand.vmem [shape: bf16[288,32], index: 1, kind: input, shape index: {}]
  %s2 = inlined_call_operand.vmem [shape: bf16[288,32], index: 2, kind: input, shape index: {}]
  %s3 = inlined_call_operand.vmem [shape: f32[1,32], index: 3, kind: input, shape index: {}]
  %s4 = inlined_call_operand.vmem [shape: f32[1,32], index: 4, kind: input, shape index: {}]
  %s5 = inlined_call_operand.vmem [shape: f32[1,32], index: 5, kind: input, shape index: {}]
  %s6 = inlined_call_operand.vmem [shape: f32[1,32], index: 6, kind: input, shape index: {}]
  %s7 = inlined_call_operand.vmem [shape: f32[1,32], index: 7, kind: input, shape index: {}]
  %s8 = inlined_call_operand.vmem [shape: f32[1,32], index: 8, kind: input, shape index: {}]
  %s9 = inlined_call_operand.vmem [shape: f32[2,32], index: 9, kind: input, shape index: {}]
  %s10 = inlined_call_operand.vmem [shape: f32[1,2], index: 10, kind: input, shape index: {}]
  %s11 = inlined_call_operand.vmem [shape: f32[2,32], index: 11, kind: input, shape index: {}]
  %s12 = inlined_call_operand.vmem [shape: f32[1,32], index: 12, kind: input, shape index: {}]
  %s13 = inlined_call_operand.hbm [shape: f32[2,16,16,32], index: 13, kind: output, shape index: {}]
  %s14 = sld [smem:[#allocation0]]
  $region89: #{tpu_custom_call.1} parent=0
    _
  %s16 = ssub.s32 1, %s14
  %s17 = scalar_select 0, %s16, %s14
  $region1: #{tpu_custom_call.1} parent=0
    #allocation3 [shape = 'u8[262144]{0}', space=vmem, size = 0x40000, scoped, tag = 'input window, operand 0']
    #allocation4 [shape = 's32[2]{0}', space=sflag, size = 0x8, scoped, tag = 'scoped memory for tpu_custom_call.1']
    #allocation5 [shape = 's32[2]{0}', space=sflag, size = 0x8, scoped, tag = 'scoped memory for tpu_custom_call.1']
    #allocation6 [shape = 'u8[262144]{0}', space=vmem, size = 0x40000, scoped, tag = 'output window, operand 0']
    %18 = vsyncpa [#allocation4], 0
    %s19 = scalar_lea.sflag [#allocation4], 1
    %20 = vsyncpa %s19, 0
    %21 = vsyncpa [#allocation5], 0
    %s22 = scalar_lea.sflag [#allocation5], 1
    %23 = vsyncpa %s22, 0
    loop: start=0, step=1, limit=4
    $region2: #{tpu_custom_call.1} parent=1 // loop_pre_header
      _
    $region3: #{tpu_custom_call.1} parent=1 // loop_header
      %s25 = sphi 0, %s29
      %p26 = scmp.ge.s32.totalorder %s25, 4
      %s35 = sphi 0, %s37
      %s38 = sphi 0, %s35
      %s39 = sphi 0, %s38
      %s55 = sphi 0, %s39
      %s59 = sphi 0, %s59
      %s61 = sphi 0, %s59
      %s62 = sphi 0, %s61
      %s76 = sphi 0, %s62
      %s80 = sphi 0, %s80
      %s82 = sphi 0, %s80
      %s83 = sphi 0, %s82
      %s97 = sphi 0, %s83
      %s101 = sphi 0, %s101
      %s103 = sphi 0, %s101
      %s104 = sphi 0, %s103
      %s118 = sphi 0, %s104
      %s122 = sphi 0, %s122
      %s124 = sphi 0, %s122
      %s125 = sphi 0, %s124
      %s139 = sphi 0, %s125
      %s143 = sphi 0, %s143
      %s145 = sphi 0, %s143
      %s146 = sphi 0, %s145
      %s160 = sphi 0, %s146
      %s164 = sphi 0, %s164
      %s166 = sphi 0, %s164
      %s167 = sphi 0, %s166
      %s181 = sphi 0, %s167
      %s185 = sphi 0, %s185
      %s187 = sphi 0, %s185
      %s188 = sphi 0, %s187
      %s202 = sphi 0, %s188
      %s206 = sphi 0, %s206
      %s208 = sphi 0, %s206
      %s209 = sphi 0, %s208
      %s223 = sphi 0, %s209
      %s227 = sphi 0, %s227
      %s229 = sphi 0, %s227
      %s230 = sphi 0, %s229
      %s244 = sphi 0, %s230
      %s248 = sphi 0, %s248
      %s250 = sphi 0, %s248
      %s251 = sphi 0, %s250
      %s265 = sphi 0, %s251
      %s269 = sphi 0, %s269
      %s271 = sphi 0, %s269
      %s272 = sphi 0, %s271
      %s286 = sphi 0, %s272
      %s290 = sphi 0, %s290
      %s292 = sphi 0, %s290
      %s293 = sphi 0, %s292
      %s307 = sphi 0, %s293
      %s313 = sphi 0, %s315
      %s316 = sphi 0, %s313
      %s317 = sphi 0, %s316
      %s333 = sphi 0, %s317
    $region4: #{tpu_custom_call.1} parent=1 // loop_header_branch
      %28 = sbr.rel (%p26) target = $region8
    $region5: #{tpu_custom_call.1} parent=1 // loop_body
      %s30 = ssub.s32 %s25, 1
      %s31 = ssub.s32 %s25, 2
      %s32 = sadd.s32 %s25, 1
      %s33 = ssub.s32 %s25, %s32
      %p34 = scmp.eq.s32.totalorder %s33, 0
      %s36 = sadd.s32 %s35, 1
      %s37 = scalar_select %p34, %s35, %s36
      %p40 = pneg %p34
      %p41 = scmp.eq.s32.totalorder %s25, 1
      %p42 = por %p40, %p41
      %p43 = scmp.ne.s32.totalorder %s35, %s38
      %p44 = scmp.eq.s32.totalorder %s25, 0
      %p45 = por %p43, %p44
      %p46 = scmp.ne.s32.totalorder %s35, %s38
      %p47 = scmp.eq.s32.totalorder %s30, 1
      %p48 = por %p46, %p47
      %p49 = scmp.ne.s32.totalorder %s38, %s39
      %p50 = scmp.eq.s32.totalorder %s30, 0
      %p51 = por %p49, %p50
      %p52 = scmp.ne.s32.totalorder %s38, %s39
      %p53 = scmp.eq.s32.totalorder %s31, 1
      %p54 = por %p52, %p53
      %p56 = scmp.ne.s32.totalorder %s39, %s55
      %p57 = scmp.eq.s32.totalorder %s31, 0
      %p58 = por %p56, %p57
      %s60 = sadd.s32 %s59, 1
      %p63 = scmp.eq.s32.totalorder %s25, 1
      %p64 = scmp.ne.s32.totalorder %s59, %s61
      %p65 = scmp.eq.s32.totalorder %s25, 0
      %p66 = por %p64, %p65
      %p67 = scmp.ne.s32.totalorder %s59, %s61
      %p68 = scmp.eq.s32.totalorder %s30, 1
      %p69 = por %p67, %p68
      %p70 = scmp.ne.s32.totalorder %s61, %s62
      %p71 = scmp.eq.s32.totalorder %s30, 0
      %p72 = por %p70, %p71
      %p73 = scmp.ne.s32.totalorder %s61, %s62
      %p74 = scmp.eq.s32.totalorder %s31, 1
      %p75 = por %p73, %p74
      %p77 = scmp.ne.s32.totalorder %s62, %s76
      %p78 = scmp.eq.s32.totalorder %s31, 0
      %p79 = por %p77, %p78
      %s81 = sadd.s32 %s80, 1
      %p84 = scmp.eq.s32.totalorder %s25, 1
      %p85 = scmp.ne.s32.totalorder %s80, %s82
      %p86 = scmp.eq.s32.totalorder %s25, 0
      %p87 = por %p85, %p86
      %p88 = scmp.ne.s32.totalorder %s80, %s82
      %p89 = scmp.eq.s32.totalorder %s30, 1
      %p90 = por %p88, %p89
      %p91 = scmp.ne.s32.totalorder %s82, %s83
      %p92 = scmp.eq.s32.totalorder %s30, 0
      %p93 = por %p91, %p92
      %p94 = scmp.ne.s32.totalorder %s82, %s83
      %p95 = scmp.eq.s32.totalorder %s31, 1
      %p96 = por %p94, %p95
      %p98 = scmp.ne.s32.totalorder %s83, %s97
      %p99 = scmp.eq.s32.totalorder %s31, 0
      %p100 = por %p98, %p99
      %s102 = sadd.s32 %s101, 1
      %p105 = scmp.eq.s32.totalorder %s25, 1
      %p106 = scmp.ne.s32.totalorder %s101, %s103
      %p107 = scmp.eq.s32.totalorder %s25, 0
      %p108 = por %p106, %p107
      %p109 = scmp.ne.s32.totalorder %s101, %s103
      %p110 = scmp.eq.s32.totalorder %s30, 1
      %p111 = por %p109, %p110
      %p112 = scmp.ne.s32.totalorder %s103, %s104
      %p113 = scmp.eq.s32.totalorder %s30, 0
      %p114 = por %p112, %p113
      %p115 = scmp.ne.s32.totalorder %s103, %s104
      %p116 = scmp.eq.s32.totalorder %s31, 1
      %p117 = por %p115, %p116
      %p119 = scmp.ne.s32.totalorder %s104, %s118
      %p120 = scmp.eq.s32.totalorder %s31, 0
      %p121 = por %p119, %p120
      %s123 = sadd.s32 %s122, 1
      %p126 = scmp.eq.s32.totalorder %s25, 1
      %p127 = scmp.ne.s32.totalorder %s122, %s124
      %p128 = scmp.eq.s32.totalorder %s25, 0
      %p129 = por %p127, %p128
      %p130 = scmp.ne.s32.totalorder %s122, %s124
      %p131 = scmp.eq.s32.totalorder %s30, 1
      %p132 = por %p130, %p131
      %p133 = scmp.ne.s32.totalorder %s124, %s125
      %p134 = scmp.eq.s32.totalorder %s30, 0
      %p135 = por %p133, %p134
      %p136 = scmp.ne.s32.totalorder %s124, %s125
      %p137 = scmp.eq.s32.totalorder %s31, 1
      %p138 = por %p136, %p137
      %p140 = scmp.ne.s32.totalorder %s125, %s139
      %p141 = scmp.eq.s32.totalorder %s31, 0
      %p142 = por %p140, %p141
      %s144 = sadd.s32 %s143, 1
      %p147 = scmp.eq.s32.totalorder %s25, 1
      %p148 = scmp.ne.s32.totalorder %s143, %s145
      %p149 = scmp.eq.s32.totalorder %s25, 0
      %p150 = por %p148, %p149
      %p151 = scmp.ne.s32.totalorder %s143, %s145
      %p152 = scmp.eq.s32.totalorder %s30, 1
      %p153 = por %p151, %p152
      %p154 = scmp.ne.s32.totalorder %s145, %s146
      %p155 = scmp.eq.s32.totalorder %s30, 0
      %p156 = por %p154, %p155
      %p157 = scmp.ne.s32.totalorder %s145, %s146
      %p158 = scmp.eq.s32.totalorder %s31, 1
      %p159 = por %p157, %p158
      %p161 = scmp.ne.s32.totalorder %s146, %s160
      %p162 = scmp.eq.s32.totalorder %s31, 0
      %p163 = por %p161, %p162
      %s165 = sadd.s32 %s164, 1
      %p168 = scmp.eq.s32.totalorder %s25, 1
      %p169 = scmp.ne.s32.totalorder %s164, %s166
      %p170 = scmp.eq.s32.totalorder %s25, 0
      %p171 = por %p169, %p170
      %p172 = scmp.ne.s32.totalorder %s164, %s166
      %p173 = scmp.eq.s32.totalorder %s30, 1
      %p174 = por %p172, %p173
      %p175 = scmp.ne.s32.totalorder %s166, %s167
      %p176 = scmp.eq.s32.totalorder %s30, 0
      %p177 = por %p175, %p176
      %p178 = scmp.ne.s32.totalorder %s166, %s167
      %p179 = scmp.eq.s32.totalorder %s31, 1
      %p180 = por %p178, %p179
      %p182 = scmp.ne.s32.totalorder %s167, %s181
      %p183 = scmp.eq.s32.totalorder %s31, 0
      %p184 = por %p182, %p183
      %s186 = sadd.s32 %s185, 1
      %p189 = scmp.eq.s32.totalorder %s25, 1
      %p190 = scmp.ne.s32.totalorder %s185, %s187
      %p191 = scmp.eq.s32.totalorder %s25, 0
      %p192 = por %p190, %p191
      %p193 = scmp.ne.s32.totalorder %s185, %s187
      %p194 = scmp.eq.s32.totalorder %s30, 1
      %p195 = por %p193, %p194
      %p196 = scmp.ne.s32.totalorder %s187, %s188
      %p197 = scmp.eq.s32.totalorder %s30, 0
      %p198 = por %p196, %p197
      %p199 = scmp.ne.s32.totalorder %s187, %s188
      %p200 = scmp.eq.s32.totalorder %s31, 1
      %p201 = por %p199, %p200
      %p203 = scmp.ne.s32.totalorder %s188, %s202
      %p204 = scmp.eq.s32.totalorder %s31, 0
      %p205 = por %p203, %p204
      %s207 = sadd.s32 %s206, 1
      %p210 = scmp.eq.s32.totalorder %s25, 1
      %p211 = scmp.ne.s32.totalorder %s206, %s208
      %p212 = scmp.eq.s32.totalorder %s25, 0
      %p213 = por %p211, %p212
      %p214 = scmp.ne.s32.totalorder %s206, %s208
      %p215 = scmp.eq.s32.totalorder %s30, 1
      %p216 = por %p214, %p215
      %p217 = scmp.ne.s32.totalorder %s208, %s209
      %p218 = scmp.eq.s32.totalorder %s30, 0
      %p219 = por %p217, %p218
      %p220 = scmp.ne.s32.totalorder %s208, %s209
      %p221 = scmp.eq.s32.totalorder %s31, 1
      %p222 = por %p220, %p221
      %p224 = scmp.ne.s32.totalorder %s209, %s223
      %p225 = scmp.eq.s32.totalorder %s31, 0
      %p226 = por %p224, %p225
      %s228 = sadd.s32 %s227, 1
      %p231 = scmp.eq.s32.totalorder %s25, 1
      %p232 = scmp.ne.s32.totalorder %s227, %s229
      %p233 = scmp.eq.s32.totalorder %s25, 0
      %p234 = por %p232, %p233
      %p235 = scmp.ne.s32.totalorder %s227, %s229
      %p236 = scmp.eq.s32.totalorder %s30, 1
      %p237 = por %p235, %p236
      %p238 = scmp.ne.s32.totalorder %s229, %s230
      %p239 = scmp.eq.s32.totalorder %s30, 0
      %p240 = por %p238, %p239
      %p241 = scmp.ne.s32.totalorder %s229, %s230
      %p242 = scmp.eq.s32.totalorder %s31, 1
      %p243 = por %p241, %p242
      %p245 = scmp.ne.s32.totalorder %s230, %s244
      %p246 = scmp.eq.s32.totalorder %s31, 0
      %p247 = por %p245, %p246
      %s249 = sadd.s32 %s248, 1
      %p252 = scmp.eq.s32.totalorder %s25, 1
      %p253 = scmp.ne.s32.totalorder %s248, %s250
      %p254 = scmp.eq.s32.totalorder %s25, 0
      %p255 = por %p253, %p254
      %p256 = scmp.ne.s32.totalorder %s248, %s250
      %p257 = scmp.eq.s32.totalorder %s30, 1
      %p258 = por %p256, %p257
      %p259 = scmp.ne.s32.totalorder %s250, %s251
      %p260 = scmp.eq.s32.totalorder %s30, 0
      %p261 = por %p259, %p260
      %p262 = scmp.ne.s32.totalorder %s250, %s251
      %p263 = scmp.eq.s32.totalorder %s31, 1
      %p264 = por %p262, %p263
      %p266 = scmp.ne.s32.totalorder %s251, %s265
      %p267 = scmp.eq.s32.totalorder %s31, 0
      %p268 = por %p266, %p267
      %s270 = sadd.s32 %s269, 1
      %p273 = scmp.eq.s32.totalorder %s25, 1
      %p274 = scmp.ne.s32.totalorder %s269, %s271
      %p275 = scmp.eq.s32.totalorder %s25, 0
      %p276 = por %p274, %p275
      %p277 = scmp.ne.s32.totalorder %s269, %s271
      %p278 = scmp.eq.s32.totalorder %s30, 1
      %p279 = por %p277, %p278
      %p280 = scmp.ne.s32.totalorder %s271, %s272
      %p281 = scmp.eq.s32.totalorder %s30, 0
      %p282 = por %p280, %p281
      %p283 = scmp.ne.s32.totalorder %s271, %s272
      %p284 = scmp.eq.s32.totalorder %s31, 1
      %p285 = por %p283, %p284
      %p287 = scmp.ne.s32.totalorder %s272, %s286
      %p288 = scmp.eq.s32.totalorder %s31, 0
      %p289 = por %p287, %p288
      %s291 = sadd.s32 %s290, 1
      %p294 = scmp.eq.s32.totalorder %s25, 1
      %p295 = scmp.ne.s32.totalorder %s290, %s292
      %p296 = scmp.eq.s32.totalorder %s25, 0
      %p297 = por %p295, %p296
      %p298 = scmp.ne.s32.totalorder %s290, %s292
      %p299 = scmp.eq.s32.totalorder %s30, 1
      %p300 = por %p298, %p299
      %p301 = scmp.ne.s32.totalorder %s292, %s293
      %p302 = scmp.eq.s32.totalorder %s30, 0
      %p303 = por %p301, %p302
      %p304 = scmp.ne.s32.totalorder %s292, %s293
      %p305 = scmp.eq.s32.totalorder %s31, 1
      %p306 = por %p304, %p305
      %p308 = scmp.ne.s32.totalorder %s293, %s307
      %p309 = scmp.eq.s32.totalorder %s31, 0
      %p310 = por %p308, %p309
      %s311 = ssub.s32 %s25, %s32
      %p312 = scmp.eq.s32.totalorder %s311, 0
      %s314 = sadd.s32 %s313, 1
      %s315 = scalar_select %p312, %s313, %s314
      %p318 = pneg %p312
      %p319 = scmp.eq.s32.totalorder %s25, 1
      %p320 = por %p318, %p319
      %p321 = scmp.ne.s32.totalorder %s313, %s316
      %p322 = scmp.eq.s32.totalorder %s25, 0
      %p323 = por %p321, %p322
      %p324 = scmp.ne.s32.totalorder %s313, %s316
      %p325 = scmp.eq.s32.totalorder %s30, 1
      %p326 = por %p324, %p325
      %p327 = scmp.ne.s32.totalorder %s316, %s317
      %p328 = scmp.eq.s32.totalorder %s30, 0
      %p329 = por %p327, %p328
      %p330 = scmp.ne.s32.totalorder %s316, %s317
      %p331 = scmp.eq.s32.totalorder %s31, 1
      %p332 = por %p330, %p331
      %p334 = scmp.ne.s32.totalorder %s317, %s333
      %p335 = scmp.eq.s32.totalorder %s31, 0
      %p336 = por %p334, %p335
      %p337 = scmp.le.s32.totalorder 1, %s25
      %p338 = scmp.lt.s32.totalorder %s25, 3
      %p339 = pnand %p337, %p338
      %p340 = pneg %p339
      // Predicated region
      $region9: #{tpu_custom_call.1} parent=5 // pred_check
        _
      $region10: #{tpu_custom_call.1} parent=5 // pred_check_branch
        %342 = sbr.rel (%p339) target = $region12
      $region11: #{tpu_custom_call.1} parent=5 // pred_region
        %s343 = ssub.s32 %s25, 1
        // Predicated region
        $region13: #{tpu_custom_call.1} parent=11 // pred_check
          %p344 = pneg %p72
        $region14: #{tpu_custom_call.1} parent=11 // pred_check_branch
          %346 = sbr.rel (%p344) target = $region16
        $region15: #{tpu_custom_call.1} parent=11 // pred_region
          _
        $region16: #{tpu_custom_call.1} parent=11 // pred_fallthru
          _
        // Predicated region
        $region17: #{tpu_custom_call.1} parent=11 // pred_check
          %p347 = pneg %p93
        $region18: #{tpu_custom_call.1} parent=11 // pred_check_branch
          %349 = sbr.rel (%p347) target = $region20
        $region19: #{tpu_custom_call.1} parent=11 // pred_region
          _
        $region20: #{tpu_custom_call.1} parent=11 // pred_fallthru
          _
        // Predicated region
        $region21: #{tpu_custom_call.1} parent=11 // pred_check
          %p350 = pneg %p114
        $region22: #{tpu_custom_call.1} parent=11 // pred_check_branch
          %352 = sbr.rel (%p350) target = $region24
        $region23: #{tpu_custom_call.1} parent=11 // pred_region
          _
        $region24: #{tpu_custom_call.1} parent=11 // pred_fallthru
          _
        // Predicated region
        $region25: #{tpu_custom_call.1} parent=11 // pred_check
          %p353 = pneg %p135
        $region26: #{tpu_custom_call.1} parent=11 // pred_check_branch
          %355 = sbr.rel (%p353) target = $region28
        $region27: #{tpu_custom_call.1} parent=11 // pred_region
          _
        $region28: #{tpu_custom_call.1} parent=11 // pred_fallthru
          _
        // Predicated region
        $region29: #{tpu_custom_call.1} parent=11 // pred_check
          %p356 = pneg %p156
        $region30: #{tpu_custom_call.1} parent=11 // pred_check_branch
          %358 = sbr.rel (%p356) target = $region32
        $region31: #{tpu_custom_call.1} parent=11 // pred_region
          _
        $region32: #{tpu_custom_call.1} parent=11 // pred_fallthru
          _
        // Predicated region
        $region33: #{tpu_custom_call.1} parent=11 // pred_check
          %p359 = pneg %p177
        $region34: #{tpu_custom_call.1} parent=11 // pred_check_branch
          %361 = sbr.rel (%p359) target = $region36
        $region35: #{tpu_custom_call.1} parent=11 // pred_region
          _
        $region36: #{tpu_custom_call.1} parent=11 // pred_fallthru
          _
        // Predicated region
        $region37: #{tpu_custom_call.1} parent=11 // pred_check
          %p362 = pneg %p198
        $region38: #{tpu_custom_call.1} parent=11 // pred_check_branch
          %364 = sbr.rel (%p362) target = $region40
        $region39: #{tpu_custom_call.1} parent=11 // pred_region
          _
        $region40: #{tpu_custom_call.1} parent=11 // pred_fallthru
          _
        // Predicated region
        $region41: #{tpu_custom_call.1} parent=11 // pred_check
          %p365 = pneg %p219
        $region42: #{tpu_custom_call.1} parent=11 // pred_check_branch
          %367 = sbr.rel (%p365) target = $region44
        $region43: #{tpu_custom_call.1} parent=11 // pred_region
          _
        $region44: #{tpu_custom_call.1} parent=11 // pred_fallthru
          _
        // Predicated region
        $region45: #{tpu_custom_call.1} parent=11 // pred_check
          %p368 = pneg %p240
        $region46: #{tpu_custom_call.1} parent=11 // pred_check_branch
          %370 = sbr.rel (%p368) target = $region48
        $region47: #{tpu_custom_call.1} parent=11 // pred_region
          _
        $region48: #{tpu_custom_call.1} parent=11 // pred_fallthru
          _
        // Predicated region
        $region49: #{tpu_custom_call.1} parent=11 // pred_check
          %p371 = pneg %p261
        $region50: #{tpu_custom_call.1} parent=11 // pred_check_branch
          %373 = sbr.rel (%p371) target = $region52
        $region51: #{tpu_custom_call.1} parent=11 // pred_region
          _
        $region52: #{tpu_custom_call.1} parent=11 // pred_fallthru
          _
        // Predicated region
        $region53: #{tpu_custom_call.1} parent=11 // pred_check
          %p374 = pneg %p282
        $region54: #{tpu_custom_call.1} parent=11 // pred_check_branch
          %376 = sbr.rel (%p374) target = $region56
        $region55: #{tpu_custom_call.1} parent=11 // pred_region
          _
        $region56: #{tpu_custom_call.1} parent=11 // pred_fallthru
          _
        // Predicated region
        $region57: #{tpu_custom_call.1} parent=11 // pred_check
          %p377 = pneg %p303
        $region58: #{tpu_custom_call.1} parent=11 // pred_check_branch
          %379 = sbr.rel (%p377) target = $region60
        $region59: #{tpu_custom_call.1} parent=11 // pred_region
          _
        $region60: #{tpu_custom_call.1} parent=11 // pred_fallthru
          _
      $region12: #{tpu_custom_call.1} parent=5 // pred_fallthru
        _
      %p380 = scmp.lt.s32.totalorder %s25, 2
      // Predicated region
      $region61: #{tpu_custom_call.1} parent=5 // pred_check
        %p381 = pneg %p380
      $region62: #{tpu_custom_call.1} parent=5 // pred_check_branch
        %383 = sbr.rel (%p381) target = $region64
      $region63: #{tpu_custom_call.1} parent=5 // pred_region
        // Predicated region
        $region65: #{tpu_custom_call.1} parent=63 // pred_check
          %p384 = pneg %p45
        $region66: #{tpu_custom_call.1} parent=63 // pred_check_branch
          %386 = sbr.rel (%p384) target = $region68
        $region67: #{tpu_custom_call.1} parent=63 // pred_region
          %s387 = sand.u32 %s35, 1
          %s388 = scalar_lea.sflag [#allocation4], %s387
          %s389 = sand.u32 %s35, 1
          %s390 = smul.addr %s389, 256
          %s391 = scalar_lea.vmem [#allocation3], %s390
          %s393 = ssub.s32 4096, 4096
          %394 = vsyncadd %s388, %s393
          %s395 = smul.addr %s25, 32
          %s396 = smul.addr %s395, 128
          %s397 = scalar_lea.hbm %s0, %s396
          %s398 = sshll.u32 %s391, 4
          %s399 = int_to_ptr.vmem [resolvable:$true] %s398
          %404 = dma.hbm_to_vmem [thread:$0]  %s397, 4096, %s399, %s388, 128, 128, 8
        $region68: #{tpu_custom_call.1} parent=63 // pred_fallthru
          _
      $region64: #{tpu_custom_call.1} parent=5 // pred_fallthru
        _
      %p405 = scmp.le.s32.totalorder 1, %s25
      %p406 = scmp.lt.s32.totalorder %s25, 3
      %p407 = pnand %p405, %p406
      %p408 = pneg %p407
      // Predicated region
      $region69: #{tpu_custom_call.1} parent=5 // pred_check
        _
      $region70: #{tpu_custom_call.1} parent=5 // pred_check_branch
        %410 = sbr.rel (%p407) target = $region72
      $region71: #{tpu_custom_call.1} parent=5 // pred_region
        %s411 = ssub.s32 %s25, 1
        %s412 = sand.u32 %s38, 1
        %s413 = scalar_lea.sflag [#allocation4], %s412
        %s414 = sand.u32 %s38, 1
        %s415 = smul.addr %s414, 256
        %s416 = scalar_lea.vmem [#allocation3], %s415
        // Predicated region
        $region73: #{tpu_custom_call.1} parent=71 // pred_check
          %p417 = pneg %p51
        $region74: #{tpu_custom_call.1} parent=71 // pred_check_branch
          %419 = sbr.rel (%p417) target = $region76
        $region75: #{tpu_custom_call.1} parent=71 // pred_region
          %420 = dma.done %s413, 4096
        $region76: #{tpu_custom_call.1} parent=71 // pred_fallthru
          _
        %s421 = sand.u32 %s38, 1
        %s422 = scalar_lea.sflag [#allocation4], %s421
        %s423 = sand.u32 %s38, 1
        %s424 = smul.addr %s423, 256
        %s425 = scalar_lea.vmem [#allocation3], %s424
        %p426 = pneg %p51
        %p427 = pneg %p48
        %p428 = pneg %p72
        %p429 = pneg %p69
        %p430 = pneg %p93
        %p431 = pneg %p90
        %p432 = pneg %p114
        %p433 = pneg %p111
        %p434 = pneg %p135
        %p435 = pneg %p132
        %p436 = pneg %p156
        %p437 = pneg %p153
        %p438 = pneg %p177
        %p439 = pneg %p174
        %p440 = pneg %p198
        %p441 = pneg %p195
        %p442 = pneg %p219
        %p443 = pneg %p216
        %p444 = pneg %p240
        %p445 = pneg %p237
        %p446 = pneg %p261
        %p447 = pneg %p258
        %p448 = pneg %p282
        %p449 = pneg %p279
        %p450 = pneg %p303
        %p451 = pneg %p300
        %p452 = pneg %p329
        %p453 = pneg %p326
        %s454 = sand.u32 %s316, 1
        %s455 = scalar_lea.sflag [#allocation5], %s454
        %s456 = sand.u32 %s316, 1
        %s457 = smul.addr %s456, 256
        %s458 = scalar_lea.vmem [#allocation6], %s457
        %460 = vst [vmem:[#allocation2] sm:$0xff] 0.0
        %461 = vst [vmem:[#allocation2 + $0x8] sm:$0xff] 0.0
        %vm462 = vcmask 261120
        %463 = vst.msk [vmem:[#allocation2 + $0x10] sm:$0xff] %vm462, 0.0
        %464 = vst [vmem:[#allocation2 + $0x18] sm:$0xff] 0.0
        %465 = vst [vmem:[#allocation2 + $0x20] sm:$0xff] 0.0
        %466 = vst.msk [vmem:[#allocation2 + $0x28] sm:$0xff] %vm462, 0.0
        %467 = vst [vmem:[#allocation2 + $0x30] sm:$0xff] 0.0
        %468 = vst [vmem:[#allocation2 + $0x38] sm:$0xff] 0.0
        %469 = vst.msk [vmem:[#allocation2 + $0x40] sm:$0xff] %vm462, 0.0
        %470 = vst [vmem:[#allocation2 + $0x48] sm:$0xff] 0.0
        %471 = vst [vmem:[#allocation2 + $0x50] sm:$0xff] 0.0
        %472 = vst.msk [vmem:[#allocation2 + $0x58] sm:$0xff] %vm462, 0.0
        %473 = vst [vmem:[#allocation2 + $0x60] sm:$0xff] 0.0
        %474 = vst [vmem:[#allocation2 + $0x68] sm:$0xff] 0.0
        %475 = vst.msk [vmem:[#allocation2 + $0x70] sm:$0xff] %vm462, 0.0
        %476 = vst [vmem:[#allocation2 + $0x78] sm:$0xff] 0.0
        %477 = vst [vmem:[#allocation2 + $0x80] sm:$0xff] 0.0
        %478 = vst.msk [vmem:[#allocation2 + $0x88] sm:$0xff] %vm462, 0.0
        %479 = vst [vmem:[#allocation2 + $0x90] sm:$0xff] 0.0
        %480 = vst [vmem:[#allocation2 + $0x98] sm:$0xff] 0.0
        %481 = vst.msk [vmem:[#allocation2 + $0xa0] sm:$0xff] %vm462, 0.0
        %482 = vst [vmem:[#allocation2 + $0xa8] sm:$0xff] 0.0
        %483 = vst [vmem:[#allocation2 + $0xb0] sm:$0xff] 0.0
        %484 = vst.msk [vmem:[#allocation2 + $0xb8] sm:$0xff] %vm462, 0.0
        %485 = vst [vmem:[#allocation2 + $0xc0] sm:$0xff] 0.0
        %486 = vst [vmem:[#allocation2 + $0xc8] sm:$0xff] 0.0
        %487 = vst.msk [vmem:[#allocation2 + $0xd0] sm:$0xff] %vm462, 0.0
        %488 = vst [vmem:[#allocation2 + $0xd8] sm:$0xff] 0.0
        %489 = vst [vmem:[#allocation2 + $0xe0] sm:$0xff] 0.0
        %490 = vst.msk [vmem:[#allocation2 + $0xe8] sm:$0xff] %vm462, 0.0
        %491 = vst [vmem:[#allocation2 + $0xf0] sm:$0xff] 0.0
        %492 = vst [vmem:[#allocation2 + $0xf8] sm:$0xff] 0.0
        %493 = vst.msk [vmem:[#allocation2 + $0x100] sm:$0xff] %vm462, 0.0
        %494 = vst [vmem:[#allocation2 + $0x108] sm:$0xff] 0.0
        %495 = vst [vmem:[#allocation2 + $0x110] sm:$0xff] 0.0
        %496 = vst.msk [vmem:[#allocation2 + $0x118] sm:$0xff] %vm462, 0.0
        %497 = vst [vmem:[#allocation2 + $0x120] sm:$0xff] 0.0
        %498 = vst [vmem:[#allocation2 + $0x128] sm:$0xff] 0.0
        %499 = vst.msk [vmem:[#allocation2 + $0x130] sm:$0xff] %vm462, 0.0
        %500 = vst [vmem:[#allocation2 + $0x138] sm:$0xff] 0.0
        %501 = vst [vmem:[#allocation2 + $0x140] sm:$0xff] 0.0
        %502 = vst.msk [vmem:[#allocation2 + $0x148] sm:$0xff] %vm462, 0.0
        %503 = vst [vmem:[#allocation2 + $0x150] sm:$0xff] 0.0
        %504 = vst [vmem:[#allocation2 + $0x158] sm:$0xff] 0.0
        %505 = vst.msk [vmem:[#allocation2 + $0x160] sm:$0xff] %vm462, 0.0
        %506 = vst [vmem:[#allocation2 + $0x168] sm:$0xff] 0.0
        %507 = vst [vmem:[#allocation2 + $0x170] sm:$0xff] 0.0
        %508 = vst.msk [vmem:[#allocation2 + $0x178] sm:$0xff] %vm462, 0.0
        %509 = vst [vmem:[#allocation2 + $0x180] sm:$0xff] 0.0
        %510 = vst [vmem:[#allocation2 + $0x188] sm:$0xff] 0.0
        %511 = vst.msk [vmem:[#allocation2 + $0x190] sm:$0xff] %vm462, 0.0
        %512 = vst [vmem:[#allocation2 + $0x198] sm:$0xff] 0.0
        %513 = vst [vmem:[#allocation2 + $0x1a0] sm:$0xff] 0.0
        %514 = vst.msk [vmem:[#allocation2 + $0x1a8] sm:$0xff] %vm462, 0.0
        %515 = vst [vmem:[#allocation2 + $0x1b0] sm:$0xff] 0.0
        %516 = vst [vmem:[#allocation2 + $0x1b8] sm:$0xff] 0.0
        %517 = vst.msk [vmem:[#allocation2 + $0x1c0] sm:$0xff] %vm462, 0.0
        %518 = vst [vmem:[#allocation2 + $0x1c8] sm:$0xff] 0.0
        %519 = vst [vmem:[#allocation2 + $0x1d0] sm:$0xff] 0.0
        %520 = vst.msk [vmem:[#allocation2 + $0x1d8] sm:$0xff] %vm462, 0.0
        %521 = vst [vmem:[#allocation2 + $0x1e0] sm:$0xff] 0.0
        %522 = vst [vmem:[#allocation2 + $0x1e8] sm:$0xff] 0.0
        %523 = vst.msk [vmem:[#allocation2 + $0x1f0] sm:$0xff] %vm462, 0.0
        %524 = vst [vmem:[#allocation2 + $0x1f8] sm:$0xff] 0.0
        %525 = vst [vmem:[#allocation2 + $0x200] sm:$0xff] 0.0
        %526 = vst.msk [vmem:[#allocation2 + $0x208] sm:$0xff] %vm462, 0.0
        %527 = vst [vmem:[#allocation2 + $0x210] sm:$0xff] 0.0
        %528 = vst [vmem:[#allocation2 + $0x218] sm:$0xff] 0.0
        %529 = vst.msk [vmem:[#allocation2 + $0x220] sm:$0xff] %vm462, 0.0
        %530 = vst [vmem:[#allocation2 + $0x228] sm:$0xff] 0.0
        %531 = vst [vmem:[#allocation2 + $0x230] sm:$0xff] 0.0
        %532 = vst.msk [vmem:[#allocation2 + $0x238] sm:$0xff] %vm462, 0.0
        %533 = vst [vmem:[#allocation2 + $0x240] sm:$0xff] 0.0
        %534 = vst [vmem:[#allocation2 + $0x248] sm:$0xff] 0.0
        %535 = vst.msk [vmem:[#allocation2 + $0x250] sm:$0xff] %vm462, 0.0
        %536 = vst [vmem:[#allocation2 + $0x258] sm:$0xff] 0.0
        %537 = vst [vmem:[#allocation2 + $0x260] sm:$0xff] 0.0
        %538 = vst.msk [vmem:[#allocation2 + $0x268] sm:$0xff] %vm462, 0.0
        %539 = vst [vmem:[#allocation2 + $0x270] sm:$0xff] 0.0
        %540 = vst [vmem:[#allocation2 + $0x278] sm:$0xff] 0.0
        %541 = vst.msk [vmem:[#allocation2 + $0x280] sm:$0xff] %vm462, 0.0
        %542 = vst [vmem:[#allocation2 + $0x288] sm:$0xff] 0.0
        %543 = vst [vmem:[#allocation2 + $0x290] sm:$0xff] 0.0
        %544 = vst.msk [vmem:[#allocation2 + $0x298] sm:$0xff] %vm462, 0.0
        %545 = vst [vmem:[#allocation2 + $0x2a0] sm:$0xff] 0.0
        %546 = vst [vmem:[#allocation2 + $0x2a8] sm:$0xff] 0.0
        %547 = vst.msk [vmem:[#allocation2 + $0x2b0] sm:$0xff] %vm462, 0.0
        %548 = vst [vmem:[#allocation2 + $0x2b8] sm:$0xff] 0.0
        %549 = vst [vmem:[#allocation2 + $0x2c0] sm:$0xff] 0.0
        %550 = vst.msk [vmem:[#allocation2 + $0x2c8] sm:$0xff] %vm462, 0.0
        %551 = vst [vmem:[#allocation2 + $0x2d0] sm:$0xff] 0.0
        %552 = vst [vmem:[#allocation2 + $0x2d8] sm:$0xff] 0.0
        %553 = vst.msk [vmem:[#allocation2 + $0x2e0] sm:$0xff] %vm462, 0.0
        %554 = vst [vmem:[#allocation2 + $0x2e8] sm:$0xff] 0.0
        %555 = vst [vmem:[#allocation2 + $0x2f0] sm:$0xff] 0.0
        %556 = vst.msk [vmem:[#allocation2 + $0x2f8] sm:$0xff] %vm462, 0.0
        %v557 = vld [vmem:[%s416] sm:$0xff]
        %v558 = vld [vmem:[%s416 + $0x8] sm:$0xff]
        %v559 = vld [vmem:[%s416 + $0x10] sm:$0xff]
        %v560 = vld [vmem:[%s416 + $0x18] sm:$0xff]
        %v561 = vld [vmem:[%s416 + $0x20] sm:$0xff]
        %v562 = vld [vmem:[%s416 + $0x28] sm:$0xff]
        %v563 = vld [vmem:[%s416 + $0x30] sm:$0xff]
        %v564 = vld [vmem:[%s416 + $0x38] sm:$0xff]
        %v565 = vld [vmem:[%s416 + $0x40] sm:$0xff]
        %v566 = vld [vmem:[%s416 + $0x48] sm:$0xff]
        %v567 = vld [vmem:[%s416 + $0x50] sm:$0xff]
        %v568 = vld [vmem:[%s416 + $0x58] sm:$0xff]
        %v569 = vld [vmem:[%s416 + $0x60] sm:$0xff]
        %v570 = vld [vmem:[%s416 + $0x68] sm:$0xff]
        %v571 = vld [vmem:[%s416 + $0x70] sm:$0xff]
        %v572 = vld [vmem:[%s416 + $0x78] sm:$0xff]
        %v573 = vld [vmem:[%s416 + $0x80] sm:$0xff]
        %v574 = vld [vmem:[%s416 + $0x88] sm:$0xff]
        %v575 = vld [vmem:[%s416 + $0x90] sm:$0xff]
        %v576 = vld [vmem:[%s416 + $0x98] sm:$0xff]
        %v577 = vld [vmem:[%s416 + $0xa0] sm:$0xff]
        %v578 = vld [vmem:[%s416 + $0xa8] sm:$0xff]
        %v579 = vld [vmem:[%s416 + $0xb0] sm:$0xff]
        %v580 = vld [vmem:[%s416 + $0xb8] sm:$0xff]
        %v581 = vld [vmem:[%s416 + $0xc0] sm:$0xff]
        %v582 = vld [vmem:[%s416 + $0xc8] sm:$0xff]
        %v583 = vld [vmem:[%s416 + $0xd0] sm:$0xff]
        %v584 = vld [vmem:[%s416 + $0xd8] sm:$0xff]
        %v585 = vld [vmem:[%s416 + $0xe0] sm:$0xff]
        %v586 = vld [vmem:[%s416 + $0xe8] sm:$0xff]
        %v587 = vld [vmem:[%s416 + $0xf0] sm:$0xff]
        %v588 = vld [vmem:[%s416 + $0xf8] sm:$0xff]
        %v589 = vld [vmem:[%s3] sm:$0x1]
        %v591 = vlaneseq
        %v592 = vshrl.u32 %v591, 7
        %v593 = vsub.s32 0, %v592
        %v594 = vrot.slane %v589, %v593
        %v596 = vmul.f32 %v557, %v594
        %v597 = vmul.f32 %v558, %v594
        %v598 = vmul.f32 %v559, %v594
        %v599 = vmul.f32 %v560, %v594
        %v600 = vmul.f32 %v561, %v594
        %v601 = vmul.f32 %v562, %v594
        %v602 = vmul.f32 %v563, %v594
        %v603 = vmul.f32 %v564, %v594
        %v604 = vmul.f32 %v565, %v594
        %v605 = vmul.f32 %v566, %v594
        %v606 = vmul.f32 %v567, %v594
        %v607 = vmul.f32 %v568, %v594
        %v608 = vmul.f32 %v569, %v594
        %v609 = vmul.f32 %v570, %v594
        %v610 = vmul.f32 %v571, %v594
        %v611 = vmul.f32 %v572, %v594
        %v612 = vmul.f32 %v573, %v594
        %v613 = vmul.f32 %v574, %v594
        %v614 = vmul.f32 %v575, %v594
        %v615 = vmul.f32 %v576, %v594
        %v616 = vmul.f32 %v577, %v594
        %v617 = vmul.f32 %v578, %v594
        %v618 = vmul.f32 %v579, %v594
        %v619 = vmul.f32 %v580, %v594
        %v620 = vmul.f32 %v581, %v594
        %v621 = vmul.f32 %v582, %v594
        %v622 = vmul.f32 %v583, %v594
        %v623 = vmul.f32 %v584, %v594
        %v624 = vmul.f32 %v585, %v594
        %v625 = vmul.f32 %v586, %v594
        %v626 = vmul.f32 %v587, %v594
        %v627 = vmul.f32 %v588, %v594
        %v628 = vld [vmem:[%s4] sm:$0x1]
        %v630 = vlaneseq
        %v631 = vshrl.u32 %v630, 7
        %v632 = vsub.s32 0, %v631
        %v633 = vrot.slane %v628, %v632
        %v635 = vadd.f32 %v596, %v633
        %v636 = vadd.f32 %v597, %v633
        %v637 = vadd.f32 %v598, %v633
        %v638 = vadd.f32 %v599, %v633
        %v639 = vadd.f32 %v600, %v633
        %v640 = vadd.f32 %v601, %v633
        %v641 = vadd.f32 %v602, %v633
        %v642 = vadd.f32 %v603, %v633
        %v643 = vadd.f32 %v604, %v633
        %v644 = vadd.f32 %v605, %v633
        %v645 = vadd.f32 %v606, %v633
        %v646 = vadd.f32 %v607, %v633
        %v647 = vadd.f32 %v608, %v633
        %v648 = vadd.f32 %v609, %v633
        %v649 = vadd.f32 %v610, %v633
        %v650 = vadd.f32 %v611, %v633
        %v651 = vadd.f32 %v612, %v633
        %v652 = vadd.f32 %v613, %v633
        %v653 = vadd.f32 %v614, %v633
        %v654 = vadd.f32 %v615, %v633
        %v655 = vadd.f32 %v616, %v633
        %v656 = vadd.f32 %v617, %v633
        %v657 = vadd.f32 %v618, %v633
        %v658 = vadd.f32 %v619, %v633
        %v659 = vadd.f32 %v620, %v633
        %v660 = vadd.f32 %v621, %v633
        %v661 = vadd.f32 %v622, %v633
        %v662 = vadd.f32 %v623, %v633
        %v663 = vadd.f32 %v624, %v633
        %v664 = vadd.f32 %v625, %v633
        %v665 = vadd.f32 %v626, %v633
        %v666 = vadd.f32 %v627, %v633
        %vm697 = vcmask 1040384
        %v698 = vrot.slane %v635, 7
        %v699 = vrot.slane %v636, 7
        %v700 = vsel %vm697, %v698, %v699
        %v701 = vrot.slane %v637, 7
        %v702 = vrot.slane %v638, 7
        %v703 = vsel %vm697, %v701, %v702
        %v704 = vrot.slane %v639, 7
        %v705 = vrot.slane %v640, 7
        %v706 = vsel %vm697, %v704, %v705
        %v707 = vrot.slane %v641, 7
        %v708 = vrot.slane %v642, 7
        %v709 = vsel %vm697, %v707, %v708
        %v710 = vrot.slane %v643, 7
        %v711 = vrot.slane %v644, 7
        %v712 = vsel %vm697, %v710, %v711
        %v713 = vrot.slane %v645, 7
        %v714 = vrot.slane %v646, 7
        %v715 = vsel %vm697, %v713, %v714
        %v716 = vrot.slane %v647, 7
        %v717 = vrot.slane %v648, 7
        %v718 = vsel %vm697, %v716, %v717
        %v719 = vrot.slane %v649, 7
        %v720 = vrot.slane %v650, 7
        %v721 = vsel %vm697, %v719, %v720
        %v722 = vrot.slane %v651, 7
        %v723 = vrot.slane %v652, 7
        %v724 = vsel %vm697, %v722, %v723
        %v725 = vrot.slane %v653, 7
        %v726 = vrot.slane %v654, 7
        %v727 = vsel %vm697, %v725, %v726
        %v728 = vrot.slane %v655, 7
        %v729 = vrot.slane %v656, 7
        %v730 = vsel %vm697, %v728, %v729
        %v731 = vrot.slane %v657, 7
        %v732 = vrot.slane %v658, 7
        %v733 = vsel %vm697, %v731, %v732
        %v734 = vrot.slane %v659, 7
        %v735 = vrot.slane %v660, 7
        %v736 = vsel %vm697, %v734, %v735
        %v737 = vrot.slane %v661, 7
        %v738 = vrot.slane %v662, 7
        %v739 = vsel %vm697, %v737, %v738
        %v740 = vrot.slane %v663, 7
        %v741 = vrot.slane %v664, 7
        %v742 = vsel %vm697, %v740, %v741
        %s773 = scalar_lea.vmem [#allocation2], 48
        %vm774 = vcmask 261121
        %775 = vst.msk [vmem:[%s773] sm:$0xfe] %vm774, %v698
        %776 = vst.msk [vmem:[%s773 + $0x18] sm:$0xff] %vm462, %v700
        %777 = vst.msk [vmem:[%s773 + $0x30] sm:$0xfe] %vm774, %v701
        %778 = vst.msk [vmem:[%s773 + $0x48] sm:$0xff] %vm462, %v703
        %779 = vst.msk [vmem:[%s773 + $0x60] sm:$0xfe] %vm774, %v704
        %780 = vst.msk [vmem:[%s773 + $0x78] sm:$0xff] %vm462, %v706
        %781 = vst.msk [vmem:[%s773 + $0x90] sm:$0xfe] %vm774, %v707
        %782 = vst.msk [vmem:[%s773 + $0xa8] sm:$0xff] %vm462, %v709
        %783 = vst.msk [vmem:[%s773 + $0xc0] sm:$0xfe] %vm774, %v710
        %784 = vst.msk [vmem:[%s773 + $0xd8] sm:$0xff] %vm462, %v712
        %785 = vst.msk [vmem:[%s773 + $0xf0] sm:$0xfe] %vm774, %v713
        %786 = vst.msk [vmem:[%s773 + $0x108] sm:$0xff] %vm462, %v715
        %787 = vst.msk [vmem:[%s773 + $0x120] sm:$0xfe] %vm774, %v716
        %788 = vst.msk [vmem:[%s773 + $0x138] sm:$0xff] %vm462, %v718
        %789 = vst.msk [vmem:[%s773 + $0x150] sm:$0xfe] %vm774, %v719
        %790 = vst.msk [vmem:[%s773 + $0x168] sm:$0xff] %vm462, %v721
        %791 = vst.msk [vmem:[%s773 + $0x180] sm:$0xfe] %vm774, %v722
        %792 = vst.msk [vmem:[%s773 + $0x198] sm:$0xff] %vm462, %v724
        %793 = vst.msk [vmem:[%s773 + $0x1b0] sm:$0xfe] %vm774, %v725
        %794 = vst.msk [vmem:[%s773 + $0x1c8] sm:$0xff] %vm462, %v727
        %795 = vst.msk [vmem:[%s773 + $0x1e0] sm:$0xfe] %vm774, %v728
        %796 = vst.msk [vmem:[%s773 + $0x1f8] sm:$0xff] %vm462, %v730
        %797 = vst.msk [vmem:[%s773 + $0x210] sm:$0xfe] %vm774, %v731
        %798 = vst.msk [vmem:[%s773 + $0x228] sm:$0xff] %vm462, %v733
        %799 = vst.msk [vmem:[%s773 + $0x240] sm:$0xfe] %vm774, %v734
        %800 = vst.msk [vmem:[%s773 + $0x258] sm:$0xff] %vm462, %v736
        %801 = vst.msk [vmem:[%s773 + $0x270] sm:$0xfe] %vm774, %v737
        %802 = vst.msk [vmem:[%s773 + $0x288] sm:$0xff] %vm462, %v739
        %803 = vst.msk [vmem:[%s773 + $0x2a0] sm:$0xfe] %vm774, %v740
        %804 = vst.msk [vmem:[%s773 + $0x2b8] sm:$0xff] %vm462, %v742
        %805 = vrot.lane.b32.xlu0 %v635, 32
        %v806 = vpop.permute.xlu0 %805
        %807 = vrot.lane.b32.xlu0 %v636, 32
        %v808 = vpop.permute.xlu0 %807
        %809 = vrot.lane.b32.xlu0 %v637, 32
        %v810 = vpop.permute.xlu0 %809
        %811 = vrot.lane.b32.xlu0 %v638, 32
        %v812 = vpop.permute.xlu0 %811
        %813 = vrot.lane.b32.xlu0 %v639, 32
        %v814 = vpop.permute.xlu0 %813
        %815 = vrot.lane.b32.xlu0 %v640, 32
        %v816 = vpop.permute.xlu0 %815
        %817 = vrot.lane.b32.xlu0 %v641, 32
        %v818 = vpop.permute.xlu0 %817
        %819 = vrot.lane.b32.xlu0 %v642, 32
        %v820 = vpop.permute.xlu0 %819
        %821 = vrot.lane.b32.xlu0 %v643, 32
        %v822 = vpop.permute.xlu0 %821
        %823 = vrot.lane.b32.xlu0 %v644, 32
        %v824 = vpop.permute.xlu0 %823
        %825 = vrot.lane.b32.xlu0 %v645, 32
        %v826 = vpop.permute.xlu0 %825
        %827 = vrot.lane.b32.xlu0 %v646, 32
        %v828 = vpop.permute.xlu0 %827
        %829 = vrot.lane.b32.xlu0 %v647, 32
        %v830 = vpop.permute.xlu0 %829
        %831 = vrot.lane.b32.xlu0 %v648, 32
        %v832 = vpop.permute.xlu0 %831
        %833 = vrot.lane.b32.xlu0 %v649, 32
        %v834 = vpop.permute.xlu0 %833
        %835 = vrot.lane.b32.xlu0 %v650, 32
        %v836 = vpop.permute.xlu0 %835
        %837 = vrot.lane.b32.xlu0 %v651, 32
        %v838 = vpop.permute.xlu0 %837
        %839 = vrot.lane.b32.xlu0 %v652, 32
        %v840 = vpop.permute.xlu0 %839
        %841 = vrot.lane.b32.xlu0 %v653, 32
        %v842 = vpop.permute.xlu0 %841
        %843 = vrot.lane.b32.xlu0 %v654, 32
        %v844 = vpop.permute.xlu0 %843
        %845 = vrot.lane.b32.xlu0 %v655, 32
        %v846 = vpop.permute.xlu0 %845
        %847 = vrot.lane.b32.xlu0 %v656, 32
        %v848 = vpop.permute.xlu0 %847
        %849 = vrot.lane.b32.xlu0 %v657, 32
        %v850 = vpop.permute.xlu0 %849
        %851 = vrot.lane.b32.xlu0 %v658, 32
        %v852 = vpop.permute.xlu0 %851
        %853 = vrot.lane.b32.xlu0 %v659, 32
        %v854 = vpop.permute.xlu0 %853
        %855 = vrot.lane.b32.xlu0 %v660, 32
        %v856 = vpop.permute.xlu0 %855
        %857 = vrot.lane.b32.xlu0 %v661, 32
        %v858 = vpop.permute.xlu0 %857
        %859 = vrot.lane.b32.xlu0 %v662, 32
        %v860 = vpop.permute.xlu0 %859
        %861 = vrot.lane.b32.xlu0 %v663, 32
        %v862 = vpop.permute.xlu0 %861
        %863 = vrot.lane.b32.xlu0 %v664, 32
        %v864 = vpop.permute.xlu0 %863
        %vm895 = vcmask 523520
        %896 = vst.msk [vmem:[%s773] sm:$0xff] %vm895, %v806
        %897 = vst.msk [vmem:[%s773 + $0x18] sm:$0xff] %vm895, %v808
        %898 = vst.msk [vmem:[%s773 + $0x30] sm:$0xff] %vm895, %v810
        %899 = vst.msk [vmem:[%s773 + $0x48] sm:$0xff] %vm895, %v812
        %900 = vst.msk [vmem:[%s773 + $0x60] sm:$0xff] %vm895, %v814
        %901 = vst.msk [vmem:[%s773 + $0x78] sm:$0xff] %vm895, %v816
        %902 = vst.msk [vmem:[%s773 + $0x90] sm:$0xff] %vm895, %v818
        %903 = vst.msk [vmem:[%s773 + $0xa8] sm:$0xff] %vm895, %v820
        %904 = vst.msk [vmem:[%s773 + $0xc0] sm:$0xff] %vm895, %v822
        %905 = vst.msk [vmem:[%s773 + $0xd8] sm:$0xff] %vm895, %v824
        %906 = vst.msk [vmem:[%s773 + $0xf0] sm:$0xff] %vm895, %v826
        %907 = vst.msk [vmem:[%s773 + $0x108] sm:$0xff] %vm895, %v828
        %908 = vst.msk [vmem:[%s773 + $0x120] sm:$0xff] %vm895, %v830
        %909 = vst.msk [vmem:[%s773 + $0x138] sm:$0xff] %vm895, %v832
        %910 = vst.msk [vmem:[%s773 + $0x150] sm:$0xff] %vm895, %v834
        %911 = vst.msk [vmem:[%s773 + $0x168] sm:$0xff] %vm895, %v836
        %912 = vst.msk [vmem:[%s773 + $0x180] sm:$0xff] %vm895, %v838
        %913 = vst.msk [vmem:[%s773 + $0x198] sm:$0xff] %vm895, %v840
        %914 = vst.msk [vmem:[%s773 + $0x1b0] sm:$0xff] %vm895, %v842
        %915 = vst.msk [vmem:[%s773 + $0x1c8] sm:$0xff] %vm895, %v844
        %916 = vst.msk [vmem:[%s773 + $0x1e0] sm:$0xff] %vm895, %v846
        %917 = vst.msk [vmem:[%s773 + $0x1f8] sm:$0xff] %vm895, %v848
        %918 = vst.msk [vmem:[%s773 + $0x210] sm:$0xff] %vm895, %v850
        %919 = vst.msk [vmem:[%s773 + $0x228] sm:$0xff] %vm895, %v852
        %920 = vst.msk [vmem:[%s773 + $0x240] sm:$0xff] %vm895, %v854
        %921 = vst.msk [vmem:[%s773 + $0x258] sm:$0xff] %vm895, %v856
        %922 = vst.msk [vmem:[%s773 + $0x270] sm:$0xff] %vm895, %v858
        %923 = vst.msk [vmem:[%s773 + $0x288] sm:$0xff] %vm895, %v860
        %924 = vst.msk [vmem:[%s773 + $0x2a0] sm:$0xff] %vm895, %v862
        %925 = vst.msk [vmem:[%s773 + $0x2b8] sm:$0xff] %vm895, %v864
        %vm926 = vcmask 1046528
        %v927 = vrot.slane %v635, 1
        %v928 = vrot.slane %v636, 1
        %v929 = vsel %vm926, %v927, %v928
        %v930 = vrot.slane %v637, 1
        %v931 = vrot.slane %v638, 1
        %v932 = vsel %vm926, %v930, %v931
        %v933 = vrot.slane %v639, 1
        %v934 = vrot.slane %v640, 1
        %v935 = vsel %vm926, %v933, %v934
        %v936 = vrot.slane %v641, 1
        %v937 = vrot.slane %v642, 1
        %v938 = vsel %vm926, %v936, %v937
        %v939 = vrot.slane %v643, 1
        %v940 = vrot.slane %v644, 1
        %v941 = vsel %vm926, %v939, %v940
        %v942 = vrot.slane %v645, 1
        %v943 = vrot.slane %v646, 1
        %v944 = vsel %vm926, %v942, %v943
        %v945 = vrot.slane %v647, 1
        %v946 = vrot.slane %v648, 1
        %v947 = vsel %vm926, %v945, %v946
        %v948 = vrot.slane %v649, 1
        %v949 = vrot.slane %v650, 1
        %v950 = vsel %vm926, %v948, %v949
        %v951 = vrot.slane %v651, 1
        %v952 = vrot.slane %v652, 1
        %v953 = vsel %vm926, %v951, %v952
        %v954 = vrot.slane %v653, 1
        %v955 = vrot.slane %v654, 1
        %v956 = vsel %vm926, %v954, %v955
        %v957 = vrot.slane %v655, 1
        %v958 = vrot.slane %v656, 1
        %v959 = vsel %vm926, %v957, %v958
        %v960 = vrot.slane %v657, 1
        %v961 = vrot.slane %v658, 1
        %v962 = vsel %vm926, %v960, %v961
        %v963 = vrot.slane %v659, 1
        %v964 = vrot.slane %v660, 1
        %v965 = vsel %vm926, %v963, %v964
        %v966 = vrot.slane %v661, 1
        %v967 = vrot.slane %v662, 1
        %v968 = vsel %vm926, %v966, %v967
        %v969 = vrot.slane %v663, 1
        %v970 = vrot.slane %v664, 1
        %v971 = vsel %vm926, %v969, %v970
        %972 = vrot.lane.b32.xlu0 %v929, 64
        %v973 = vpop.permute.xlu0 %972
        %974 = vrot.lane.b32.xlu0 %v928, 64
        %v975 = vpop.permute.xlu0 %974
        %976 = vrot.lane.b32.xlu0 %v932, 64
        %v977 = vpop.permute.xlu0 %976
        %978 = vrot.lane.b32.xlu0 %v931, 64
        %v979 = vpop.permute.xlu0 %978
        %980 = vrot.lane.b32.xlu0 %v935, 64
        %v981 = vpop.permute.xlu0 %980
        %982 = vrot.lane.b32.xlu0 %v934, 64
        %v983 = vpop.permute.xlu0 %982
        %984 = vrot.lane.b32.xlu0 %v938, 64
        %v985 = vpop.permute.xlu0 %984
        %986 = vrot.lane.b32.xlu0 %v937, 64
        %v987 = vpop.permute.xlu0 %986
        %988 = vrot.lane.b32.xlu0 %v941, 64
        %v989 = vpop.permute.xlu0 %988
        %990 = vrot.lane.b32.xlu0 %v940, 64
        %v991 = vpop.permute.xlu0 %990
        %992 = vrot.lane.b32.xlu0 %v944, 64
        %v993 = vpop.permute.xlu0 %992
        %994 = vrot.lane.b32.xlu0 %v943, 64
        %v995 = vpop.permute.xlu0 %994
        %996 = vrot.lane.b32.xlu0 %v947, 64
        %v997 = vpop.permute.xlu0 %996
        %998 = vrot.lane.b32.xlu0 %v946, 64
        %v999 = vpop.permute.xlu0 %998
        %1000 = vrot.lane.b32.xlu0 %v950, 64
        %v1001 = vpop.permute.xlu0 %1000
        %1002 = vrot.lane.b32.xlu0 %v949, 64
        %v1003 = vpop.permute.xlu0 %1002
        %1004 = vrot.lane.b32.xlu0 %v953, 64
        %v1005 = vpop.permute.xlu0 %1004
        %1006 = vrot.lane.b32.xlu0 %v952, 64
        %v1007 = vpop.permute.xlu0 %1006
        %1008 = vrot.lane.b32.xlu0 %v956, 64
        %v1009 = vpop.permute.xlu0 %1008
        %1010 = vrot.lane.b32.xlu0 %v955, 64
        %v1011 = vpop.permute.xlu0 %1010
        %1012 = vrot.lane.b32.xlu0 %v959, 64
        %v1013 = vpop.permute.xlu0 %1012
        %1014 = vrot.lane.b32.xlu0 %v958, 64
        %v1015 = vpop.permute.xlu0 %1014
        %1016 = vrot.lane.b32.xlu0 %v962, 64
        %v1017 = vpop.permute.xlu0 %1016
        %1018 = vrot.lane.b32.xlu0 %v961, 64
        %v1019 = vpop.permute.xlu0 %1018
        %1020 = vrot.lane.b32.xlu0 %v965, 64
        %v1021 = vpop.permute.xlu0 %1020
        %1022 = vrot.lane.b32.xlu0 %v964, 64
        %v1023 = vpop.permute.xlu0 %1022
        %1024 = vrot.lane.b32.xlu0 %v968, 64
        %v1025 = vpop.permute.xlu0 %1024
        %1026 = vrot.lane.b32.xlu0 %v967, 64
        %v1027 = vpop.permute.xlu0 %1026
        %1028 = vrot.lane.b32.xlu0 %v971, 64
        %v1029 = vpop.permute.xlu0 %1028
        %1030 = vrot.lane.b32.xlu0 %v970, 64
        %v1031 = vpop.permute.xlu0 %1030
        %vm1062 = vcmask 785920
        %1063 = vst.msk [vmem:[%s773] sm:$0xff] %vm1062, %v973
        %vm1064 = vcmask 784896
        %1065 = vst.msk [vmem:[%s773 + $0x18] sm:$0x7f] %vm1064, %v975
        %1066 = vst.msk [vmem:[%s773 + $0x30] sm:$0xff] %vm1062, %v977
        %1067 = vst.msk [vmem:[%s773 + $0x48] sm:$0x7f] %vm1064, %v979
        %1068 = vst.msk [vmem:[%s773 + $0x60] sm:$0xff] %vm1062, %v981
        %1069 = vst.msk [vmem:[%s773 + $0x78] sm:$0x7f] %vm1064, %v983
        %1070 = vst.msk [vmem:[%s773 + $0x90] sm:$0xff] %vm1062, %v985
        %1071 = vst.msk [vmem:[%s773 + $0xa8] sm:$0x7f] %vm1064, %v987
        %1072 = vst.msk [vmem:[%s773 + $0xc0] sm:$0xff] %vm1062, %v989
        %1073 = vst.msk [vmem:[%s773 + $0xd8] sm:$0x7f] %vm1064, %v991
        %1074 = vst.msk [vmem:[%s773 + $0xf0] sm:$0xff] %vm1062, %v993
        %1075 = vst.msk [vmem:[%s773 + $0x108] sm:$0x7f] %vm1064, %v995
        %1076 = vst.msk [vmem:[%s773 + $0x120] sm:$0xff] %vm1062, %v997
        %1077 = vst.msk [vmem:[%s773 + $0x138] sm:$0x7f] %vm1064, %v999
        %1078 = vst.msk [vmem:[%s773 + $0x150] sm:$0xff] %vm1062, %v1001
        %1079 = vst.msk [vmem:[%s773 + $0x168] sm:$0x7f] %vm1064, %v1003
        %1080 = vst.msk [vmem:[%s773 + $0x180] sm:$0xff] %vm1062, %v1005
        %1081 = vst.msk [vmem:[%s773 + $0x198] sm:$0x7f] %vm1064, %v1007
        %1082 = vst.msk [vmem:[%s773 + $0x1b0] sm:$0xff] %vm1062, %v1009
        %1083 = vst.msk [vmem:[%s773 + $0x1c8] sm:$0x7f] %vm1064, %v1011
        %1084 = vst.msk [vmem:[%s773 + $0x1e0] sm:$0xff] %vm1062, %v1013
        %1085 = vst.msk [vmem:[%s773 + $0x1f8] sm:$0x7f] %vm1064, %v1015
        %1086 = vst.msk [vmem:[%s773 + $0x210] sm:$0xff] %vm1062, %v1017
        %1087 = vst.msk [vmem:[%s773 + $0x228] sm:$0x7f] %vm1064, %v1019
        %1088 = vst.msk [vmem:[%s773 + $0x240] sm:$0xff] %vm1062, %v1021
        %1089 = vst.msk [vmem:[%s773 + $0x258] sm:$0x7f] %vm1064, %v1023
        %1090 = vst.msk [vmem:[%s773 + $0x270] sm:$0xff] %vm1062, %v1025
        %1091 = vst.msk [vmem:[%s773 + $0x288] sm:$0x7f] %vm1064, %v1027
        %1092 = vst.msk [vmem:[%s773 + $0x2a0] sm:$0xff] %vm1062, %v1029
        %1093 = vst.msk [vmem:[%s773 + $0x2b8] sm:$0x7f] %vm1064, %v1031
        %v1096 = vrot.slane %v665, 7
        %v1097 = vrot.slane %v666, 7
        %v1098 = vsel %vm697, %v1096, %v1097
        %1099 = vrot.lane.b32.xlu0 %v698, 96
        %v1100 = vpop.permute.xlu0 %1099
        %1101 = vrot.lane.b32.xlu0 %v700, 96
        %v1102 = vpop.permute.xlu0 %1101
        %1103 = vrot.lane.b32.xlu0 %v701, 96
        %v1104 = vpop.permute.xlu0 %1103
        %1105 = vrot.lane.b32.xlu0 %v703, 96
        %v1106 = vpop.permute.xlu0 %1105
        %1107 = vrot.lane.b32.xlu0 %v704, 96
        %v1108 = vpop.permute.xlu0 %1107
        %1109 = vrot.lane.b32.xlu0 %v706, 96
        %v1110 = vpop.permute.xlu0 %1109
        %1111 = vrot.lane.b32.xlu0 %v707, 96
        %v1112 = vpop.permute.xlu0 %1111
        %1113 = vrot.lane.b32.xlu0 %v709, 96
        %v1114 = vpop.permute.xlu0 %1113
        %1115 = vrot.lane.b32.xlu0 %v710, 96
        %v1116 = vpop.permute.xlu0 %1115
        %1117 = vrot.lane.b32.xlu0 %v712, 96
        %v1118 = vpop.permute.xlu0 %1117
        %1119 = vrot.lane.b32.xlu0 %v713, 96
        %v1120 = vpop.permute.xlu0 %1119
        %1121 = vrot.lane.b32.xlu0 %v715, 96
        %v1122 = vpop.permute.xlu0 %1121
        %1123 = vrot.lane.b32.xlu0 %v716, 96
        %v1124 = vpop.permute.xlu0 %1123
        %1125 = vrot.lane.b32.xlu0 %v718, 96
        %v1126 = vpop.permute.xlu0 %1125
        %1127 = vrot.lane.b32.xlu0 %v719, 96
        %v1128 = vpop.permute.xlu0 %1127
        %1129 = vrot.lane.b32.xlu0 %v721, 96
        %v1130 = vpop.permute.xlu0 %1129
        %1131 = vrot.lane.b32.xlu0 %v722, 96
        %v1132 = vpop.permute.xlu0 %1131
        %1133 = vrot.lane.b32.xlu0 %v724, 96
        %v1134 = vpop.permute.xlu0 %1133
        %1135 = vrot.lane.b32.xlu0 %v725, 96
        %v1136 = vpop.permute.xlu0 %1135
        %1137 = vrot.lane.b32.xlu0 %v727, 96
        %v1138 = vpop.permute.xlu0 %1137
        %1139 = vrot.lane.b32.xlu0 %v728, 96
        %v1140 = vpop.permute.xlu0 %1139
        %1141 = vrot.lane.b32.xlu0 %v730, 96
        %v1142 = vpop.permute.xlu0 %1141
        %1143 = vrot.lane.b32.xlu0 %v731, 96
        %v1144 = vpop.permute.xlu0 %1143
        %1145 = vrot.lane.b32.xlu0 %v733, 96
        %v1146 = vpop.permute.xlu0 %1145
        %1147 = vrot.lane.b32.xlu0 %v734, 96
        %v1148 = vpop.permute.xlu0 %1147
        %1149 = vrot.lane.b32.xlu0 %v736, 96
        %v1150 = vpop.permute.xlu0 %1149
        %1151 = vrot.lane.b32.xlu0 %v737, 96
        %v1152 = vpop.permute.xlu0 %1151
        %1153 = vrot.lane.b32.xlu0 %v739, 96
        %v1154 = vpop.permute.xlu0 %1153
        %1155 = vrot.lane.b32.xlu0 %v740, 96
        %v1156 = vpop.permute.xlu0 %1155
        %1157 = vrot.lane.b32.xlu0 %v742, 96
        %v1158 = vpop.permute.xlu0 %1157
        %1159 = vrot.lane.b32.xlu0 %v1096, 96
        %v1160 = vpop.permute.xlu0 %1159
        %1161 = vrot.lane.b32.xlu0 %v1098, 96
        %v1162 = vpop.permute.xlu0 %1161
        %vm1195 = vcmask 1048321
        %1196 = vst.msk [vmem:[#allocation2] sm:$0xfe] %vm1195, %v1100
        %vm1197 = vcmask 1048320
        %1198 = vst.msk [vmem:[#allocation2 + $0x18] sm:$0xff] %vm1197, %v1102
        %1199 = vst.msk [vmem:[#allocation2 + $0x30] sm:$0xfe] %vm1195, %v1104
        %1200 = vst.msk [vmem:[#allocation2 + $0x48] sm:$0xff] %vm1197, %v1106
        %1201 = vst.msk [vmem:[#allocation2 + $0x60] sm:$0xfe] %vm1195, %v1108
        %1202 = vst.msk [vmem:[#allocation2 + $0x78] sm:$0xff] %vm1197, %v1110
        %1203 = vst.msk [vmem:[#allocation2 + $0x90] sm:$0xfe] %vm1195, %v1112
        %1204 = vst.msk [vmem:[#allocation2 + $0xa8] sm:$0xff] %vm1197, %v1114
        %1205 = vst.msk [vmem:[#allocation2 + $0xc0] sm:$0xfe] %vm1195, %v1116
        %1206 = vst.msk [vmem:[#allocation2 + $0xd8] sm:$0xff] %vm1197, %v1118
        %1207 = vst.msk [vmem:[#allocation2 + $0xf0] sm:$0xfe] %vm1195, %v1120
        %1208 = vst.msk [vmem:[#allocation2 + $0x108] sm:$0xff] %vm1197, %v1122
        %1209 = vst.msk [vmem:[#allocation2 + $0x120] sm:$0xfe] %vm1195, %v1124
        %1210 = vst.msk [vmem:[#allocation2 + $0x138] sm:$0xff] %vm1197, %v1126
        %1211 = vst.msk [vmem:[#allocation2 + $0x150] sm:$0xfe] %vm1195, %v1128
        %1212 = vst.msk [vmem:[#allocation2 + $0x168] sm:$0xff] %vm1197, %v1130
        %1213 = vst.msk [vmem:[#allocation2 + $0x180] sm:$0xfe] %vm1195, %v1132
        %1214 = vst.msk [vmem:[#allocation2 + $0x198] sm:$0xff] %vm1197, %v1134
        %1215 = vst.msk [vmem:[#allocation2 + $0x1b0] sm:$0xfe] %vm1195, %v1136
        %1216 = vst.msk [vmem:[#allocation2 + $0x1c8] sm:$0xff] %vm1197, %v1138
        %1217 = vst.msk [vmem:[#allocation2 + $0x1e0] sm:$0xfe] %vm1195, %v1140
        %1218 = vst.msk [vmem:[#allocation2 + $0x1f8] sm:$0xff] %vm1197, %v1142
        %1219 = vst.msk [vmem:[#allocation2 + $0x210] sm:$0xfe] %vm1195, %v1144
        %1220 = vst.msk [vmem:[#allocation2 + $0x228] sm:$0xff] %vm1197, %v1146
        %1221 = vst.msk [vmem:[#allocation2 + $0x240] sm:$0xfe] %vm1195, %v1148
        %1222 = vst.msk [vmem:[#allocation2 + $0x258] sm:$0xff] %vm1197, %v1150
        %1223 = vst.msk [vmem:[#allocation2 + $0x270] sm:$0xfe] %vm1195, %v1152
        %1224 = vst.msk [vmem:[#allocation2 + $0x288] sm:$0xff] %vm1197, %v1154
        %1225 = vst.msk [vmem:[#allocation2 + $0x2a0] sm:$0xfe] %vm1195, %v1156
        %1226 = vst.msk [vmem:[#allocation2 + $0x2b8] sm:$0xff] %vm1197, %v1158
        %1227 = vst.msk [vmem:[#allocation2 + $0x2d0] sm:$0xfe] %vm1195, %v1160
        %1228 = vst.msk [vmem:[#allocation2 + $0x2e8] sm:$0xff] %vm1197, %v1162
        %1229 = vst.msk [vmem:[#allocation2 + $0x8] sm:$0xff] %vm462, %v635
        %1230 = vst.msk [vmem:[#allocation2 + $0x20] sm:$0xff] %vm462, %v636
        %1231 = vst.msk [vmem:[#allocation2 + $0x38] sm:$0xff] %vm462, %v637
        %1232 = vst.msk [vmem:[#allocation2 + $0x50] sm:$0xff] %vm462, %v638
        %1233 = vst.msk [vmem:[#allocation2 + $0x68] sm:$0xff] %vm462, %v639
        %1234 = vst.msk [vmem:[#allocation2 + $0x80] sm:$0xff] %vm462, %v640
        %1235 = vst.msk [vmem:[#allocation2 + $0x98] sm:$0xff] %vm462, %v641
        %1236 = vst.msk [vmem:[#allocation2 + $0xb0] sm:$0xff] %vm462, %v642
        %1237 = vst.msk [vmem:[#allocation2 + $0xc8] sm:$0xff] %vm462, %v643
        %1238 = vst.msk [vmem:[#allocation2 + $0xe0] sm:$0xff] %vm462, %v644
        %1239 = vst.msk [vmem:[#allocation2 + $0xf8] sm:$0xff] %vm462, %v645
        %1240 = vst.msk [vmem:[#allocation2 + $0x110] sm:$0xff] %vm462, %v646
        %1241 = vst.msk [vmem:[#allocation2 + $0x128] sm:$0xff] %vm462, %v647
        %1242 = vst.msk [vmem:[#allocation2 + $0x140] sm:$0xff] %vm462, %v648
        %1243 = vst.msk [vmem:[#allocation2 + $0x158] sm:$0xff] %vm462, %v649
        %1244 = vst.msk [vmem:[#allocation2 + $0x170] sm:$0xff] %vm462, %v650
        %1245 = vst.msk [vmem:[#allocation2 + $0x188] sm:$0xff] %vm462, %v651
        %1246 = vst.msk [vmem:[#allocation2 + $0x1a0] sm:$0xff] %vm462, %v652
        %1247 = vst.msk [vmem:[#allocation2 + $0x1b8] sm:$0xff] %vm462, %v653
        %1248 = vst.msk [vmem:[#allocation2 + $0x1d0] sm:$0xff] %vm462, %v654
        %1249 = vst.msk [vmem:[#allocation2 + $0x1e8] sm:$0xff] %vm462, %v655
        %1250 = vst.msk [vmem:[#allocation2 + $0x200] sm:$0xff] %vm462, %v656
        %1251 = vst.msk [vmem:[#allocation2 + $0x218] sm:$0xff] %vm462, %v657
        %1252 = vst.msk [vmem:[#allocation2 + $0x230] sm:$0xff] %vm462, %v658
        %1253 = vst.msk [vmem:[#allocation2 + $0x248] sm:$0xff] %vm462, %v659
        %1254 = vst.msk [vmem:[#allocation2 + $0x260] sm:$0xff] %vm462, %v660
        %1255 = vst.msk [vmem:[#allocation2 + $0x278] sm:$0xff] %vm462, %v661
        %1256 = vst.msk [vmem:[#allocation2 + $0x290] sm:$0xff] %vm462, %v662
        %1257 = vst.msk [vmem:[#allocation2 + $0x2a8] sm:$0xff] %vm462, %v663
        %1258 = vst.msk [vmem:[#allocation2 + $0x2c0] sm:$0xff] %vm462, %v664
        %1259 = vst.msk [vmem:[#allocation2 + $0x2d8] sm:$0xff] %vm462, %v665
        %1260 = vst.msk [vmem:[#allocation2 + $0x2f0] sm:$0xff] %vm462, %v666
        %v1261 = vrot.slane %v665, 1
        %v1262 = vrot.slane %v666, 1
        %v1263 = vsel %vm926, %v1261, %v1262
        %1264 = vrot.lane.b32.xlu0 %v929, 32
        %v1265 = vpop.permute.xlu0 %1264
        %1266 = vrot.lane.b32.xlu0 %v928, 32
        %v1267 = vpop.permute.xlu0 %1266
        %1268 = vrot.lane.b32.xlu0 %v932, 32
        %v1269 = vpop.permute.xlu0 %1268
        %1270 = vrot.lane.b32.xlu0 %v931, 32
        %v1271 = vpop.permute.xlu0 %1270
        %1272 = vrot.lane.b32.xlu0 %v935, 32
        %v1273 = vpop.permute.xlu0 %1272
        %1274 = vrot.lane.b32.xlu0 %v934, 32
        %v1275 = vpop.permute.xlu0 %1274
        %1276 = vrot.lane.b32.xlu0 %v938, 32
        %v1277 = vpop.permute.xlu0 %1276
        %1278 = vrot.lane.b32.xlu0 %v937, 32
        %v1279 = vpop.permute.xlu0 %1278
        %1280 = vrot.lane.b32.xlu0 %v941, 32
        %v1281 = vpop.permute.xlu0 %1280
        %1282 = vrot.lane.b32.xlu0 %v940, 32
        %v1283 = vpop.permute.xlu0 %1282
        %1284 = vrot.lane.b32.xlu0 %v944, 32
        %v1285 = vpop.permute.xlu0 %1284
        %1286 = vrot.lane.b32.xlu0 %v943, 32
        %v1287 = vpop.permute.xlu0 %1286
        %1288 = vrot.lane.b32.xlu0 %v947, 32
        %v1289 = vpop.permute.xlu0 %1288
        %1290 = vrot.lane.b32.xlu0 %v946, 32
        %v1291 = vpop.permute.xlu0 %1290
        %1292 = vrot.lane.b32.xlu0 %v950, 32
        %v1293 = vpop.permute.xlu0 %1292
        %1294 = vrot.lane.b32.xlu0 %v949, 32
        %v1295 = vpop.permute.xlu0 %1294
        %1296 = vrot.lane.b32.xlu0 %v953, 32
        %v1297 = vpop.permute.xlu0 %1296
        %1298 = vrot.lane.b32.xlu0 %v952, 32
        %v1299 = vpop.permute.xlu0 %1298
        %1300 = vrot.lane.b32.xlu0 %v956, 32
        %v1301 = vpop.permute.xlu0 %1300
        %1302 = vrot.lane.b32.xlu0 %v955, 32
        %v1303 = vpop.permute.xlu0 %1302
        %1304 = vrot.lane.b32.xlu0 %v959, 32
        %v1305 = vpop.permute.xlu0 %1304
        %1306 = vrot.lane.b32.xlu0 %v958, 32
        %v1307 = vpop.permute.xlu0 %1306
        %1308 = vrot.lane.b32.xlu0 %v962, 32
        %v1309 = vpop.permute.xlu0 %1308
        %1310 = vrot.lane.b32.xlu0 %v961, 32
        %v1311 = vpop.permute.xlu0 %1310
        %1312 = vrot.lane.b32.xlu0 %v965, 32
        %v1313 = vpop.permute.xlu0 %1312
        %1314 = vrot.lane.b32.xlu0 %v964, 32
        %v1315 = vpop.permute.xlu0 %1314
        %1316 = vrot.lane.b32.xlu0 %v968, 32
        %v1317 = vpop.permute.xlu0 %1316
        %1318 = vrot.lane.b32.xlu0 %v967, 32
        %v1319 = vpop.permute.xlu0 %1318
        %1320 = vrot.lane.b32.xlu0 %v971, 32
        %v1321 = vpop.permute.xlu0 %1320
        %1322 = vrot.lane.b32.xlu0 %v970, 32
        %v1323 = vpop.permute.xlu0 %1322
        %1324 = vrot.lane.b32.xlu0 %v1263, 32
        %v1325 = vpop.permute.xlu0 %1324
        %1326 = vrot.lane.b32.xlu0 %v1262, 32
        %v1327 = vpop.permute.xlu0 %1326
        %1360 = vst.msk [vmem:[#allocation2 + $0x8] sm:$0xff] %vm895, %v1265
        %vm1361 = vcmask 522496
        %1362 = vst.msk [vmem:[#allocation2 + $0x20] sm:$0x7f] %vm1361, %v1267
        %1363 = vst.msk [vmem:[#allocation2 + $0x38] sm:$0xff] %vm895, %v1269
        %1364 = vst.msk [vmem:[#allocation2 + $0x50] sm:$0x7f] %vm1361, %v1271
        %1365 = vst.msk [vmem:[#allocation2 + $0x68] sm:$0xff] %vm895, %v1273
        %1366 = vst.msk [vmem:[#allocation2 + $0x80] sm:$0x7f] %vm1361, %v1275
        %1367 = vst.msk [vmem:[#allocation2 + $0x98] sm:$0xff] %vm895, %v1277
        %1368 = vst.msk [vmem:[#allocation2 + $0xb0] sm:$0x7f] %vm1361, %v1279
        %1369 = vst.msk [vmem:[#allocation2 + $0xc8] sm:$0xff] %vm895, %v1281
        %1370 = vst.msk [vmem:[#allocation2 + $0xe0] sm:$0x7f] %vm1361, %v1283
        %1371 = vst.msk [vmem:[#allocation2 + $0xf8] sm:$0xff] %vm895, %v1285
        %1372 = vst.msk [vmem:[#allocation2 + $0x110] sm:$0x7f] %vm1361, %v1287
        %1373 = vst.msk [vmem:[#allocation2 + $0x128] sm:$0xff] %vm895, %v1289
        %1374 = vst.msk [vmem:[#allocation2 + $0x140] sm:$0x7f] %vm1361, %v1291
        %1375 = vst.msk [vmem:[#allocation2 + $0x158] sm:$0xff] %vm895, %v1293
        %1376 = vst.msk [vmem:[#allocation2 + $0x170] sm:$0x7f] %vm1361, %v1295
        %1377 = vst.msk [vmem:[#allocation2 + $0x188] sm:$0xff] %vm895, %v1297
        %1378 = vst.msk [vmem:[#allocation2 + $0x1a0] sm:$0x7f] %vm1361, %v1299
        %1379 = vst.msk [vmem:[#allocation2 + $0x1b8] sm:$0xff] %vm895, %v1301
        %1380 = vst.msk [vmem:[#allocation2 + $0x1d0] sm:$0x7f] %vm1361, %v1303
        %1381 = vst.msk [vmem:[#allocation2 + $0x1e8] sm:$0xff] %vm895, %v1305
        %1382 = vst.msk [vmem:[#allocation2 + $0x200] sm:$0x7f] %vm1361, %v1307
        %1383 = vst.msk [vmem:[#allocation2 + $0x218] sm:$0xff] %vm895, %v1309
        %1384 = vst.msk [vmem:[#allocation2 + $0x230] sm:$0x7f] %vm1361, %v1311
        %1385 = vst.msk [vmem:[#allocation2 + $0x248] sm:$0xff] %vm895, %v1313
        %1386 = vst.msk [vmem:[#allocation2 + $0x260] sm:$0x7f] %vm1361, %v1315
        %1387 = vst.msk [vmem:[#allocation2 + $0x278] sm:$0xff] %vm895, %v1317
        %1388 = vst.msk [vmem:[#allocation2 + $0x290] sm:$0x7f] %vm1361, %v1319
        %1389 = vst.msk [vmem:[#allocation2 + $0x2a8] sm:$0xff] %vm895, %v1321
        %1390 = vst.msk [vmem:[#allocation2 + $0x2c0] sm:$0x7f] %vm1361, %v1323
        %1391 = vst.msk [vmem:[#allocation2 + $0x2d8] sm:$0xff] %vm895, %v1325
        %1392 = vst.msk [vmem:[#allocation2 + $0x2f0] sm:$0x7f] %vm1361, %v1327
        %1393 = vrot.lane.b32.xlu0 %v701, 64
        %v1394 = vpop.permute.xlu0 %1393
        %1395 = vrot.lane.b32.xlu0 %v703, 64
        %v1396 = vpop.permute.xlu0 %1395
        %1397 = vrot.lane.b32.xlu0 %v704, 64
        %v1398 = vpop.permute.xlu0 %1397
        %1399 = vrot.lane.b32.xlu0 %v706, 64
        %v1400 = vpop.permute.xlu0 %1399
        %1401 = vrot.lane.b32.xlu0 %v707, 64
        %v1402 = vpop.permute.xlu0 %1401
        %1403 = vrot.lane.b32.xlu0 %v709, 64
        %v1404 = vpop.permute.xlu0 %1403
        %1405 = vrot.lane.b32.xlu0 %v710, 64
        %v1406 = vpop.permute.xlu0 %1405
        %1407 = vrot.lane.b32.xlu0 %v712, 64
        %v1408 = vpop.permute.xlu0 %1407
        %1409 = vrot.lane.b32.xlu0 %v713, 64
        %v1410 = vpop.permute.xlu0 %1409
        %1411 = vrot.lane.b32.xlu0 %v715, 64
        %v1412 = vpop.permute.xlu0 %1411
        %1413 = vrot.lane.b32.xlu0 %v716, 64
        %v1414 = vpop.permute.xlu0 %1413
        %1415 = vrot.lane.b32.xlu0 %v718, 64
        %v1416 = vpop.permute.xlu0 %1415
        %1417 = vrot.lane.b32.xlu0 %v719, 64
        %v1418 = vpop.permute.xlu0 %1417
        %1419 = vrot.lane.b32.xlu0 %v721, 64
        %v1420 = vpop.permute.xlu0 %1419
        %1421 = vrot.lane.b32.xlu0 %v722, 64
        %v1422 = vpop.permute.xlu0 %1421
        %1423 = vrot.lane.b32.xlu0 %v724, 64
        %v1424 = vpop.permute.xlu0 %1423
        %1425 = vrot.lane.b32.xlu0 %v725, 64
        %v1426 = vpop.permute.xlu0 %1425
        %1427 = vrot.lane.b32.xlu0 %v727, 64
        %v1428 = vpop.permute.xlu0 %1427
        %1429 = vrot.lane.b32.xlu0 %v728, 64
        %v1430 = vpop.permute.xlu0 %1429
        %1431 = vrot.lane.b32.xlu0 %v730, 64
        %v1432 = vpop.permute.xlu0 %1431
        %1433 = vrot.lane.b32.xlu0 %v731, 64
        %v1434 = vpop.permute.xlu0 %1433
        %1435 = vrot.lane.b32.xlu0 %v733, 64
        %v1436 = vpop.permute.xlu0 %1435
        %1437 = vrot.lane.b32.xlu0 %v734, 64
        %v1438 = vpop.permute.xlu0 %1437
        %1439 = vrot.lane.b32.xlu0 %v736, 64
        %v1440 = vpop.permute.xlu0 %1439
        %1441 = vrot.lane.b32.xlu0 %v737, 64
        %v1442 = vpop.permute.xlu0 %1441
        %1443 = vrot.lane.b32.xlu0 %v739, 64
        %v1444 = vpop.permute.xlu0 %1443
        %1445 = vrot.lane.b32.xlu0 %v740, 64
        %v1446 = vpop.permute.xlu0 %1445
        %1447 = vrot.lane.b32.xlu0 %v742, 64
        %v1448 = vpop.permute.xlu0 %1447
        %1449 = vrot.lane.b32.xlu0 %v1096, 64
        %v1450 = vpop.permute.xlu0 %1449
        %1451 = vrot.lane.b32.xlu0 %v1098, 64
        %v1452 = vpop.permute.xlu0 %1451
        %vm1483 = vcmask 785921
        %1484 = vst.msk [vmem:[#allocation2 + $0x8] sm:$0xfe] %vm1483, %v1394
        %1485 = vst.msk [vmem:[#allocation2 + $0x20] sm:$0xff] %vm1062, %v1396
        %1486 = vst.msk [vmem:[#allocation2 + $0x38] sm:$0xfe] %vm1483, %v1398
        %1487 = vst.msk [vmem:[#allocation2 + $0x50] sm:$0xff] %vm1062, %v1400
        %1488 = vst.msk [vmem:[#allocation2 + $0x68] sm:$0xfe] %vm1483, %v1402
        %1489 = vst.msk [vmem:[#allocation2 + $0x80] sm:$0xff] %vm1062, %v1404
        %1490 = vst.msk [vmem:[#allocation2 + $0x98] sm:$0xfe] %vm1483, %v1406
        %1491 = vst.msk [vmem:[#allocation2 + $0xb0] sm:$0xff] %vm1062, %v1408
        %1492 = vst.msk [vmem:[#allocation2 + $0xc8] sm:$0xfe] %vm1483, %v1410
        %1493 = vst.msk [vmem:[#allocation2 + $0xe0] sm:$0xff] %vm1062, %v1412
        %1494 = vst.msk [vmem:[#allocation2 + $0xf8] sm:$0xfe] %vm1483, %v1414
        %1495 = vst.msk [vmem:[#allocation2 + $0x110] sm:$0xff] %vm1062, %v1416
        %1496 = vst.msk [vmem:[#allocation2 + $0x128] sm:$0xfe] %vm1483, %v1418
        %1497 = vst.msk [vmem:[#allocation2 + $0x140] sm:$0xff] %vm1062, %v1420
        %1498 = vst.msk [vmem:[#allocation2 + $0x158] sm:$0xfe] %vm1483, %v1422
        %1499 = vst.msk [vmem:[#allocation2 + $0x170] sm:$0xff] %vm1062, %v1424
        %1500 = vst.msk [vmem:[#allocation2 + $0x188] sm:$0xfe] %vm1483, %v1426
        %1501 = vst.msk [vmem:[#allocation2 + $0x1a0] sm:$0xff] %vm1062, %v1428
        %1502 = vst.msk [vmem:[#allocation2 + $0x1b8] sm:$0xfe] %vm1483, %v1430
        %1503 = vst.msk [vmem:[#allocation2 + $0x1d0] sm:$0xff] %vm1062, %v1432
        %1504 = vst.msk [vmem:[#allocation2 + $0x1e8] sm:$0xfe] %vm1483, %v1434
        %1505 = vst.msk [vmem:[#allocation2 + $0x200] sm:$0xff] %vm1062, %v1436
        %1506 = vst.msk [vmem:[#allocation2 + $0x218] sm:$0xfe] %vm1483, %v1438
        %1507 = vst.msk [vmem:[#allocation2 + $0x230] sm:$0xff] %vm1062, %v1440
        %1508 = vst.msk [vmem:[#allocation2 + $0x248] sm:$0xfe] %vm1483, %v1442
        %1509 = vst.msk [vmem:[#allocation2 + $0x260] sm:$0xff] %vm1062, %v1444
        %1510 = vst.msk [vmem:[#allocation2 + $0x278] sm:$0xfe] %vm1483, %v1446
        %1511 = vst.msk [vmem:[#allocation2 + $0x290] sm:$0xff] %vm1062, %v1448
        %1512 = vst.msk [vmem:[#allocation2 + $0x2a8] sm:$0xfe] %vm1483, %v1450
        %1513 = vst.msk [vmem:[#allocation2 + $0x2c0] sm:$0xff] %vm1062, %v1452
        %1514 = vrot.lane.b32.xlu0 %v637, 96
        %v1515 = vpop.permute.xlu0 %1514
        %1516 = vrot.lane.b32.xlu0 %v638, 96
        %v1517 = vpop.permute.xlu0 %1516
        %1518 = vrot.lane.b32.xlu0 %v639, 96
        %v1519 = vpop.permute.xlu0 %1518
        %1520 = vrot.lane.b32.xlu0 %v640, 96
        %v1521 = vpop.permute.xlu0 %1520
        %1522 = vrot.lane.b32.xlu0 %v641, 96
        %v1523 = vpop.permute.xlu0 %1522
        %1524 = vrot.lane.b32.xlu0 %v642, 96
        %v1525 = vpop.permute.xlu0 %1524
        %1526 = vrot.lane.b32.xlu0 %v643, 96
        %v1527 = vpop.permute.xlu0 %1526
        %1528 = vrot.lane.b32.xlu0 %v644, 96
        %v1529 = vpop.permute.xlu0 %1528
        %1530 = vrot.lane.b32.xlu0 %v645, 96
        %v1531 = vpop.permute.xlu0 %1530
        %1532 = vrot.lane.b32.xlu0 %v646, 96
        %v1533 = vpop.permute.xlu0 %1532
        %1534 = vrot.lane.b32.xlu0 %v647, 96
        %v1535 = vpop.permute.xlu0 %1534
        %1536 = vrot.lane.b32.xlu0 %v648, 96
        %v1537 = vpop.permute.xlu0 %1536
        %1538 = vrot.lane.b32.xlu0 %v649, 96
        %v1539 = vpop.permute.xlu0 %1538
        %1540 = vrot.lane.b32.xlu0 %v650, 96
        %v1541 = vpop.permute.xlu0 %1540
        %1542 = vrot.lane.b32.xlu0 %v651, 96
        %v1543 = vpop.permute.xlu0 %1542
        %1544 = vrot.lane.b32.xlu0 %v652, 96
        %v1545 = vpop.permute.xlu0 %1544
        %1546 = vrot.lane.b32.xlu0 %v653, 96
        %v1547 = vpop.permute.xlu0 %1546
        %1548 = vrot.lane.b32.xlu0 %v654, 96
        %v1549 = vpop.permute.xlu0 %1548
        %1550 = vrot.lane.b32.xlu0 %v655, 96
        %v1551 = vpop.permute.xlu0 %1550
        %1552 = vrot.lane.b32.xlu0 %v656, 96
        %v1553 = vpop.permute.xlu0 %1552
        %1554 = vrot.lane.b32.xlu0 %v657, 96
        %v1555 = vpop.permute.xlu0 %1554
        %1556 = vrot.lane.b32.xlu0 %v658, 96
        %v1557 = vpop.permute.xlu0 %1556
        %1558 = vrot.lane.b32.xlu0 %v659, 96
        %v1559 = vpop.permute.xlu0 %1558
        %1560 = vrot.lane.b32.xlu0 %v660, 96
        %v1561 = vpop.permute.xlu0 %1560
        %1562 = vrot.lane.b32.xlu0 %v661, 96
        %v1563 = vpop.permute.xlu0 %1562
        %1564 = vrot.lane.b32.xlu0 %v662, 96
        %v1565 = vpop.permute.xlu0 %1564
        %1566 = vrot.lane.b32.xlu0 %v663, 96
        %v1567 = vpop.permute.xlu0 %1566
        %1568 = vrot.lane.b32.xlu0 %v664, 96
        %v1569 = vpop.permute.xlu0 %1568
        %1570 = vrot.lane.b32.xlu0 %v665, 96
        %v1571 = vpop.permute.xlu0 %1570
        %1572 = vrot.lane.b32.xlu0 %v666, 96
        %v1573 = vpop.permute.xlu0 %1572
        %1604 = vst.msk [vmem:[#allocation2 + $0x8] sm:$0xff] %vm1197, %v1515
        %1605 = vst.msk [vmem:[#allocation2 + $0x20] sm:$0xff] %vm1197, %v1517
        %1606 = vst.msk [vmem:[#allocation2 + $0x38] sm:$0xff] %vm1197, %v1519
        %1607 = vst.msk [vmem:[#allocation2 + $0x50] sm:$0xff] %vm1197, %v1521
        %1608 = vst.msk [vmem:[#allocation2 + $0x68] sm:$0xff] %vm1197, %v1523
        %1609 = vst.msk [vmem:[#allocation2 + $0x80] sm:$0xff] %vm1197, %v1525
        %1610 = vst.msk [vmem:[#allocation2 + $0x98] sm:$0xff] %vm1197, %v1527
        %1611 = vst.msk [vmem:[#allocation2 + $0xb0] sm:$0xff] %vm1197, %v1529
        %1612 = vst.msk [vmem:[#allocation2 + $0xc8] sm:$0xff] %vm1197, %v1531
        %1613 = vst.msk [vmem:[#allocation2 + $0xe0] sm:$0xff] %vm1197, %v1533
        %1614 = vst.msk [vmem:[#allocation2 + $0xf8] sm:$0xff] %vm1197, %v1535
        %1615 = vst.msk [vmem:[#allocation2 + $0x110] sm:$0xff] %vm1197, %v1537
        %1616 = vst.msk [vmem:[#allocation2 + $0x128] sm:$0xff] %vm1197, %v1539
        %1617 = vst.msk [vmem:[#allocation2 + $0x140] sm:$0xff] %vm1197, %v1541
        %1618 = vst.msk [vmem:[#allocation2 + $0x158] sm:$0xff] %vm1197, %v1543
        %1619 = vst.msk [vmem:[#allocation2 + $0x170] sm:$0xff] %vm1197, %v1545
        %1620 = vst.msk [vmem:[#allocation2 + $0x188] sm:$0xff] %vm1197, %v1547
        %1621 = vst.msk [vmem:[#allocation2 + $0x1a0] sm:$0xff] %vm1197, %v1549
        %1622 = vst.msk [vmem:[#allocation2 + $0x1b8] sm:$0xff] %vm1197, %v1551
        %1623 = vst.msk [vmem:[#allocation2 + $0x1d0] sm:$0xff] %vm1197, %v1553
        %1624 = vst.msk [vmem:[#allocation2 + $0x1e8] sm:$0xff] %vm1197, %v1555
        %1625 = vst.msk [vmem:[#allocation2 + $0x200] sm:$0xff] %vm1197, %v1557
        %1626 = vst.msk [vmem:[#allocation2 + $0x218] sm:$0xff] %vm1197, %v1559
        %1627 = vst.msk [vmem:[#allocation2 + $0x230] sm:$0xff] %vm1197, %v1561
        %1628 = vst.msk [vmem:[#allocation2 + $0x248] sm:$0xff] %vm1197, %v1563
        %1629 = vst.msk [vmem:[#allocation2 + $0x260] sm:$0xff] %vm1197, %v1565
        %1630 = vst.msk [vmem:[#allocation2 + $0x278] sm:$0xff] %vm1197, %v1567
        %1631 = vst.msk [vmem:[#allocation2 + $0x290] sm:$0xff] %vm1197, %v1569
        %1632 = vst.msk [vmem:[#allocation2 + $0x2a8] sm:$0xff] %vm1197, %v1571
        %1633 = vst.msk [vmem:[#allocation2 + $0x2c0] sm:$0xff] %vm1197, %v1573
        %1664 = vst.msk [vmem:[#allocation2 + $0x10] sm:$0xff] %vm462, %v932
        %vm1665 = vcmask 260096
        %1666 = vst.msk [vmem:[#allocation2 + $0x28] sm:$0x7f] %vm1665, %v931
        %1667 = vst.msk [vmem:[#allocation2 + $0x40] sm:$0xff] %vm462, %v935
        %1668 = vst.msk [vmem:[#allocation2 + $0x58] sm:$0x7f] %vm1665, %v934
        %1669 = vst.msk [vmem:[#allocation2 + $0x70] sm:$0xff] %vm462, %v938
        %1670 = vst.msk [vmem:[#allocation2 + $0x88] sm:$0x7f] %vm1665, %v937
        %1671 = vst.msk [vmem:[#allocation2 + $0xa0] sm:$0xff] %vm462, %v941
        %1672 = vst.msk [vmem:[#allocation2 + $0xb8] sm:$0x7f] %vm1665, %v940
        %1673 = vst.msk [vmem:[#allocation2 + $0xd0] sm:$0xff] %vm462, %v944
        %1674 = vst.msk [vmem:[#allocation2 + $0xe8] sm:$0x7f] %vm1665, %v943
        %1675 = vst.msk [vmem:[#allocation2 + $0x100] sm:$0xff] %vm462, %v947
        %1676 = vst.msk [vmem:[#allocation2 + $0x118] sm:$0x7f] %vm1665, %v946
        %1677 = vst.msk [vmem:[#allocation2 + $0x130] sm:$0xff] %vm462, %v950
        %1678 = vst.msk [vmem:[#allocation2 + $0x148] sm:$0x7f] %vm1665, %v949
        %1679 = vst.msk [vmem:[#allocation2 + $0x160] sm:$0xff] %vm462, %v953
        %1680 = vst.msk [vmem:[#allocation2 + $0x178] sm:$0x7f] %vm1665, %v952
        %1681 = vst.msk [vmem:[#allocation2 + $0x190] sm:$0xff] %vm462, %v956
        %1682 = vst.msk [vmem:[#allocation2 + $0x1a8] sm:$0x7f] %vm1665, %v955
        %1683 = vst.msk [vmem:[#allocation2 + $0x1c0] sm:$0xff] %vm462, %v959
        %1684 = vst.msk [vmem:[#allocation2 + $0x1d8] sm:$0x7f] %vm1665, %v958
        %1685 = vst.msk [vmem:[#allocation2 + $0x1f0] sm:$0xff] %vm462, %v962
        %1686 = vst.msk [vmem:[#allocation2 + $0x208] sm:$0x7f] %vm1665, %v961
        %1687 = vst.msk [vmem:[#allocation2 + $0x220] sm:$0xff] %vm462, %v965
        %1688 = vst.msk [vmem:[#allocation2 + $0x238] sm:$0x7f] %vm1665, %v964
        %1689 = vst.msk [vmem:[#allocation2 + $0x250] sm:$0xff] %vm462, %v968
        %1690 = vst.msk [vmem:[#allocation2 + $0x268] sm:$0x7f] %vm1665, %v967
        %1691 = vst.msk [vmem:[#allocation2 + $0x280] sm:$0xff] %vm462, %v971
        %1692 = vst.msk [vmem:[#allocation2 + $0x298] sm:$0x7f] %vm1665, %v970
        %1693 = vst.msk [vmem:[#allocation2 + $0x2b0] sm:$0xff] %vm462, %v1263
        %1694 = vst.msk [vmem:[#allocation2 + $0x2c8] sm:$0x7f] %vm1665, %v1262
        %v1695 = vld [vmem:[#allocation2] sm:$0xff]
        %v1696 = vld [vmem:[#allocation2 + $0x8] sm:$0xff]
        %v1697 = vld [vmem:[#allocation2 + $0x10] sm:$0xff]
        %v1698 = vld [vmem:[#allocation2 + $0x18] sm:$0xff]
        %v1699 = vld [vmem:[#allocation2 + $0x20] sm:$0xff]
        %v1700 = vld [vmem:[#allocation2 + $0x28] sm:$0xff]
        %v1701 = vld [vmem:[#allocation2 + $0x30] sm:$0xff]
        %v1702 = vld [vmem:[#allocation2 + $0x38] sm:$0xff]
        %v1703 = vld [vmem:[#allocation2 + $0x40] sm:$0xff]
        %v1704 = vld [vmem:[#allocation2 + $0x48] sm:$0xff]
        %v1705 = vld [vmem:[#allocation2 + $0x50] sm:$0xff]
        %v1706 = vld [vmem:[#allocation2 + $0x58] sm:$0xff]
        %v1707 = vld [vmem:[#allocation2 + $0x60] sm:$0xff]
        %v1708 = vld [vmem:[#allocation2 + $0x68] sm:$0xff]
        %v1709 = vld [vmem:[#allocation2 + $0x70] sm:$0xff]
        %v1710 = vld [vmem:[#allocation2 + $0x78] sm:$0xff]
        %v1711 = vld [vmem:[#allocation2 + $0x80] sm:$0xff]
        %v1712 = vld [vmem:[#allocation2 + $0x88] sm:$0xff]
        %v1713 = vld [vmem:[#allocation2 + $0x90] sm:$0xff]
        %v1714 = vld [vmem:[#allocation2 + $0x98] sm:$0xff]
        %v1715 = vld [vmem:[#allocation2 + $0xa0] sm:$0xff]
        %v1716 = vld [vmem:[#allocation2 + $0xa8] sm:$0xff]
        %v1717 = vld [vmem:[#allocation2 + $0xb0] sm:$0xff]
        %v1718 = vld [vmem:[#allocation2 + $0xb8] sm:$0xff]
        %v1719 = vld [vmem:[#allocation2 + $0xc0] sm:$0xff]
        %v1720 = vld [vmem:[#allocation2 + $0xc8] sm:$0xff]
        %v1721 = vld [vmem:[#allocation2 + $0xd0] sm:$0xff]
        %v1722 = vld [vmem:[#allocation2 + $0xd8] sm:$0xff]
        %v1723 = vld [vmem:[#allocation2 + $0xe0] sm:$0xff]
        %v1724 = vld [vmem:[#allocation2 + $0xe8] sm:$0xff]
        %v1725 = vld [vmem:[#allocation2 + $0xf0] sm:$0xff]
        %v1726 = vld [vmem:[#allocation2 + $0xf8] sm:$0xff]
        %v1727 = vld [vmem:[#allocation2 + $0x100] sm:$0xff]
        %v1728 = vld [vmem:[#allocation2 + $0x108] sm:$0xff]
        %v1729 = vld [vmem:[#allocation2 + $0x110] sm:$0xff]
        %v1730 = vld [vmem:[#allocation2 + $0x118] sm:$0xff]
        %v1731 = vld [vmem:[#allocation2 + $0x120] sm:$0xff]
        %v1732 = vld [vmem:[#allocation2 + $0x128] sm:$0xff]
        %v1733 = vld [vmem:[#allocation2 + $0x130] sm:$0xff]
        %v1734 = vld [vmem:[#allocation2 + $0x138] sm:$0xff]
        %v1735 = vld [vmem:[#allocation2 + $0x140] sm:$0xff]
        %v1736 = vld [vmem:[#allocation2 + $0x148] sm:$0xff]
        %v1737 = vld [vmem:[#allocation2 + $0x150] sm:$0xff]
        %v1738 = vld [vmem:[#allocation2 + $0x158] sm:$0xff]
        %v1739 = vld [vmem:[#allocation2 + $0x160] sm:$0xff]
        %v1740 = vld [vmem:[#allocation2 + $0x168] sm:$0xff]
        %v1741 = vld [vmem:[#allocation2 + $0x170] sm:$0xff]
        %v1742 = vld [vmem:[#allocation2 + $0x178] sm:$0xff]
        %v1743 = vld [vmem:[#allocation2 + $0x180] sm:$0xff]
        %v1744 = vld [vmem:[#allocation2 + $0x188] sm:$0xff]
        %v1745 = vld [vmem:[#allocation2 + $0x190] sm:$0xff]
        %v1746 = vld [vmem:[#allocation2 + $0x198] sm:$0xff]
        %v1747 = vld [vmem:[#allocation2 + $0x1a0] sm:$0xff]
        %v1748 = vld [vmem:[#allocation2 + $0x1a8] sm:$0xff]
        %v1749 = vld [vmem:[#allocation2 + $0x1b0] sm:$0xff]
        %v1750 = vld [vmem:[#allocation2 + $0x1b8] sm:$0xff]
        %v1751 = vld [vmem:[#allocation2 + $0x1c0] sm:$0xff]
        %v1752 = vld [vmem:[#allocation2 + $0x1c8] sm:$0xff]
        %v1753 = vld [vmem:[#allocation2 + $0x1d0] sm:$0xff]
        %v1754 = vld [vmem:[#allocation2 + $0x1d8] sm:$0xff]
        %v1755 = vld [vmem:[#allocation2 + $0x1e0] sm:$0xff]
        %v1756 = vld [vmem:[#allocation2 + $0x1e8] sm:$0xff]
        %v1757 = vld [vmem:[#allocation2 + $0x1f0] sm:$0xff]
        %v1758 = vld [vmem:[#allocation2 + $0x1f8] sm:$0xff]
        %v1759 = vld [vmem:[#allocation2 + $0x200] sm:$0xff]
        %v1760 = vld [vmem:[#allocation2 + $0x208] sm:$0xff]
        %v1761 = vld [vmem:[#allocation2 + $0x210] sm:$0xff]
        %v1762 = vld [vmem:[#allocation2 + $0x218] sm:$0xff]
        %v1763 = vld [vmem:[#allocation2 + $0x220] sm:$0xff]
        %v1764 = vld [vmem:[#allocation2 + $0x228] sm:$0xff]
        %v1765 = vld [vmem:[#allocation2 + $0x230] sm:$0xff]
        %v1766 = vld [vmem:[#allocation2 + $0x238] sm:$0xff]
        %v1767 = vld [vmem:[#allocation2 + $0x240] sm:$0xff]
        %v1768 = vld [vmem:[#allocation2 + $0x248] sm:$0xff]
        %v1769 = vld [vmem:[#allocation2 + $0x250] sm:$0xff]
        %v1770 = vld [vmem:[#allocation2 + $0x258] sm:$0xff]
        %v1771 = vld [vmem:[#allocation2 + $0x260] sm:$0xff]
        %v1772 = vld [vmem:[#allocation2 + $0x268] sm:$0xff]
        %v1773 = vld [vmem:[#allocation2 + $0x270] sm:$0xff]
        %v1774 = vld [vmem:[#allocation2 + $0x278] sm:$0xff]
        %v1775 = vld [vmem:[#allocation2 + $0x280] sm:$0xff]
        %v1776 = vld [vmem:[#allocation2 + $0x288] sm:$0xff]
        %v1777 = vld [vmem:[#allocation2 + $0x290] sm:$0xff]
        %v1778 = vld [vmem:[#allocation2 + $0x298] sm:$0xff]
        %v1779 = vld [vmem:[#allocation2 + $0x2a0] sm:$0xff]
        %v1780 = vld [vmem:[#allocation2 + $0x2a8] sm:$0xff]
        %v1781 = vld [vmem:[#allocation2 + $0x2b0] sm:$0xff]
        %v1782 = vld [vmem:[#allocation2 + $0x2b8] sm:$0xff]
        %v1783 = vld [vmem:[#allocation2 + $0x2c0] sm:$0xff]
        %v1784 = vld [vmem:[#allocation2 + $0x2c8] sm:$0xff]
        %v1785 = vld [vmem:[#allocation2 + $0x2d0] sm:$0xff]
        %v1786 = vld [vmem:[#allocation2 + $0x2d8] sm:$0xff]
        %v1787 = vld [vmem:[#allocation2 + $0x2e0] sm:$0xff]
        %v1788 = vld [vmem:[#allocation2 + $0x2e8] sm:$0xff]
        %v1789 = vld [vmem:[#allocation2 + $0x2f0] sm:$0xff]
        %v1790 = vld [vmem:[#allocation2 + $0x2f8] sm:$0xff]
        %v1791 = vpack.c.bf16 %v1698, %v1695
        %v1792 = vpack.c.bf16 %v1699, %v1696
        %v1793 = vpack.c.bf16 %v1700, %v1697
        %v1794 = vpack.c.bf16 %v1704, %v1701
        %v1795 = vpack.c.bf16 %v1705, %v1702
        %v1796 = vpack.c.bf16 %v1706, %v1703
        %v1797 = vpack.c.bf16 %v1710, %v1707
        %v1798 = vpack.c.bf16 %v1711, %v1708
        %v1799 = vpack.c.bf16 %v1712, %v1709
        %v1800 = vpack.c.bf16 %v1716, %v1713
        %v1801 = vpack.c.bf16 %v1717, %v1714
        %v1802 = vpack.c.bf16 %v1718, %v1715
        %v1803 = vpack.c.bf16 %v1722, %v1719
        %v1804 = vpack.c.bf16 %v1723, %v1720
        %v1805 = vpack.c.bf16 %v1724, %v1721
        %v1806 = vpack.c.bf16 %v1728, %v1725
        %v1807 = vpack.c.bf16 %v1729, %v1726
        %v1808 = vpack.c.bf16 %v1730, %v1727
        %v1809 = vpack.c.bf16 %v1734, %v1731
        %v1810 = vpack.c.bf16 %v1735, %v1732
        %v1811 = vpack.c.bf16 %v1736, %v1733
        %v1812 = vpack.c.bf16 %v1740, %v1737
        %v1813 = vpack.c.bf16 %v1741, %v1738
        %v1814 = vpack.c.bf16 %v1742, %v1739
        %v1815 = vpack.c.bf16 %v1746, %v1743
        %v1816 = vpack.c.bf16 %v1747, %v1744
        %v1817 = vpack.c.bf16 %v1748, %v1745
        %v1818 = vpack.c.bf16 %v1752, %v1749
        %v1819 = vpack.c.bf16 %v1753, %v1750
        %v1820 = vpack.c.bf16 %v1754, %v1751
        %v1821 = vpack.c.bf16 %v1758, %v1755
        %v1822 = vpack.c.bf16 %v1759, %v1756
        %v1823 = vpack.c.bf16 %v1760, %v1757
        %v1824 = vpack.c.bf16 %v1764, %v1761
        %v1825 = vpack.c.bf16 %v1765, %v1762
        %v1826 = vpack.c.bf16 %v1766, %v1763
        %v1827 = vpack.c.bf16 %v1770, %v1767
        %v1828 = vpack.c.bf16 %v1771, %v1768
        %v1829 = vpack.c.bf16 %v1772, %v1769
        %v1830 = vpack.c.bf16 %v1776, %v1773
        %v1831 = vpack.c.bf16 %v1777, %v1774
        %v1832 = vpack.c.bf16 %v1778, %v1775
        %v1833 = vpack.c.bf16 %v1782, %v1779
        %v1834 = vpack.c.bf16 %v1783, %v1780
        %v1835 = vpack.c.bf16 %v1784, %v1781
        %v1836 = vpack.c.bf16 %v1788, %v1785
        %v1837 = vpack.c.bf16 %v1789, %v1786
        %v1838 = vpack.c.bf16 %v1790, %v1787
        %v1839 = vld [vmem:[%s1] sm:$0xf]
        %v1840 = vld [vmem:[%s1 + $0x4] sm:$0xf]
        %v1841 = vld [vmem:[%s1 + $0x8] sm:$0xf]
        %v1842 = vld [vmem:[%s1 + $0xc] sm:$0xf]
        %v1843 = vld [vmem:[%s1 + $0x10] sm:$0xf]
        %v1844 = vld [vmem:[%s1 + $0x14] sm:$0xf]
        %v1845 = vld [vmem:[%s1 + $0x18] sm:$0xf]
        %v1846 = vld [vmem:[%s1 + $0x1c] sm:$0xf]
        %v1847 = vld [vmem:[%s1 + $0x20] sm:$0xf]
        %v1848 = vld [vmem:[%s1 + $0x24] sm:$0xf]
        %v1849 = vld [vmem:[%s1 + $0x28] sm:$0xf]
        %v1850 = vld [vmem:[%s1 + $0x2c] sm:$0xf]
        %v1851 = vld [vmem:[%s1 + $0x30] sm:$0xf]
        %v1852 = vld [vmem:[%s1 + $0x34] sm:$0xf]
        %v1853 = vld [vmem:[%s1 + $0x38] sm:$0xf]
        %v1854 = vld [vmem:[%s1 + $0x3c] sm:$0xf]
        %v1855 = vld [vmem:[%s1 + $0x40] sm:$0xf]
        %v1856 = vld [vmem:[%s1 + $0x44] sm:$0xf]
        %v1857 = vld [vmem:[%s1 + $0x48] sm:$0xf]
        %v1858 = vld [vmem:[%s1 + $0x4c] sm:$0xf]
        %v1859 = vld [vmem:[%s1 + $0x50] sm:$0xf]
        %v1860 = vld [vmem:[%s1 + $0x54] sm:$0xf]
        %v1861 = vld [vmem:[%s1 + $0x58] sm:$0xf]
        %v1862 = vld [vmem:[%s1 + $0x5c] sm:$0xf]
        %v1863 = vld [vmem:[%s1 + $0x60] sm:$0xf]
        %v1864 = vld [vmem:[%s1 + $0x64] sm:$0xf]
        %v1865 = vld [vmem:[%s1 + $0x68] sm:$0xf]
        %v1866 = vld [vmem:[%s1 + $0x6c] sm:$0xf]
        %v1867 = vld [vmem:[%s1 + $0x70] sm:$0xf]
        %v1868 = vld [vmem:[%s1 + $0x74] sm:$0xf]
        %v1869 = vld [vmem:[%s1 + $0x78] sm:$0xf]
        %v1870 = vld [vmem:[%s1 + $0x7c] sm:$0xf]
        %v1871 = vld [vmem:[%s1 + $0x80] sm:$0xf]
        %v1872 = vld [vmem:[%s1 + $0x84] sm:$0xf]
        %v1873 = vld [vmem:[%s1 + $0x88] sm:$0xf]
        %v1874 = vld [vmem:[%s1 + $0x8c] sm:$0xf]
        %v1911 = vunpack.c.l.b16 %v1839
        %v1912 = vunpack.c.l.b16 %v1840
        %v1913 = vunpack.c.l.b16 %v1841
        %v1914 = vunpack.c.l.b16 %v1842
        %v1915 = vunpack.c.l.b16 %v1843
        %v1916 = vunpack.c.l.b16 %v1844
        %v1917 = vunpack.c.l.b16 %v1845
        %v1918 = vunpack.c.l.b16 %v1846
        %v1919 = vunpack.c.l.b16 %v1847
        %v1920 = vunpack.c.l.b16 %v1848
        %v1921 = vunpack.c.l.b16 %v1849
        %v1922 = vunpack.c.l.b16 %v1850
        %v1923 = vunpack.c.l.b16 %v1851
        %v1924 = vunpack.c.l.b16 %v1852
        %v1925 = vunpack.c.l.b16 %v1853
        %v1926 = vunpack.c.l.b16 %v1854
        %v1927 = vunpack.c.l.b16 %v1855
        %v1928 = vunpack.c.l.b16 %v1856
        %v1929 = vunpack.c.l.b16 %v1857
        %v1930 = vunpack.c.l.b16 %v1858
        %v1931 = vunpack.c.l.b16 %v1859
        %v1932 = vunpack.c.l.b16 %v1860
        %v1933 = vunpack.c.l.b16 %v1861
        %v1934 = vunpack.c.l.b16 %v1862
        %v1935 = vunpack.c.l.b16 %v1863
        %v1936 = vunpack.c.l.b16 %v1864
        %v1937 = vunpack.c.l.b16 %v1865
        %v1938 = vunpack.c.l.b16 %v1866
        %v1939 = vunpack.c.l.b16 %v1867
        %v1940 = vunpack.c.l.b16 %v1868
        %v1941 = vunpack.c.l.b16 %v1869
        %v1942 = vunpack.c.l.b16 %v1870
        %v1943 = vunpack.c.l.b16 %v1871
        %v1944 = vunpack.c.l.b16 %v1872
        %v1945 = vunpack.c.l.b16 %v1873
        %v1946 = vunpack.c.l.b16 %v1874
        %v1947 = vpack.c.b16 %v1912, %v1911
        %v1948 = vpack.c.b16 %v1914, %v1913
        %v1949 = vpack.c.b16 %v1916, %v1915
        %v1950 = vpack.c.b16 %v1918, %v1917
        %v1951 = vpack.c.b16 %v1920, %v1919
        %v1952 = vpack.c.b16 %v1922, %v1921
        %v1953 = vpack.c.b16 %v1924, %v1923
        %v1954 = vpack.c.b16 %v1926, %v1925
        %v1955 = vpack.c.b16 %v1928, %v1927
        %v1956 = vpack.c.b16 %v1930, %v1929
        %v1957 = vpack.c.b16 %v1932, %v1931
        %v1958 = vpack.c.b16 %v1934, %v1933
        %v1959 = vpack.c.b16 %v1936, %v1935
        %v1960 = vpack.c.b16 %v1938, %v1937
        %v1961 = vpack.c.b16 %v1940, %v1939
        %v1962 = vpack.c.b16 %v1942, %v1941
        %v1963 = vpack.c.b16 %v1944, %v1943
        %v1964 = vpack.c.b16 %v1946, %v1945
        %v1984 = vsel %vm462, %v1793, 0
        %v1987 = vsel %vm462, %v1796, 0
        %v1990 = vsel %vm462, %v1799, 0
        %v1993 = vsel %vm462, %v1802, 0
        %v1996 = vsel %vm462, %v1805, 0
        %v1999 = vsel %vm462, %v1808, 0
        %v2002 = vsel %vm462, %v1811, 0
        %v2005 = vsel %vm462, %v1814, 0
        %v2008 = vsel %vm462, %v1817, 0
        %v2011 = vsel %vm462, %v1820, 0
        %v2014 = vsel %vm462, %v1823, 0
        %v2017 = vsel %vm462, %v1826, 0
        %v2020 = vsel %vm462, %v1829, 0
        %v2023 = vsel %vm462, %v1832, 0
        %v2026 = vsel %vm462, %v1835, 0
        %v2029 = vsel %vm462, %v1838, 0
        %2031 = vmatprep.subr.bf16.mxu0 0
        %2032 = vmatpush1.bf16.msra.mxu0 %v1947
        %2033 = vmatprep.subr.bf16.mxu0 0
        %2034 = vmatpush1.bf16.msra.mxu0 %v1948
        %2035 = vmatprep.subr.bf16.mxu0 0
        %2036 = vmatpush1.bf16.msra.mxu0 %v1949
        %2037 = vmatprep.subr.bf16.mxu0 0
        %2038 = vmatpush1.bf16.msra.mxu0 %v1950
        %2039 = vmatprep.subr.bf16.mxu0 0
        %2040 = vmatpush1.bf16.msra.mxu0 %v1951
        %2041 = vmatprep.subr.bf16.mxu0 0
        %2042 = vmatpush1.bf16.msra.mxu0 %v1952
        %2043 = vmatprep.subr.bf16.mxu0 0
        %2044 = vmatpush1.bf16.msra.mxu0 %v1953
        %2045 = vmatprep.subr.bf16.mxu0 0
        %2046 = vmatpush1.bf16.msra.mxu0 %v1954
        %2047 = vmatprep.subr.bf16.mxu0 0
        %2048 = vmatpush1.bf16.msra.mxu0 %v1955
        %2049 = vmatprep.subr.bf16.mxu0 0
        %2050 = vmatpush1.bf16.msra.mxu0 %v1956
        %2051 = vmatprep.subr.bf16.mxu0 0
        %2052 = vmatpush1.bf16.msra.mxu0 %v1957
        %2053 = vmatprep.subr.bf16.mxu0 0
        %2054 = vmatpush1.bf16.msra.mxu0 %v1958
        %2055 = vmatprep.subr.bf16.mxu0 0
        %2056 = vmatpush1.bf16.msra.mxu0 %v1959
        %2057 = vmatprep.subr.bf16.mxu0 0
        %2058 = vmatpush1.bf16.msra.mxu0 %v1960
        %2059 = vmatprep.subr.bf16.mxu0 0
        %2060 = vmatpush1.bf16.msra.mxu0 %v1961
        %2061 = vmatprep.subr.bf16.mxu0 0
        %2062 = vmatpush1.bf16.msra.mxu0 %v1962
        %2063 = vmatprep.mubr.bf16.mxu0 %v1792
        %2064 = vmatmul.mubr.bf16.gmra.mrb[0].mxu0 %v1791
        %v2065 = vpop.f32.mrb[0].mxu0
        %v2066 = vadd.f32 0.0, %v2065
        %v2067 = vpop.f32.mrb[0].mxu0
        %v2068 = vpop.f32.mrb[0].mxu0
        %v2069 = vadd.f32 0.0, %v2068
        %v2070 = vpop.f32.mrb[0].mxu0
        %2071 = vmatprep.mubr.bf16.mxu0 %v1795
        %2072 = vmatmul.mubr.bf16.gmra.mrb[0].mxu0 %v1794
        %v2073 = vpop.f32.mrb[0].mxu0
        %v2074 = vadd.f32 0.0, %v2073
        %v2075 = vpop.f32.mrb[0].mxu0
        %v2076 = vpop.f32.mrb[0].mxu0
        %v2077 = vadd.f32 0.0, %v2076
        %v2078 = vpop.f32.mrb[0].mxu0
        %2079 = vmatprep.mubr.bf16.mxu0 %v1798
        %2080 = vmatmul.mubr.bf16.gmra.mrb[0].mxu0 %v1797
        %v2081 = vpop.f32.mrb[0].mxu0
        %v2082 = vadd.f32 0.0, %v2081
        %v2083 = vpop.f32.mrb[0].mxu0
        %v2084 = vpop.f32.mrb[0].mxu0
        %v2085 = vadd.f32 0.0, %v2084
        %v2086 = vpop.f32.mrb[0].mxu0
        %2087 = vmatprep.mubr.bf16.mxu0 %v1801
        %2088 = vmatmul.mubr.bf16.gmra.mrb[0].mxu0 %v1800
        %v2089 = vpop.f32.mrb[0].mxu0
        %v2090 = vadd.f32 0.0, %v2089
        %v2091 = vpop.f32.mrb[0].mxu0
        %v2092 = vpop.f32.mrb[0].mxu0
        %v2093 = vadd.f32 0.0, %v2092
        %v2094 = vpop.f32.mrb[0].mxu0
        %2095 = vmatprep.mubr.bf16.mxu0 %v1804
        %2096 = vmatmul.mubr.bf16.gmra.mrb[0].mxu0 %v1803
        %v2097 = vpop.f32.mrb[0].mxu0
        %v2098 = vadd.f32 0.0, %v2097
        %v2099 = vpop.f32.mrb[0].mxu0
        %v2100 = vpop.f32.mrb[0].mxu0
        %v2101 = vadd.f32 0.0, %v2100
        %v2102 = vpop.f32.mrb[0].mxu0
        %2103 = vmatprep.mubr.bf16.mxu0 %v1807
        %2104 = vmatmul.mubr.bf16.gmra.mrb[0].mxu0 %v1806
        %v2105 = vpop.f32.mrb[0].mxu0
        %v2106 = vadd.f32 0.0, %v2105
        %v2107 = vpop.f32.mrb[0].mxu0
        %v2108 = vpop.f32.mrb[0].mxu0
        %v2109 = vadd.f32 0.0, %v2108
        %v2110 = vpop.f32.mrb[0].mxu0
        %2111 = vmatprep.mubr.bf16.mxu0 %v1810
        %2112 = vmatmul.mubr.bf16.gmra.mrb[0].mxu0 %v1809
        %v2113 = vpop.f32.mrb[0].mxu0
        %v2114 = vadd.f32 0.0, %v2113
        %v2115 = vpop.f32.mrb[0].mxu0
        %v2116 = vpop.f32.mrb[0].mxu0
        %v2117 = vadd.f32 0.0, %v2116
        %v2118 = vpop.f32.mrb[0].mxu0
        %2119 = vmatprep.mubr.bf16.mxu0 %v1813
        %2120 = vmatmul.mubr.bf16.gmra.mrb[0].mxu0 %v1812
        %v2121 = vpop.f32.mrb[0].mxu0
        %v2122 = vadd.f32 0.0, %v2121
        %v2123 = vpop.f32.mrb[0].mxu0
        %v2124 = vpop.f32.mrb[0].mxu0
        %v2125 = vadd.f32 0.0, %v2124
        %v2126 = vpop.f32.mrb[0].mxu0
        %2127 = vmatprep.mubr.bf16.mxu0 %v1816
        %2128 = vmatmul.mubr.bf16.gmra.mrb[0].mxu0 %v1815
        %v2129 = vpop.f32.mrb[0].mxu0
        %v2130 = vadd.f32 0.0, %v2129
        %v2131 = vpop.f32.mrb[0].mxu0
        %v2132 = vpop.f32.mrb[0].mxu0
        %v2133 = vadd.f32 0.0, %v2132
        %v2134 = vpop.f32.mrb[0].mxu0
        %2135 = vmatprep.mubr.bf16.mxu0 %v1819
        %2136 = vmatmul.mubr.bf16.gmra.mrb[0].mxu0 %v1818
        %v2137 = vpop.f32.mrb[0].mxu0
        %v2138 = vadd.f32 0.0, %v2137
        %v2139 = vpop.f32.mrb[0].mxu0
        %v2140 = vpop.f32.mrb[0].mxu0
        %v2141 = vadd.f32 0.0, %v2140
        %v2142 = vpop.f32.mrb[0].mxu0
        %2143 = vmatprep.mubr.bf16.mxu0 %v1822
        %2144 = vmatmul.mubr.bf16.gmra.mrb[0].mxu0 %v1821
        %v2145 = vpop.f32.mrb[0].mxu0
        %v2146 = vadd.f32 0.0, %v2145
        %v2147 = vpop.f32.mrb[0].mxu0
        %v2148 = vpop.f32.mrb[0].mxu0
        %v2149 = vadd.f32 0.0, %v2148
        %v2150 = vpop.f32.mrb[0].mxu0
        %2151 = vmatprep.mubr.bf16.mxu0 %v1825
        %2152 = vmatmul.mubr.bf16.gmra.mrb[0].mxu0 %v1824
        %v2153 = vpop.f32.mrb[0].mxu0
        %v2154 = vadd.f32 0.0, %v2153
        %v2155 = vpop.f32.mrb[0].mxu0
        %v2156 = vpop.f32.mrb[0].mxu0
        %v2157 = vadd.f32 0.0, %v2156
        %v2158 = vpop.f32.mrb[0].mxu0
        %2159 = vmatprep.mubr.bf16.mxu0 %v1828
        %2160 = vmatmul.mubr.bf16.gmra.mrb[0].mxu0 %v1827
        %v2161 = vpop.f32.mrb[0].mxu0
        %v2162 = vadd.f32 0.0, %v2161
        %v2163 = vpop.f32.mrb[0].mxu0
        %v2164 = vpop.f32.mrb[0].mxu0
        %v2165 = vadd.f32 0.0, %v2164
        %v2166 = vpop.f32.mrb[0].mxu0
        %2167 = vmatprep.mubr.bf16.mxu0 %v1831
        %2168 = vmatmul.mubr.bf16.gmra.mrb[0].mxu0 %v1830
        %v2169 = vpop.f32.mrb[0].mxu0
        %v2170 = vadd.f32 0.0, %v2169
        %v2171 = vpop.f32.mrb[0].mxu0
        %v2172 = vpop.f32.mrb[0].mxu0
        %v2173 = vadd.f32 0.0, %v2172
        %v2174 = vpop.f32.mrb[0].mxu0
        %2175 = vmatprep.mubr.bf16.mxu0 %v1834
        %2176 = vmatmul.mubr.bf16.gmra.mrb[0].mxu0 %v1833
        %v2177 = vpop.f32.mrb[0].mxu0
        %v2178 = vadd.f32 0.0, %v2177
        %v2179 = vpop.f32.mrb[0].mxu0
        %v2180 = vpop.f32.mrb[0].mxu0
        %v2181 = vadd.f32 0.0, %v2180
        %v2182 = vpop.f32.mrb[0].mxu0
        %2183 = vmatprep.mubr.bf16.mxu0 %v1837
        %2184 = vmatmul.mubr.bf16.gmra.mrb[0].mxu0 %v1836
        %v2185 = vpop.f32.mrb[0].mxu0
        %v2186 = vadd.f32 0.0, %v2185
        %v2187 = vpop.f32.mrb[0].mxu0
        %v2188 = vpop.f32.mrb[0].mxu0
        %v2189 = vadd.f32 0.0, %v2188
        %v2190 = vpop.f32.mrb[0].mxu0
        %2191 = vdwg.mxu0
        %2192 = vmatprep.subr.bf16.mxu0 0
        %2193 = vmatpush1.bf16.msra.mxu0 %v1963
        %2194 = vmatprep.subr.bf16.mxu0 0
        %2195 = vmatpush1.bf16.msra.mxu0 %v1964
        %2196 = vmatprep.subr.bf16.mxu0 0
        %2197 = vmatpush1.bf16.msra.mxu0 0
        %2198 = vmatprep.subr.bf16.mxu0 0
        %2199 = vmatpush1.bf16.msra.mxu0 0
        %2200 = vmatprep.subr.bf16.mxu0 0
        %2201 = vmatpush1.bf16.msra.mxu0 0
        %2202 = vmatprep.subr.bf16.mxu0 0
        %2203 = vmatpush1.bf16.msra.mxu0 0
        %2204 = vmatprep.subr.bf16.mxu0 0
        %2205 = vmatpush1.bf16.msra.mxu0 0
        %2206 = vmatprep.subr.bf16.mxu0 0
        %2207 = vmatpush1.bf16.msra.mxu0 0
        %2208 = vmatprep.subr.bf16.mxu0 0
        %2209 = vmatpush1.bf16.msra.mxu0 0
        %2210 = vmatprep.subr.bf16.mxu0 0
        %2211 = vmatpush1.bf16.msra.mxu0 0
        %2212 = vmatprep.subr.bf16.mxu0 0
        %2213 = vmatpush1.bf16.msra.mxu0 0
        %2214 = vmatprep.subr.bf16.mxu0 0
        %2215 = vmatpush1.bf16.msra.mxu0 0
        %2216 = vmatprep.subr.bf16.mxu0 0
        %2217 = vmatpush1.bf16.msra.mxu0 0
        %2218 = vmatprep.subr.bf16.mxu0 0
        %2219 = vmatpush1.bf16.msra.mxu0 0
        %2220 = vmatprep.subr.bf16.mxu0 0
        %2221 = vmatpush1.bf16.msra.mxu0 0
        %2222 = vmatprep.subr.bf16.mxu0 0
        %2223 = vmatpush1.bf16.msra.mxu0 0
        %2224 = vmatprep.mubr.bf16.mxu0 0
        %2225 = vmatmul.mubr.bf16.gmra.mrb[0].mxu0 %v1984
        %v2226 = vpop.f32.mrb[0].mxu0
        %v2227 = vadd.f32 %v2066, %v2226
        %v2228 = vpop.f32.mrb[0].mxu0
        %v2229 = vpop.f32.mrb[0].mxu0
        %v2230 = vadd.f32 %v2069, %v2229
        %v2231 = vpop.f32.mrb[0].mxu0
        %2232 = vmatprep.mubr.bf16.mxu0 0
        %2233 = vmatmul.mubr.bf16.gmra.mrb[0].mxu0 %v1987
        %v2234 = vpop.f32.mrb[0].mxu0
        %v2235 = vadd.f32 %v2074, %v2234
        %v2236 = vpop.f32.mrb[0].mxu0
        %v2237 = vpop.f32.mrb[0].mxu0
        %v2238 = vadd.f32 %v2077, %v2237
        %v2239 = vpop.f32.mrb[0].mxu0
        %2240 = vmatprep.mubr.bf16.mxu0 0
        %2241 = vmatmul.mubr.bf16.gmra.mrb[0].mxu0 %v1990
        %v2242 = vpop.f32.mrb[0].mxu0
        %v2243 = vadd.f32 %v2082, %v2242
        %v2244 = vpop.f32.mrb[0].mxu0
        %v2245 = vpop.f32.mrb[0].mxu0
        %v2246 = vadd.f32 %v2085, %v2245
        %v2247 = vpop.f32.mrb[0].mxu0
        %2248 = vmatprep.mubr.bf16.mxu0 0
        %2249 = vmatmul.mubr.bf16.gmra.mrb[0].mxu0 %v1993
        %v2250 = vpop.f32.mrb[0].mxu0
        %v2251 = vadd.f32 %v2090, %v2250
        %v2252 = vpop.f32.mrb[0].mxu0
        %v2253 = vpop.f32.mrb[0].mxu0
        %v2254 = vadd.f32 %v2093, %v2253
        %v2255 = vpop.f32.mrb[0].mxu0
        %2256 = vmatprep.mubr.bf16.mxu0 0
        %2257 = vmatmul.mubr.bf16.gmra.mrb[0].mxu0 %v1996
        %v2258 = vpop.f32.mrb[0].mxu0
        %v2259 = vadd.f32 %v2098, %v2258
        %v2260 = vpop.f32.mrb[0].mxu0
        %v2261 = vpop.f32.mrb[0].mxu0
        %v2262 = vadd.f32 %v2101, %v2261
        %v2263 = vpop.f32.mrb[0].mxu0
        %2264 = vmatprep.mubr.bf16.mxu0 0
        %2265 = vmatmul.mubr.bf16.gmra.mrb[0].mxu0 %v1999
        %v2266 = vpop.f32.mrb[0].mxu0
        %v2267 = vadd.f32 %v2106, %v2266
        %v2268 = vpop.f32.mrb[0].mxu0
        %v2269 = vpop.f32.mrb[0].mxu0
        %v2270 = vadd.f32 %v2109, %v2269
        %v2271 = vpop.f32.mrb[0].mxu0
        %2272 = vmatprep.mubr.bf16.mxu0 0
        %2273 = vmatmul.mubr.bf16.gmra.mrb[0].mxu0 %v2002
        %v2274 = vpop.f32.mrb[0].mxu0
        %v2275 = vadd.f32 %v2114, %v2274
        %v2276 = vpop.f32.mrb[0].mxu0
        %v2277 = vpop.f32.mrb[0].mxu0
        %v2278 = vadd.f32 %v2117, %v2277
        %v2279 = vpop.f32.mrb[0].mxu0
        %2280 = vmatprep.mubr.bf16.mxu0 0
        %2281 = vmatmul.mubr.bf16.gmra.mrb[0].mxu0 %v2005
        %v2282 = vpop.f32.mrb[0].mxu0
        %v2283 = vadd.f32 %v2122, %v2282
        %v2284 = vpop.f32.mrb[0].mxu0
        %v2285 = vpop.f32.mrb[0].mxu0
        %v2286 = vadd.f32 %v2125, %v2285
        %v2287 = vpop.f32.mrb[0].mxu0
        %2288 = vmatprep.mubr.bf16.mxu0 0
        %2289 = vmatmul.mubr.bf16.gmra.mrb[0].mxu0 %v2008
        %v2290 = vpop.f32.mrb[0].mxu0
        %v2291 = vadd.f32 %v2130, %v2290
        %v2292 = vpop.f32.mrb[0].mxu0
        %v2293 = vpop.f32.mrb[0].mxu0
        %v2294 = vadd.f32 %v2133, %v2293
        %v2295 = vpop.f32.mrb[0].mxu0
        %2296 = vmatprep.mubr.bf16.mxu0 0
        %2297 = vmatmul.mubr.bf16.gmra.mrb[0].mxu0 %v2011
        %v2298 = vpop.f32.mrb[0].mxu0
        %v2299 = vadd.f32 %v2138, %v2298
        %v2300 = vpop.f32.mrb[0].mxu0
        %v2301 = vpop.f32.mrb[0].mxu0
        %v2302 = vadd.f32 %v2141, %v2301
        %v2303 = vpop.f32.mrb[0].mxu0
        %2304 = vmatprep.mubr.bf16.mxu0 0
        %2305 = vmatmul.mubr.bf16.gmra.mrb[0].mxu0 %v2014
        %v2306 = vpop.f32.mrb[0].mxu0
        %v2307 = vadd.f32 %v2146, %v2306
        %v2308 = vpop.f32.mrb[0].mxu0
        %v2309 = vpop.f32.mrb[0].mxu0
        %v2310 = vadd.f32 %v2149, %v2309
        %v2311 = vpop.f32.mrb[0].mxu0
        %2312 = vmatprep.mubr.bf16.mxu0 0
        %2313 = vmatmul.mubr.bf16.gmra.mrb[0].mxu0 %v2017
        %v2314 = vpop.f32.mrb[0].mxu0
        %v2315 = vadd.f32 %v2154, %v2314
        %v2316 = vpop.f32.mrb[0].mxu0
        %v2317 = vpop.f32.mrb[0].mxu0
        %v2318 = vadd.f32 %v2157, %v2317
        %v2319 = vpop.f32.mrb[0].mxu0
        %2320 = vmatprep.mubr.bf16.mxu0 0
        %2321 = vmatmul.mubr.bf16.gmra.mrb[0].mxu0 %v2020
        %v2322 = vpop.f32.mrb[0].mxu0
        %v2323 = vadd.f32 %v2162, %v2322
        %v2324 = vpop.f32.mrb[0].mxu0
        %v2325 = vpop.f32.mrb[0].mxu0
        %v2326 = vadd.f32 %v2165, %v2325
        %v2327 = vpop.f32.mrb[0].mxu0
        %2328 = vmatprep.mubr.bf16.mxu0 0
        %2329 = vmatmul.mubr.bf16.gmra.mrb[0].mxu0 %v2023
        %v2330 = vpop.f32.mrb[0].mxu0
        %v2331 = vadd.f32 %v2170, %v2330
        %v2332 = vpop.f32.mrb[0].mxu0
        %v2333 = vpop.f32.mrb[0].mxu0
        %v2334 = vadd.f32 %v2173, %v2333
        %v2335 = vpop.f32.mrb[0].mxu0
        %2336 = vmatprep.mubr.bf16.mxu0 0
        %2337 = vmatmul.mubr.bf16.gmra.mrb[0].mxu0 %v2026
        %v2338 = vpop.f32.mrb[0].mxu0
        %v2339 = vadd.f32 %v2178, %v2338
        %v2340 = vpop.f32.mrb[0].mxu0
        %v2341 = vpop.f32.mrb[0].mxu0
        %v2342 = vadd.f32 %v2181, %v2341
        %v2343 = vpop.f32.mrb[0].mxu0
        %2344 = vmatprep.mubr.bf16.mxu0 0
        %2345 = vmatmul.mubr.bf16.gmra.mrb[0].mxu0 %v2029
        %v2346 = vpop.f32.mrb[0].mxu0
        %v2347 = vadd.f32 %v2186, %v2346
        %v2348 = vpop.f32.mrb[0].mxu0
        %v2349 = vpop.f32.mrb[0].mxu0
        %v2350 = vadd.f32 %v2189, %v2349
        %v2351 = vpop.f32.mrb[0].mxu0
        %2352 = vdwg.mxu0
        %v2353 = vld [vmem:[%s5] sm:$0x1]
        %v2355 = vlaneseq
        %v2356 = vshrl.u32 %v2355, 7
        %v2357 = vsub.s32 0, %v2356
        %v2358 = vrot.slane %v2353, %v2357
        %v2360 = vmul.f32 %v2227, %v2358
        %v2361 = vmul.f32 %v2230, %v2358
        %v2362 = vmul.f32 %v2235, %v2358
        %v2363 = vmul.f32 %v2238, %v2358
        %v2364 = vmul.f32 %v2243, %v2358
        %v2365 = vmul.f32 %v2246, %v2358
        %v2366 = vmul.f32 %v2251, %v2358
        %v2367 = vmul.f32 %v2254, %v2358
        %v2368 = vmul.f32 %v2259, %v2358
        %v2369 = vmul.f32 %v2262, %v2358
        %v2370 = vmul.f32 %v2267, %v2358
        %v2371 = vmul.f32 %v2270, %v2358
        %v2372 = vmul.f32 %v2275, %v2358
        %v2373 = vmul.f32 %v2278, %v2358
        %v2374 = vmul.f32 %v2283, %v2358
        %v2375 = vmul.f32 %v2286, %v2358
        %v2376 = vmul.f32 %v2291, %v2358
        %v2377 = vmul.f32 %v2294, %v2358
        %v2378 = vmul.f32 %v2299, %v2358
        %v2379 = vmul.f32 %v2302, %v2358
        %v2380 = vmul.f32 %v2307, %v2358
        %v2381 = vmul.f32 %v2310, %v2358
        %v2382 = vmul.f32 %v2315, %v2358
        %v2383 = vmul.f32 %v2318, %v2358
        %v2384 = vmul.f32 %v2323, %v2358
        %v2385 = vmul.f32 %v2326, %v2358
        %v2386 = vmul.f32 %v2331, %v2358
        %v2387 = vmul.f32 %v2334, %v2358
        %v2388 = vmul.f32 %v2339, %v2358
        %v2389 = vmul.f32 %v2342, %v2358
        %v2390 = vmul.f32 %v2347, %v2358
        %v2391 = vmul.f32 %v2350, %v2358
        %v2392 = vld [vmem:[%s6] sm:$0x1]
        %v2394 = vlaneseq
        %v2395 = vshrl.u32 %v2394, 7
        %v2396 = vsub.s32 0, %v2395
        %v2397 = vrot.slane %v2392, %v2396
        %v2399 = vadd.f32 %v2360, %v2397
        %v2400 = vadd.f32 %v2361, %v2397
        %v2401 = vadd.f32 %v2362, %v2397
        %v2402 = vadd.f32 %v2363, %v2397
        %v2403 = vadd.f32 %v2364, %v2397
        %v2404 = vadd.f32 %v2365, %v2397
        %v2405 = vadd.f32 %v2366, %v2397
        %v2406 = vadd.f32 %v2367, %v2397
        %v2407 = vadd.f32 %v2368, %v2397
        %v2408 = vadd.f32 %v2369, %v2397
        %v2409 = vadd.f32 %v2370, %v2397
        %v2410 = vadd.f32 %v2371, %v2397
        %v2411 = vadd.f32 %v2372, %v2397
        %v2412 = vadd.f32 %v2373, %v2397
        %v2413 = vadd.f32 %v2374, %v2397
        %v2414 = vadd.f32 %v2375, %v2397
        %v2415 = vadd.f32 %v2376, %v2397
        %v2416 = vadd.f32 %v2377, %v2397
        %v2417 = vadd.f32 %v2378, %v2397
        %v2418 = vadd.f32 %v2379, %v2397
        %v2419 = vadd.f32 %v2380, %v2397
        %v2420 = vadd.f32 %v2381, %v2397
        %v2421 = vadd.f32 %v2382, %v2397
        %v2422 = vadd.f32 %v2383, %v2397
        %v2423 = vadd.f32 %v2384, %v2397
        %v2424 = vadd.f32 %v2385, %v2397
        %v2425 = vadd.f32 %v2386, %v2397
        %v2426 = vadd.f32 %v2387, %v2397
        %v2427 = vadd.f32 %v2388, %v2397
        %v2428 = vadd.f32 %v2389, %v2397
        %v2429 = vadd.f32 %v2390, %v2397
        %v2430 = vadd.f32 %v2391, %v2397
        %v2431 = vmax.f32 %v2399, 0.0
        %v2432 = vmax.f32 %v2400, 0.0
        %v2433 = vmax.f32 %v2401, 0.0
        %v2434 = vmax.f32 %v2402, 0.0
        %v2435 = vmax.f32 %v2403, 0.0
        %v2436 = vmax.f32 %v2404, 0.0
        %v2437 = vmax.f32 %v2405, 0.0
        %v2438 = vmax.f32 %v2406, 0.0
        %v2439 = vmax.f32 %v2407, 0.0
        %v2440 = vmax.f32 %v2408, 0.0
        %v2441 = vmax.f32 %v2409, 0.0
        %v2442 = vmax.f32 %v2410, 0.0
        %v2443 = vmax.f32 %v2411, 0.0
        %v2444 = vmax.f32 %v2412, 0.0
        %v2445 = vmax.f32 %v2413, 0.0
        %v2446 = vmax.f32 %v2414, 0.0
        %v2447 = vmax.f32 %v2415, 0.0
        %v2448 = vmax.f32 %v2416, 0.0
        %v2449 = vmax.f32 %v2417, 0.0
        %v2450 = vmax.f32 %v2418, 0.0
        %v2451 = vmax.f32 %v2419, 0.0
        %v2452 = vmax.f32 %v2420, 0.0
        %v2453 = vmax.f32 %v2421, 0.0
        %v2454 = vmax.f32 %v2422, 0.0
        %v2455 = vmax.f32 %v2423, 0.0
        %v2456 = vmax.f32 %v2424, 0.0
        %v2457 = vmax.f32 %v2425, 0.0
        %v2458 = vmax.f32 %v2426, 0.0
        %v2459 = vmax.f32 %v2427, 0.0
        %v2460 = vmax.f32 %v2428, 0.0
        %v2461 = vmax.f32 %v2429, 0.0
        %v2462 = vmax.f32 %v2430, 0.0
        %v2493 = vrot.slane %v2431, 7
        %v2494 = vrot.slane %v2432, 7
        %v2495 = vsel %vm697, %v2493, %v2494
        %v2496 = vrot.slane %v2433, 7
        %v2497 = vrot.slane %v2434, 7
        %v2498 = vsel %vm697, %v2496, %v2497
        %v2499 = vrot.slane %v2435, 7
        %v2500 = vrot.slane %v2436, 7
        %v2501 = vsel %vm697, %v2499, %v2500
        %v2502 = vrot.slane %v2437, 7
        %v2503 = vrot.slane %v2438, 7
        %v2504 = vsel %vm697, %v2502, %v2503
        %v2505 = vrot.slane %v2439, 7
        %v2506 = vrot.slane %v2440, 7
        %v2507 = vsel %vm697, %v2505, %v2506
        %v2508 = vrot.slane %v2441, 7
        %v2509 = vrot.slane %v2442, 7
        %v2510 = vsel %vm697, %v2508, %v2509
        %v2511 = vrot.slane %v2443, 7
        %v2512 = vrot.slane %v2444, 7
        %v2513 = vsel %vm697, %v2511, %v2512
        %v2514 = vrot.slane %v2445, 7
        %v2515 = vrot.slane %v2446, 7
        %v2516 = vsel %vm697, %v2514, %v2515
        %v2517 = vrot.slane %v2447, 7
        %v2518 = vrot.slane %v2448, 7
        %v2519 = vsel %vm697, %v2517, %v2518
        %v2520 = vrot.slane %v2449, 7
        %v2521 = vrot.slane %v2450, 7
        %v2522 = vsel %vm697, %v2520, %v2521
        %v2523 = vrot.slane %v2451, 7
        %v2524 = vrot.slane %v2452, 7
        %v2525 = vsel %vm697, %v2523, %v2524
        %v2526 = vrot.slane %v2453, 7
        %v2527 = vrot.slane %v2454, 7
        %v2528 = vsel %vm697, %v2526, %v2527
        %v2529 = vrot.slane %v2455, 7
        %v2530 = vrot.slane %v2456, 7
        %v2531 = vsel %vm697, %v2529, %v2530
        %v2532 = vrot.slane %v2457, 7
        %v2533 = vrot.slane %v2458, 7
        %v2534 = vsel %vm697, %v2532, %v2533
        %v2535 = vrot.slane %v2459, 7
        %v2536 = vrot.slane %v2460, 7
        %v2537 = vsel %vm697, %v2535, %v2536
        %2568 = vst.msk [vmem:[%s773] sm:$0xfe] %vm774, %v2493
        %2569 = vst.msk [vmem:[%s773 + $0x18] sm:$0xff] %vm462, %v2495
        %2570 = vst.msk [vmem:[%s773 + $0x30] sm:$0xfe] %vm774, %v2496
        %2571 = vst.msk [vmem:[%s773 + $0x48] sm:$0xff] %vm462, %v2498
        %2572 = vst.msk [vmem:[%s773 + $0x60] sm:$0xfe] %vm774, %v2499
        %2573 = vst.msk [vmem:[%s773 + $0x78] sm:$0xff] %vm462, %v2501
        %2574 = vst.msk [vmem:[%s773 + $0x90] sm:$0xfe] %vm774, %v2502
        %2575 = vst.msk [vmem:[%s773 + $0xa8] sm:$0xff] %vm462, %v2504
        %2576 = vst.msk [vmem:[%s773 + $0xc0] sm:$0xfe] %vm774, %v2505
        %2577 = vst.msk [vmem:[%s773 + $0xd8] sm:$0xff] %vm462, %v2507
        %2578 = vst.msk [vmem:[%s773 + $0xf0] sm:$0xfe] %vm774, %v2508
        %2579 = vst.msk [vmem:[%s773 + $0x108] sm:$0xff] %vm462, %v2510
        %2580 = vst.msk [vmem:[%s773 + $0x120] sm:$0xfe] %vm774, %v2511
        %2581 = vst.msk [vmem:[%s773 + $0x138] sm:$0xff] %vm462, %v2513
        %2582 = vst.msk [vmem:[%s773 + $0x150] sm:$0xfe] %vm774, %v2514
        %2583 = vst.msk [vmem:[%s773 + $0x168] sm:$0xff] %vm462, %v2516
        %2584 = vst.msk [vmem:[%s773 + $0x180] sm:$0xfe] %vm774, %v2517
        %2585 = vst.msk [vmem:[%s773 + $0x198] sm:$0xff] %vm462, %v2519
        %2586 = vst.msk [vmem:[%s773 + $0x1b0] sm:$0xfe] %vm774, %v2520
        %2587 = vst.msk [vmem:[%s773 + $0x1c8] sm:$0xff] %vm462, %v2522
        %2588 = vst.msk [vmem:[%s773 + $0x1e0] sm:$0xfe] %vm774, %v2523
        %2589 = vst.msk [vmem:[%s773 + $0x1f8] sm:$0xff] %vm462, %v2525
        %2590 = vst.msk [vmem:[%s773 + $0x210] sm:$0xfe] %vm774, %v2526
        %2591 = vst.msk [vmem:[%s773 + $0x228] sm:$0xff] %vm462, %v2528
        %2592 = vst.msk [vmem:[%s773 + $0x240] sm:$0xfe] %vm774, %v2529
        %2593 = vst.msk [vmem:[%s773 + $0x258] sm:$0xff] %vm462, %v2531
        %2594 = vst.msk [vmem:[%s773 + $0x270] sm:$0xfe] %vm774, %v2532
        %2595 = vst.msk [vmem:[%s773 + $0x288] sm:$0xff] %vm462, %v2534
        %2596 = vst.msk [vmem:[%s773 + $0x2a0] sm:$0xfe] %vm774, %v2535
        %2597 = vst.msk [vmem:[%s773 + $0x2b8] sm:$0xff] %vm462, %v2537
        %2598 = vrot.lane.b32.xlu0 %v2431, 32
        %v2599 = vpop.permute.xlu0 %2598
        %2600 = vrot.lane.b32.xlu0 %v2432, 32
        %v2601 = vpop.permute.xlu0 %2600
        %2602 = vrot.lane.b32.xlu0 %v2433, 32
        %v2603 = vpop.permute.xlu0 %2602
        %2604 = vrot.lane.b32.xlu0 %v2434, 32
        %v2605 = vpop.permute.xlu0 %2604
        %2606 = vrot.lane.b32.xlu0 %v2435, 32
        %v2607 = vpop.permute.xlu0 %2606
        %2608 = vrot.lane.b32.xlu0 %v2436, 32
        %v2609 = vpop.permute.xlu0 %2608
        %2610 = vrot.lane.b32.xlu0 %v2437, 32
        %v2611 = vpop.permute.xlu0 %2610
        %2612 = vrot.lane.b32.xlu0 %v2438, 32
        %v2613 = vpop.permute.xlu0 %2612
        %2614 = vrot.lane.b32.xlu0 %v2439, 32
        %v2615 = vpop.permute.xlu0 %2614
        %2616 = vrot.lane.b32.xlu0 %v2440, 32
        %v2617 = vpop.permute.xlu0 %2616
        %2618 = vrot.lane.b32.xlu0 %v2441, 32
        %v2619 = vpop.permute.xlu0 %2618
        %2620 = vrot.lane.b32.xlu0 %v2442, 32
        %v2621 = vpop.permute.xlu0 %2620
        %2622 = vrot.lane.b32.xlu0 %v2443, 32
        %v2623 = vpop.permute.xlu0 %2622
        %2624 = vrot.lane.b32.xlu0 %v2444, 32
        %v2625 = vpop.permute.xlu0 %2624
        %2626 = vrot.lane.b32.xlu0 %v2445, 32
        %v2627 = vpop.permute.xlu0 %2626
        %2628 = vrot.lane.b32.xlu0 %v2446, 32
        %v2629 = vpop.permute.xlu0 %2628
        %2630 = vrot.lane.b32.xlu0 %v2447, 32
        %v2631 = vpop.permute.xlu0 %2630
        %2632 = vrot.lane.b32.xlu0 %v2448, 32
        %v2633 = vpop.permute.xlu0 %2632
        %2634 = vrot.lane.b32.xlu0 %v2449, 32
        %v2635 = vpop.permute.xlu0 %2634
        %2636 = vrot.lane.b32.xlu0 %v2450, 32
        %v2637 = vpop.permute.xlu0 %2636
        %2638 = vrot.lane.b32.xlu0 %v2451, 32
        %v2639 = vpop.permute.xlu0 %2638
        %2640 = vrot.lane.b32.xlu0 %v2452, 32
        %v2641 = vpop.permute.xlu0 %2640
        %2642 = vrot.lane.b32.xlu0 %v2453, 32
        %v2643 = vpop.permute.xlu0 %2642
        %2644 = vrot.lane.b32.xlu0 %v2454, 32
        %v2645 = vpop.permute.xlu0 %2644
        %2646 = vrot.lane.b32.xlu0 %v2455, 32
        %v2647 = vpop.permute.xlu0 %2646
        %2648 = vrot.lane.b32.xlu0 %v2456, 32
        %v2649 = vpop.permute.xlu0 %2648
        %2650 = vrot.lane.b32.xlu0 %v2457, 32
        %v2651 = vpop.permute.xlu0 %2650
        %2652 = vrot.lane.b32.xlu0 %v2458, 32
        %v2653 = vpop.permute.xlu0 %2652
        %2654 = vrot.lane.b32.xlu0 %v2459, 32
        %v2655 = vpop.permute.xlu0 %2654
        %2656 = vrot.lane.b32.xlu0 %v2460, 32
        %v2657 = vpop.permute.xlu0 %2656
        %2688 = vst.msk [vmem:[%s773] sm:$0xff] %vm895, %v2599
        %2689 = vst.msk [vmem:[%s773 + $0x18] sm:$0xff] %vm895, %v2601
        %2690 = vst.msk [vmem:[%s773 + $0x30] sm:$0xff] %vm895, %v2603
        %2691 = vst.msk [vmem:[%s773 + $0x48] sm:$0xff] %vm895, %v2605
        %2692 = vst.msk [vmem:[%s773 + $0x60] sm:$0xff] %vm895, %v2607
        %2693 = vst.msk [vmem:[%s773 + $0x78] sm:$0xff] %vm895, %v2609
        %2694 = vst.msk [vmem:[%s773 + $0x90] sm:$0xff] %vm895, %v2611
        %2695 = vst.msk [vmem:[%s773 + $0xa8] sm:$0xff] %vm895, %v2613
        %2696 = vst.msk [vmem:[%s773 + $0xc0] sm:$0xff] %vm895, %v2615
        %2697 = vst.msk [vmem:[%s773 + $0xd8] sm:$0xff] %vm895, %v2617
        %2698 = vst.msk [vmem:[%s773 + $0xf0] sm:$0xff] %vm895, %v2619
        %2699 = vst.msk [vmem:[%s773 + $0x108] sm:$0xff] %vm895, %v2621
        %2700 = vst.msk [vmem:[%s773 + $0x120] sm:$0xff] %vm895, %v2623
        %2701 = vst.msk [vmem:[%s773 + $0x138] sm:$0xff] %vm895, %v2625
        %2702 = vst.msk [vmem:[%s773 + $0x150] sm:$0xff] %vm895, %v2627
        %2703 = vst.msk [vmem:[%s773 + $0x168] sm:$0xff] %vm895, %v2629
        %2704 = vst.msk [vmem:[%s773 + $0x180] sm:$0xff] %vm895, %v2631
        %2705 = vst.msk [vmem:[%s773 + $0x198] sm:$0xff] %vm895, %v2633
        %2706 = vst.msk [vmem:[%s773 + $0x1b0] sm:$0xff] %vm895, %v2635
        %2707 = vst.msk [vmem:[%s773 + $0x1c8] sm:$0xff] %vm895, %v2637
        %2708 = vst.msk [vmem:[%s773 + $0x1e0] sm:$0xff] %vm895, %v2639
        %2709 = vst.msk [vmem:[%s773 + $0x1f8] sm:$0xff] %vm895, %v2641
        %2710 = vst.msk [vmem:[%s773 + $0x210] sm:$0xff] %vm895, %v2643
        %2711 = vst.msk [vmem:[%s773 + $0x228] sm:$0xff] %vm895, %v2645
        %2712 = vst.msk [vmem:[%s773 + $0x240] sm:$0xff] %vm895, %v2647
        %2713 = vst.msk [vmem:[%s773 + $0x258] sm:$0xff] %vm895, %v2649
        %2714 = vst.msk [vmem:[%s773 + $0x270] sm:$0xff] %vm895, %v2651
        %2715 = vst.msk [vmem:[%s773 + $0x288] sm:$0xff] %vm895, %v2653
        %2716 = vst.msk [vmem:[%s773 + $0x2a0] sm:$0xff] %vm895, %v2655
        %2717 = vst.msk [vmem:[%s773 + $0x2b8] sm:$0xff] %vm895, %v2657
        %v2718 = vrot.slane %v2431, 1
        %v2719 = vrot.slane %v2432, 1
        %v2720 = vsel %vm926, %v2718, %v2719
        %v2721 = vrot.slane %v2433, 1
        %v2722 = vrot.slane %v2434, 1
        %v2723 = vsel %vm926, %v2721, %v2722
        %v2724 = vrot.slane %v2435, 1
        %v2725 = vrot.slane %v2436, 1
        %v2726 = vsel %vm926, %v2724, %v2725
        %v2727 = vrot.slane %v2437, 1
        %v2728 = vrot.slane %v2438, 1
        %v2729 = vsel %vm926, %v2727, %v2728
        %v2730 = vrot.slane %v2439, 1
        %v2731 = vrot.slane %v2440, 1
        %v2732 = vsel %vm926, %v2730, %v2731
        %v2733 = vrot.slane %v2441, 1
        %v2734 = vrot.slane %v2442, 1
        %v2735 = vsel %vm926, %v2733, %v2734
        %v2736 = vrot.slane %v2443, 1
        %v2737 = vrot.slane %v2444, 1
        %v2738 = vsel %vm926, %v2736, %v2737
        %v2739 = vrot.slane %v2445, 1
        %v2740 = vrot.slane %v2446, 1
        %v2741 = vsel %vm926, %v2739, %v2740
        %v2742 = vrot.slane %v2447, 1
        %v2743 = vrot.slane %v2448, 1
        %v2744 = vsel %vm926, %v2742, %v2743
        %v2745 = vrot.slane %v2449, 1
        %v2746 = vrot.slane %v2450, 1
        %v2747 = vsel %vm926, %v2745, %v2746
        %v2748 = vrot.slane %v2451, 1
        %v2749 = vrot.slane %v2452, 1
        %v2750 = vsel %vm926, %v2748, %v2749
        %v2751 = vrot.slane %v2453, 1
        %v2752 = vrot.slane %v2454, 1
        %v2753 = vsel %vm926, %v2751, %v2752
        %v2754 = vrot.slane %v2455, 1
        %v2755 = vrot.slane %v2456, 1
        %v2756 = vsel %vm926, %v2754, %v2755
        %v2757 = vrot.slane %v2457, 1
        %v2758 = vrot.slane %v2458, 1
        %v2759 = vsel %vm926, %v2757, %v2758
        %v2760 = vrot.slane %v2459, 1
        %v2761 = vrot.slane %v2460, 1
        %v2762 = vsel %vm926, %v2760, %v2761
        %2763 = vrot.lane.b32.xlu0 %v2720, 64
        %v2764 = vpop.permute.xlu0 %2763
        %2765 = vrot.lane.b32.xlu0 %v2719, 64
        %v2766 = vpop.permute.xlu0 %2765
        %2767 = vrot.lane.b32.xlu0 %v2723, 64
        %v2768 = vpop.permute.xlu0 %2767
        %2769 = vrot.lane.b32.xlu0 %v2722, 64
        %v2770 = vpop.permute.xlu0 %2769
        %2771 = vrot.lane.b32.xlu0 %v2726, 64
        %v2772 = vpop.permute.xlu0 %2771
        %2773 = vrot.lane.b32.xlu0 %v2725, 64
        %v2774 = vpop.permute.xlu0 %2773
        %2775 = vrot.lane.b32.xlu0 %v2729, 64
        %v2776 = vpop.permute.xlu0 %2775
        %2777 = vrot.lane.b32.xlu0 %v2728, 64
        %v2778 = vpop.permute.xlu0 %2777
        %2779 = vrot.lane.b32.xlu0 %v2732, 64
        %v2780 = vpop.permute.xlu0 %2779
        %2781 = vrot.lane.b32.xlu0 %v2731, 64
        %v2782 = vpop.permute.xlu0 %2781
        %2783 = vrot.lane.b32.xlu0 %v2735, 64
        %v2784 = vpop.permute.xlu0 %2783
        %2785 = vrot.lane.b32.xlu0 %v2734, 64
        %v2786 = vpop.permute.xlu0 %2785
        %2787 = vrot.lane.b32.xlu0 %v2738, 64
        %v2788 = vpop.permute.xlu0 %2787
        %2789 = vrot.lane.b32.xlu0 %v2737, 64
        %v2790 = vpop.permute.xlu0 %2789
        %2791 = vrot.lane.b32.xlu0 %v2741, 64
        %v2792 = vpop.permute.xlu0 %2791
        %2793 = vrot.lane.b32.xlu0 %v2740, 64
        %v2794 = vpop.permute.xlu0 %2793
        %2795 = vrot.lane.b32.xlu0 %v2744, 64
        %v2796 = vpop.permute.xlu0 %2795
        %2797 = vrot.lane.b32.xlu0 %v2743, 64
        %v2798 = vpop.permute.xlu0 %2797
        %2799 = vrot.lane.b32.xlu0 %v2747, 64
        %v2800 = vpop.permute.xlu0 %2799
        %2801 = vrot.lane.b32.xlu0 %v2746, 64
        %v2802 = vpop.permute.xlu0 %2801
        %2803 = vrot.lane.b32.xlu0 %v2750, 64
        %v2804 = vpop.permute.xlu0 %2803
        %2805 = vrot.lane.b32.xlu0 %v2749, 64
        %v2806 = vpop.permute.xlu0 %2805
        %2807 = vrot.lane.b32.xlu0 %v2753, 64
        %v2808 = vpop.permute.xlu0 %2807
        %2809 = vrot.lane.b32.xlu0 %v2752, 64
        %v2810 = vpop.permute.xlu0 %2809
        %2811 = vrot.lane.b32.xlu0 %v2756, 64
        %v2812 = vpop.permute.xlu0 %2811
        %2813 = vrot.lane.b32.xlu0 %v2755, 64
        %v2814 = vpop.permute.xlu0 %2813
        %2815 = vrot.lane.b32.xlu0 %v2759, 64
        %v2816 = vpop.permute.xlu0 %2815
        %2817 = vrot.lane.b32.xlu0 %v2758, 64
        %v2818 = vpop.permute.xlu0 %2817
        %2819 = vrot.lane.b32.xlu0 %v2762, 64
        %v2820 = vpop.permute.xlu0 %2819
        %2821 = vrot.lane.b32.xlu0 %v2761, 64
        %v2822 = vpop.permute.xlu0 %2821
        %2853 = vst.msk [vmem:[%s773] sm:$0xff] %vm1062, %v2764
        %2854 = vst.msk [vmem:[%s773 + $0x18] sm:$0x7f] %vm1064, %v2766
        %2855 = vst.msk [vmem:[%s773 + $0x30] sm:$0xff] %vm1062, %v2768
        %2856 = vst.msk [vmem:[%s773 + $0x48] sm:$0x7f] %vm1064, %v2770
        %2857 = vst.msk [vmem:[%s773 + $0x60] sm:$0xff] %vm1062, %v2772
        %2858 = vst.msk [vmem:[%s773 + $0x78] sm:$0x7f] %vm1064, %v2774
        %2859 = vst.msk [vmem:[%s773 + $0x90] sm:$0xff] %vm1062, %v2776
        %2860 = vst.msk [vmem:[%s773 + $0xa8] sm:$0x7f] %vm1064, %v2778
        %2861 = vst.msk [vmem:[%s773 + $0xc0] sm:$0xff] %vm1062, %v2780
        %2862 = vst.msk [vmem:[%s773 + $0xd8] sm:$0x7f] %vm1064, %v2782
        %2863 = vst.msk [vmem:[%s773 + $0xf0] sm:$0xff] %vm1062, %v2784
        %2864 = vst.msk [vmem:[%s773 + $0x108] sm:$0x7f] %vm1064, %v2786
        %2865 = vst.msk [vmem:[%s773 + $0x120] sm:$0xff] %vm1062, %v2788
        %2866 = vst.msk [vmem:[%s773 + $0x138] sm:$0x7f] %vm1064, %v2790
        %2867 = vst.msk [vmem:[%s773 + $0x150] sm:$0xff] %vm1062, %v2792
        %2868 = vst.msk [vmem:[%s773 + $0x168] sm:$0x7f] %vm1064, %v2794
        %2869 = vst.msk [vmem:[%s773 + $0x180] sm:$0xff] %vm1062, %v2796
        %2870 = vst.msk [vmem:[%s773 + $0x198] sm:$0x7f] %vm1064, %v2798
        %2871 = vst.msk [vmem:[%s773 + $0x1b0] sm:$0xff] %vm1062, %v2800
        %2872 = vst.msk [vmem:[%s773 + $0x1c8] sm:$0x7f] %vm1064, %v2802
        %2873 = vst.msk [vmem:[%s773 + $0x1e0] sm:$0xff] %vm1062, %v2804
        %2874 = vst.msk [vmem:[%s773 + $0x1f8] sm:$0x7f] %vm1064, %v2806
        %2875 = vst.msk [vmem:[%s773 + $0x210] sm:$0xff] %vm1062, %v2808
        %2876 = vst.msk [vmem:[%s773 + $0x228] sm:$0x7f] %vm1064, %v2810
        %2877 = vst.msk [vmem:[%s773 + $0x240] sm:$0xff] %vm1062, %v2812
        %2878 = vst.msk [vmem:[%s773 + $0x258] sm:$0x7f] %vm1064, %v2814
        %2879 = vst.msk [vmem:[%s773 + $0x270] sm:$0xff] %vm1062, %v2816
        %2880 = vst.msk [vmem:[%s773 + $0x288] sm:$0x7f] %vm1064, %v2818
        %2881 = vst.msk [vmem:[%s773 + $0x2a0] sm:$0xff] %vm1062, %v2820
        %2882 = vst.msk [vmem:[%s773 + $0x2b8] sm:$0x7f] %vm1064, %v2822
        %v2885 = vrot.slane %v2461, 7
        %v2886 = vrot.slane %v2462, 7
        %v2887 = vsel %vm697, %v2885, %v2886
        %2888 = vrot.lane.b32.xlu0 %v2493, 96
        %v2889 = vpop.permute.xlu0 %2888
        %2890 = vrot.lane.b32.xlu0 %v2495, 96
        %v2891 = vpop.permute.xlu0 %2890
        %2892 = vrot.lane.b32.xlu0 %v2496, 96
        %v2893 = vpop.permute.xlu0 %2892
        %2894 = vrot.lane.b32.xlu0 %v2498, 96
        %v2895 = vpop.permute.xlu0 %2894
        %2896 = vrot.lane.b32.xlu0 %v2499, 96
        %v2897 = vpop.permute.xlu0 %2896
        %2898 = vrot.lane.b32.xlu0 %v2501, 96
        %v2899 = vpop.permute.xlu0 %2898
        %2900 = vrot.lane.b32.xlu0 %v2502, 96
        %v2901 = vpop.permute.xlu0 %2900
        %2902 = vrot.lane.b32.xlu0 %v2504, 96
        %v2903 = vpop.permute.xlu0 %2902
        %2904 = vrot.lane.b32.xlu0 %v2505, 96
        %v2905 = vpop.permute.xlu0 %2904
        %2906 = vrot.lane.b32.xlu0 %v2507, 96
        %v2907 = vpop.permute.xlu0 %2906
        %2908 = vrot.lane.b32.xlu0 %v2508, 96
        %v2909 = vpop.permute.xlu0 %2908
        %2910 = vrot.lane.b32.xlu0 %v2510, 96
        %v2911 = vpop.permute.xlu0 %2910
        %2912 = vrot.lane.b32.xlu0 %v2511, 96
        %v2913 = vpop.permute.xlu0 %2912
        %2914 = vrot.lane.b32.xlu0 %v2513, 96
        %v2915 = vpop.permute.xlu0 %2914
        %2916 = vrot.lane.b32.xlu0 %v2514, 96
        %v2917 = vpop.permute.xlu0 %2916
        %2918 = vrot.lane.b32.xlu0 %v2516, 96
        %v2919 = vpop.permute.xlu0 %2918
        %2920 = vrot.lane.b32.xlu0 %v2517, 96
        %v2921 = vpop.permute.xlu0 %2920
        %2922 = vrot.lane.b32.xlu0 %v2519, 96
        %v2923 = vpop.permute.xlu0 %2922
        %2924 = vrot.lane.b32.xlu0 %v2520, 96
        %v2925 = vpop.permute.xlu0 %2924
        %2926 = vrot.lane.b32.xlu0 %v2522, 96
        %v2927 = vpop.permute.xlu0 %2926
        %2928 = vrot.lane.b32.xlu0 %v2523, 96
        %v2929 = vpop.permute.xlu0 %2928
        %2930 = vrot.lane.b32.xlu0 %v2525, 96
        %v2931 = vpop.permute.xlu0 %2930
        %2932 = vrot.lane.b32.xlu0 %v2526, 96
        %v2933 = vpop.permute.xlu0 %2932
        %2934 = vrot.lane.b32.xlu0 %v2528, 96
        %v2935 = vpop.permute.xlu0 %2934
        %2936 = vrot.lane.b32.xlu0 %v2529, 96
        %v2937 = vpop.permute.xlu0 %2936
        %2938 = vrot.lane.b32.xlu0 %v2531, 96
        %v2939 = vpop.permute.xlu0 %2938
        %2940 = vrot.lane.b32.xlu0 %v2532, 96
        %v2941 = vpop.permute.xlu0 %2940
        %2942 = vrot.lane.b32.xlu0 %v2534, 96
        %v2943 = vpop.permute.xlu0 %2942
        %2944 = vrot.lane.b32.xlu0 %v2535, 96
        %v2945 = vpop.permute.xlu0 %2944
        %2946 = vrot.lane.b32.xlu0 %v2537, 96
        %v2947 = vpop.permute.xlu0 %2946
        %2948 = vrot.lane.b32.xlu0 %v2885, 96
        %v2949 = vpop.permute.xlu0 %2948
        %2950 = vrot.lane.b32.xlu0 %v2887, 96
        %v2951 = vpop.permute.xlu0 %2950
        %2984 = vst.msk [vmem:[#allocation2] sm:$0xfe] %vm1195, %v2889
        %2985 = vst.msk [vmem:[#allocation2 + $0x18] sm:$0xff] %vm1197, %v2891
        %2986 = vst.msk [vmem:[#allocation2 + $0x30] sm:$0xfe] %vm1195, %v2893
        %2987 = vst.msk [vmem:[#allocation2 + $0x48] sm:$0xff] %vm1197, %v2895
        %2988 = vst.msk [vmem:[#allocation2 + $0x60] sm:$0xfe] %vm1195, %v2897
        %2989 = vst.msk [vmem:[#allocation2 + $0x78] sm:$0xff] %vm1197, %v2899
        %2990 = vst.msk [vmem:[#allocation2 + $0x90] sm:$0xfe] %vm1195, %v2901
        %2991 = vst.msk [vmem:[#allocation2 + $0xa8] sm:$0xff] %vm1197, %v2903
        %2992 = vst.msk [vmem:[#allocation2 + $0xc0] sm:$0xfe] %vm1195, %v2905
        %2993 = vst.msk [vmem:[#allocation2 + $0xd8] sm:$0xff] %vm1197, %v2907
        %2994 = vst.msk [vmem:[#allocation2 + $0xf0] sm:$0xfe] %vm1195, %v2909
        %2995 = vst.msk [vmem:[#allocation2 + $0x108] sm:$0xff] %vm1197, %v2911
        %2996 = vst.msk [vmem:[#allocation2 + $0x120] sm:$0xfe] %vm1195, %v2913
        %2997 = vst.msk [vmem:[#allocation2 + $0x138] sm:$0xff] %vm1197, %v2915
        %2998 = vst.msk [vmem:[#allocation2 + $0x150] sm:$0xfe] %vm1195, %v2917
        %2999 = vst.msk [vmem:[#allocation2 + $0x168] sm:$0xff] %vm1197, %v2919
        %3000 = vst.msk [vmem:[#allocation2 + $0x180] sm:$0xfe] %vm1195, %v2921
        %3001 = vst.msk [vmem:[#allocation2 + $0x198] sm:$0xff] %vm1197, %v2923
        %3002 = vst.msk [vmem:[#allocation2 + $0x1b0] sm:$0xfe] %vm1195, %v2925
        %3003 = vst.msk [vmem:[#allocation2 + $0x1c8] sm:$0xff] %vm1197, %v2927
        %3004 = vst.msk [vmem:[#allocation2 + $0x1e0] sm:$0xfe] %vm1195, %v2929
        %3005 = vst.msk [vmem:[#allocation2 + $0x1f8] sm:$0xff] %vm1197, %v2931
        %3006 = vst.msk [vmem:[#allocation2 + $0x210] sm:$0xfe] %vm1195, %v2933
        %3007 = vst.msk [vmem:[#allocation2 + $0x228] sm:$0xff] %vm1197, %v2935
        %3008 = vst.msk [vmem:[#allocation2 + $0x240] sm:$0xfe] %vm1195, %v2937
        %3009 = vst.msk [vmem:[#allocation2 + $0x258] sm:$0xff] %vm1197, %v2939
        %3010 = vst.msk [vmem:[#allocation2 + $0x270] sm:$0xfe] %vm1195, %v2941
        %3011 = vst.msk [vmem:[#allocation2 + $0x288] sm:$0xff] %vm1197, %v2943
        %3012 = vst.msk [vmem:[#allocation2 + $0x2a0] sm:$0xfe] %vm1195, %v2945
        %3013 = vst.msk [vmem:[#allocation2 + $0x2b8] sm:$0xff] %vm1197, %v2947
        %3014 = vst.msk [vmem:[#allocation2 + $0x2d0] sm:$0xfe] %vm1195, %v2949
        %3015 = vst.msk [vmem:[#allocation2 + $0x2e8] sm:$0xff] %vm1197, %v2951
        %3016 = vst.msk [vmem:[#allocation2 + $0x8] sm:$0xff] %vm462, %v2431
        %3017 = vst.msk [vmem:[#allocation2 + $0x20] sm:$0xff] %vm462, %v2432
        %3018 = vst.msk [vmem:[#allocation2 + $0x38] sm:$0xff] %vm462, %v2433
        %3019 = vst.msk [vmem:[#allocation2 + $0x50] sm:$0xff] %vm462, %v2434
        %3020 = vst.msk [vmem:[#allocation2 + $0x68] sm:$0xff] %vm462, %v2435
        %3021 = vst.msk [vmem:[#allocation2 + $0x80] sm:$0xff] %vm462, %v2436
        %3022 = vst.msk [vmem:[#allocation2 + $0x98] sm:$0xff] %vm462, %v2437
        %3023 = vst.msk [vmem:[#allocation2 + $0xb0] sm:$0xff] %vm462, %v2438
        %3024 = vst.msk [vmem:[#allocation2 + $0xc8] sm:$0xff] %vm462, %v2439
        %3025 = vst.msk [vmem:[#allocation2 + $0xe0] sm:$0xff] %vm462, %v2440
        %3026 = vst.msk [vmem:[#allocation2 + $0xf8] sm:$0xff] %vm462, %v2441
        %3027 = vst.msk [vmem:[#allocation2 + $0x110] sm:$0xff] %vm462, %v2442
        %3028 = vst.msk [vmem:[#allocation2 + $0x128] sm:$0xff] %vm462, %v2443
        %3029 = vst.msk [vmem:[#allocation2 + $0x140] sm:$0xff] %vm462, %v2444
        %3030 = vst.msk [vmem:[#allocation2 + $0x158] sm:$0xff] %vm462, %v2445
        %3031 = vst.msk [vmem:[#allocation2 + $0x170] sm:$0xff] %vm462, %v2446
        %3032 = vst.msk [vmem:[#allocation2 + $0x188] sm:$0xff] %vm462, %v2447
        %3033 = vst.msk [vmem:[#allocation2 + $0x1a0] sm:$0xff] %vm462, %v2448
        %3034 = vst.msk [vmem:[#allocation2 + $0x1b8] sm:$0xff] %vm462, %v2449
        %3035 = vst.msk [vmem:[#allocation2 + $0x1d0] sm:$0xff] %vm462, %v2450
        %3036 = vst.msk [vmem:[#allocation2 + $0x1e8] sm:$0xff] %vm462, %v2451
        %3037 = vst.msk [vmem:[#allocation2 + $0x200] sm:$0xff] %vm462, %v2452
        %3038 = vst.msk [vmem:[#allocation2 + $0x218] sm:$0xff] %vm462, %v2453
        %3039 = vst.msk [vmem:[#allocation2 + $0x230] sm:$0xff] %vm462, %v2454
        %3040 = vst.msk [vmem:[#allocation2 + $0x248] sm:$0xff] %vm462, %v2455
        %3041 = vst.msk [vmem:[#allocation2 + $0x260] sm:$0xff] %vm462, %v2456
        %3042 = vst.msk [vmem:[#allocation2 + $0x278] sm:$0xff] %vm462, %v2457
        %3043 = vst.msk [vmem:[#allocation2 + $0x290] sm:$0xff] %vm462, %v2458
        %3044 = vst.msk [vmem:[#allocation2 + $0x2a8] sm:$0xff] %vm462, %v2459
        %3045 = vst.msk [vmem:[#allocation2 + $0x2c0] sm:$0xff] %vm462, %v2460
        %3046 = vst.msk [vmem:[#allocation2 + $0x2d8] sm:$0xff] %vm462, %v2461
        %3047 = vst.msk [vmem:[#allocation2 + $0x2f0] sm:$0xff] %vm462, %v2462
        %v3048 = vrot.slane %v2461, 1
        %v3049 = vrot.slane %v2462, 1
        %v3050 = vsel %vm926, %v3048, %v3049
        %3051 = vrot.lane.b32.xlu0 %v2720, 32
        %v3052 = vpop.permute.xlu0 %3051
        %3053 = vrot.lane.b32.xlu0 %v2719, 32
        %v3054 = vpop.permute.xlu0 %3053
        %3055 = vrot.lane.b32.xlu0 %v2723, 32
        %v3056 = vpop.permute.xlu0 %3055
        %3057 = vrot.lane.b32.xlu0 %v2722, 32
        %v3058 = vpop.permute.xlu0 %3057
        %3059 = vrot.lane.b32.xlu0 %v2726, 32
        %v3060 = vpop.permute.xlu0 %3059
        %3061 = vrot.lane.b32.xlu0 %v2725, 32
        %v3062 = vpop.permute.xlu0 %3061
        %3063 = vrot.lane.b32.xlu0 %v2729, 32
        %v3064 = vpop.permute.xlu0 %3063
        %3065 = vrot.lane.b32.xlu0 %v2728, 32
        %v3066 = vpop.permute.xlu0 %3065
        %3067 = vrot.lane.b32.xlu0 %v2732, 32
        %v3068 = vpop.permute.xlu0 %3067
        %3069 = vrot.lane.b32.xlu0 %v2731, 32
        %v3070 = vpop.permute.xlu0 %3069
        %3071 = vrot.lane.b32.xlu0 %v2735, 32
        %v3072 = vpop.permute.xlu0 %3071
        %3073 = vrot.lane.b32.xlu0 %v2734, 32
        %v3074 = vpop.permute.xlu0 %3073
        %3075 = vrot.lane.b32.xlu0 %v2738, 32
        %v3076 = vpop.permute.xlu0 %3075
        %3077 = vrot.lane.b32.xlu0 %v2737, 32
        %v3078 = vpop.permute.xlu0 %3077
        %3079 = vrot.lane.b32.xlu0 %v2741, 32
        %v3080 = vpop.permute.xlu0 %3079
        %3081 = vrot.lane.b32.xlu0 %v2740, 32
        %v3082 = vpop.permute.xlu0 %3081
        %3083 = vrot.lane.b32.xlu0 %v2744, 32
        %v3084 = vpop.permute.xlu0 %3083
        %3085 = vrot.lane.b32.xlu0 %v2743, 32
        %v3086 = vpop.permute.xlu0 %3085
        %3087 = vrot.lane.b32.xlu0 %v2747, 32
        %v3088 = vpop.permute.xlu0 %3087
        %3089 = vrot.lane.b32.xlu0 %v2746, 32
        %v3090 = vpop.permute.xlu0 %3089
        %3091 = vrot.lane.b32.xlu0 %v2750, 32
        %v3092 = vpop.permute.xlu0 %3091
        %3093 = vrot.lane.b32.xlu0 %v2749, 32
        %v3094 = vpop.permute.xlu0 %3093
        %3095 = vrot.lane.b32.xlu0 %v2753, 32
        %v3096 = vpop.permute.xlu0 %3095
        %3097 = vrot.lane.b32.xlu0 %v2752, 32
        %v3098 = vpop.permute.xlu0 %3097
        %3099 = vrot.lane.b32.xlu0 %v2756, 32
        %v3100 = vpop.permute.xlu0 %3099
        %3101 = vrot.lane.b32.xlu0 %v2755, 32
        %v3102 = vpop.permute.xlu0 %3101
        %3103 = vrot.lane.b32.xlu0 %v2759, 32
        %v3104 = vpop.permute.xlu0 %3103
        %3105 = vrot.lane.b32.xlu0 %v2758, 32
        %v3106 = vpop.permute.xlu0 %3105
        %3107 = vrot.lane.b32.xlu0 %v2762, 32
        %v3108 = vpop.permute.xlu0 %3107
        %3109 = vrot.lane.b32.xlu0 %v2761, 32
        %v3110 = vpop.permute.xlu0 %3109
        %3111 = vrot.lane.b32.xlu0 %v3050, 32
        %v3112 = vpop.permute.xlu0 %3111
        %3113 = vrot.lane.b32.xlu0 %v3049, 32
        %v3114 = vpop.permute.xlu0 %3113
        %3147 = vst.msk [vmem:[#allocation2 + $0x8] sm:$0xff] %vm895, %v3052
        %3148 = vst.msk [vmem:[#allocation2 + $0x20] sm:$0x7f] %vm1361, %v3054
        %3149 = vst.msk [vmem:[#allocation2 + $0x38] sm:$0xff] %vm895, %v3056
        %3150 = vst.msk [vmem:[#allocation2 + $0x50] sm:$0x7f] %vm1361, %v3058
        %3151 = vst.msk [vmem:[#allocation2 + $0x68] sm:$0xff] %vm895, %v3060
        %3152 = vst.msk [vmem:[#allocation2 + $0x80] sm:$0x7f] %vm1361, %v3062
        %3153 = vst.msk [vmem:[#allocation2 + $0x98] sm:$0xff] %vm895, %v3064
        %3154 = vst.msk [vmem:[#allocation2 + $0xb0] sm:$0x7f] %vm1361, %v3066
        %3155 = vst.msk [vmem:[#allocation2 + $0xc8] sm:$0xff] %vm895, %v3068
        %3156 = vst.msk [vmem:[#allocation2 + $0xe0] sm:$0x7f] %vm1361, %v3070
        %3157 = vst.msk [vmem:[#allocation2 + $0xf8] sm:$0xff] %vm895, %v3072
        %3158 = vst.msk [vmem:[#allocation2 + $0x110] sm:$0x7f] %vm1361, %v3074
        %3159 = vst.msk [vmem:[#allocation2 + $0x128] sm:$0xff] %vm895, %v3076
        %3160 = vst.msk [vmem:[#allocation2 + $0x140] sm:$0x7f] %vm1361, %v3078
        %3161 = vst.msk [vmem:[#allocation2 + $0x158] sm:$0xff] %vm895, %v3080
        %3162 = vst.msk [vmem:[#allocation2 + $0x170] sm:$0x7f] %vm1361, %v3082
        %3163 = vst.msk [vmem:[#allocation2 + $0x188] sm:$0xff] %vm895, %v3084
        %3164 = vst.msk [vmem:[#allocation2 + $0x1a0] sm:$0x7f] %vm1361, %v3086
        %3165 = vst.msk [vmem:[#allocation2 + $0x1b8] sm:$0xff] %vm895, %v3088
        %3166 = vst.msk [vmem:[#allocation2 + $0x1d0] sm:$0x7f] %vm1361, %v3090
        %3167 = vst.msk [vmem:[#allocation2 + $0x1e8] sm:$0xff] %vm895, %v3092
        %3168 = vst.msk [vmem:[#allocation2 + $0x200] sm:$0x7f] %vm1361, %v3094
        %3169 = vst.msk [vmem:[#allocation2 + $0x218] sm:$0xff] %vm895, %v3096
        %3170 = vst.msk [vmem:[#allocation2 + $0x230] sm:$0x7f] %vm1361, %v3098
        %3171 = vst.msk [vmem:[#allocation2 + $0x248] sm:$0xff] %vm895, %v3100
        %3172 = vst.msk [vmem:[#allocation2 + $0x260] sm:$0x7f] %vm1361, %v3102
        %3173 = vst.msk [vmem:[#allocation2 + $0x278] sm:$0xff] %vm895, %v3104
        %3174 = vst.msk [vmem:[#allocation2 + $0x290] sm:$0x7f] %vm1361, %v3106
        %3175 = vst.msk [vmem:[#allocation2 + $0x2a8] sm:$0xff] %vm895, %v3108
        %3176 = vst.msk [vmem:[#allocation2 + $0x2c0] sm:$0x7f] %vm1361, %v3110
        %3177 = vst.msk [vmem:[#allocation2 + $0x2d8] sm:$0xff] %vm895, %v3112
        %3178 = vst.msk [vmem:[#allocation2 + $0x2f0] sm:$0x7f] %vm1361, %v3114
        %3179 = vrot.lane.b32.xlu0 %v2496, 64
        %v3180 = vpop.permute.xlu0 %3179
        %3181 = vrot.lane.b32.xlu0 %v2498, 64
        %v3182 = vpop.permute.xlu0 %3181
        %3183 = vrot.lane.b32.xlu0 %v2499, 64
        %v3184 = vpop.permute.xlu0 %3183
        %3185 = vrot.lane.b32.xlu0 %v2501, 64
        %v3186 = vpop.permute.xlu0 %3185
        %3187 = vrot.lane.b32.xlu0 %v2502, 64
        %v3188 = vpop.permute.xlu0 %3187
        %3189 = vrot.lane.b32.xlu0 %v2504, 64
        %v3190 = vpop.permute.xlu0 %3189
        %3191 = vrot.lane.b32.xlu0 %v2505, 64
        %v3192 = vpop.permute.xlu0 %3191
        %3193 = vrot.lane.b32.xlu0 %v2507, 64
        %v3194 = vpop.permute.xlu0 %3193
        %3195 = vrot.lane.b32.xlu0 %v2508, 64
        %v3196 = vpop.permute.xlu0 %3195
        %3197 = vrot.lane.b32.xlu0 %v2510, 64
        %v3198 = vpop.permute.xlu0 %3197
        %3199 = vrot.lane.b32.xlu0 %v2511, 64
        %v3200 = vpop.permute.xlu0 %3199
        %3201 = vrot.lane.b32.xlu0 %v2513, 64
        %v3202 = vpop.permute.xlu0 %3201
        %3203 = vrot.lane.b32.xlu0 %v2514, 64
        %v3204 = vpop.permute.xlu0 %3203
        %3205 = vrot.lane.b32.xlu0 %v2516, 64
        %v3206 = vpop.permute.xlu0 %3205
        %3207 = vrot.lane.b32.xlu0 %v2517, 64
        %v3208 = vpop.permute.xlu0 %3207
        %3209 = vrot.lane.b32.xlu0 %v2519, 64
        %v3210 = vpop.permute.xlu0 %3209
        %3211 = vrot.lane.b32.xlu0 %v2520, 64
        %v3212 = vpop.permute.xlu0 %3211
        %3213 = vrot.lane.b32.xlu0 %v2522, 64
        %v3214 = vpop.permute.xlu0 %3213
        %3215 = vrot.lane.b32.xlu0 %v2523, 64
        %v3216 = vpop.permute.xlu0 %3215
        %3217 = vrot.lane.b32.xlu0 %v2525, 64
        %v3218 = vpop.permute.xlu0 %3217
        %3219 = vrot.lane.b32.xlu0 %v2526, 64
        %v3220 = vpop.permute.xlu0 %3219
        %3221 = vrot.lane.b32.xlu0 %v2528, 64
        %v3222 = vpop.permute.xlu0 %3221
        %3223 = vrot.lane.b32.xlu0 %v2529, 64
        %v3224 = vpop.permute.xlu0 %3223
        %3225 = vrot.lane.b32.xlu0 %v2531, 64
        %v3226 = vpop.permute.xlu0 %3225
        %3227 = vrot.lane.b32.xlu0 %v2532, 64
        %v3228 = vpop.permute.xlu0 %3227
        %3229 = vrot.lane.b32.xlu0 %v2534, 64
        %v3230 = vpop.permute.xlu0 %3229
        %3231 = vrot.lane.b32.xlu0 %v2535, 64
        %v3232 = vpop.permute.xlu0 %3231
        %3233 = vrot.lane.b32.xlu0 %v2537, 64
        %v3234 = vpop.permute.xlu0 %3233
        %3235 = vrot.lane.b32.xlu0 %v2885, 64
        %v3236 = vpop.permute.xlu0 %3235
        %3237 = vrot.lane.b32.xlu0 %v2887, 64
        %v3238 = vpop.permute.xlu0 %3237
        %3269 = vst.msk [vmem:[#allocation2 + $0x8] sm:$0xfe] %vm1483, %v3180
        %3270 = vst.msk [vmem:[#allocation2 + $0x20] sm:$0xff] %vm1062, %v3182
        %3271 = vst.msk [vmem:[#allocation2 + $0x38] sm:$0xfe] %vm1483, %v3184
        %3272 = vst.msk [vmem:[#allocation2 + $0x50] sm:$0xff] %vm1062, %v3186
        %3273 = vst.msk [vmem:[#allocation2 + $0x68] sm:$0xfe] %vm1483, %v3188
        %3274 = vst.msk [vmem:[#allocation2 + $0x80] sm:$0xff] %vm1062, %v3190
        %3275 = vst.msk [vmem:[#allocation2 + $0x98] sm:$0xfe] %vm1483, %v3192
        %3276 = vst.msk [vmem:[#allocation2 + $0xb0] sm:$0xff] %vm1062, %v3194
        %3277 = vst.msk [vmem:[#allocation2 + $0xc8] sm:$0xfe] %vm1483, %v3196
        %3278 = vst.msk [vmem:[#allocation2 + $0xe0] sm:$0xff] %vm1062, %v3198
        %3279 = vst.msk [vmem:[#allocation2 + $0xf8] sm:$0xfe] %vm1483, %v3200
        %3280 = vst.msk [vmem:[#allocation2 + $0x110] sm:$0xff] %vm1062, %v3202
        %3281 = vst.msk [vmem:[#allocation2 + $0x128] sm:$0xfe] %vm1483, %v3204
        %3282 = vst.msk [vmem:[#allocation2 + $0x140] sm:$0xff] %vm1062, %v3206
        %3283 = vst.msk [vmem:[#allocation2 + $0x158] sm:$0xfe] %vm1483, %v3208
        %3284 = vst.msk [vmem:[#allocation2 + $0x170] sm:$0xff] %vm1062, %v3210
        %3285 = vst.msk [vmem:[#allocation2 + $0x188] sm:$0xfe] %vm1483, %v3212
        %3286 = vst.msk [vmem:[#allocation2 + $0x1a0] sm:$0xff] %vm1062, %v3214
        %3287 = vst.msk [vmem:[#allocation2 + $0x1b8] sm:$0xfe] %vm1483, %v3216
        %3288 = vst.msk [vmem:[#allocation2 + $0x1d0] sm:$0xff] %vm1062, %v3218
        %3289 = vst.msk [vmem:[#allocation2 + $0x1e8] sm:$0xfe] %vm1483, %v3220
        %3290 = vst.msk [vmem:[#allocation2 + $0x200] sm:$0xff] %vm1062, %v3222
        %3291 = vst.msk [vmem:[#allocation2 + $0x218] sm:$0xfe] %vm1483, %v3224
        %3292 = vst.msk [vmem:[#allocation2 + $0x230] sm:$0xff] %vm1062, %v3226
        %3293 = vst.msk [vmem:[#allocation2 + $0x248] sm:$0xfe] %vm1483, %v3228
        %3294 = vst.msk [vmem:[#allocation2 + $0x260] sm:$0xff] %vm1062, %v3230
        %3295 = vst.msk [vmem:[#allocation2 + $0x278] sm:$0xfe] %vm1483, %v3232
        %3296 = vst.msk [vmem:[#allocation2 + $0x290] sm:$0xff] %vm1062, %v3234
        %3297 = vst.msk [vmem:[#allocation2 + $0x2a8] sm:$0xfe] %vm1483, %v3236
        %3298 = vst.msk [vmem:[#allocation2 + $0x2c0] sm:$0xff] %vm1062, %v3238
        %3299 = vrot.lane.b32.xlu0 %v2433, 96
        %v3300 = vpop.permute.xlu0 %3299
        %3301 = vrot.lane.b32.xlu0 %v2434, 96
        %v3302 = vpop.permute.xlu0 %3301
        %3303 = vrot.lane.b32.xlu0 %v2435, 96
        %v3304 = vpop.permute.xlu0 %3303
        %3305 = vrot.lane.b32.xlu0 %v2436, 96
        %v3306 = vpop.permute.xlu0 %3305
        %3307 = vrot.lane.b32.xlu0 %v2437, 96
        %v3308 = vpop.permute.xlu0 %3307
        %3309 = vrot.lane.b32.xlu0 %v2438, 96
        %v3310 = vpop.permute.xlu0 %3309
        %3311 = vrot.lane.b32.xlu0 %v2439, 96
        %v3312 = vpop.permute.xlu0 %3311
        %3313 = vrot.lane.b32.xlu0 %v2440, 96
        %v3314 = vpop.permute.xlu0 %3313
        %3315 = vrot.lane.b32.xlu0 %v2441, 96
        %v3316 = vpop.permute.xlu0 %3315
        %3317 = vrot.lane.b32.xlu0 %v2442, 96
        %v3318 = vpop.permute.xlu0 %3317
        %3319 = vrot.lane.b32.xlu0 %v2443, 96
        %v3320 = vpop.permute.xlu0 %3319
        %3321 = vrot.lane.b32.xlu0 %v2444, 96
        %v3322 = vpop.permute.xlu0 %3321
        %3323 = vrot.lane.b32.xlu0 %v2445, 96
        %v3324 = vpop.permute.xlu0 %3323
        %3325 = vrot.lane.b32.xlu0 %v2446, 96
        %v3326 = vpop.permute.xlu0 %3325
        %3327 = vrot.lane.b32.xlu0 %v2447, 96
        %v3328 = vpop.permute.xlu0 %3327
        %3329 = vrot.lane.b32.xlu0 %v2448, 96
        %v3330 = vpop.permute.xlu0 %3329
        %3331 = vrot.lane.b32.xlu0 %v2449, 96
        %v3332 = vpop.permute.xlu0 %3331
        %3333 = vrot.lane.b32.xlu0 %v2450, 96
        %v3334 = vpop.permute.xlu0 %3333
        %3335 = vrot.lane.b32.xlu0 %v2451, 96
        %v3336 = vpop.permute.xlu0 %3335
        %3337 = vrot.lane.b32.xlu0 %v2452, 96
        %v3338 = vpop.permute.xlu0 %3337
        %3339 = vrot.lane.b32.xlu0 %v2453, 96
        %v3340 = vpop.permute.xlu0 %3339
        %3341 = vrot.lane.b32.xlu0 %v2454, 96
        %v3342 = vpop.permute.xlu0 %3341
        %3343 = vrot.lane.b32.xlu0 %v2455, 96
        %v3344 = vpop.permute.xlu0 %3343
        %3345 = vrot.lane.b32.xlu0 %v2456, 96
        %v3346 = vpop.permute.xlu0 %3345
        %3347 = vrot.lane.b32.xlu0 %v2457, 96
        %v3348 = vpop.permute.xlu0 %3347
        %3349 = vrot.lane.b32.xlu0 %v2458, 96
        %v3350 = vpop.permute.xlu0 %3349
        %3351 = vrot.lane.b32.xlu0 %v2459, 96
        %v3352 = vpop.permute.xlu0 %3351
        %3353 = vrot.lane.b32.xlu0 %v2460, 96
        %v3354 = vpop.permute.xlu0 %3353
        %3355 = vrot.lane.b32.xlu0 %v2461, 96
        %v3356 = vpop.permute.xlu0 %3355
        %3357 = vrot.lane.b32.xlu0 %v2462, 96
        %v3358 = vpop.permute.xlu0 %3357
        %3389 = vst.msk [vmem:[#allocation2 + $0x8] sm:$0xff] %vm1197, %v3300
        %3390 = vst.msk [vmem:[#allocation2 + $0x20] sm:$0xff] %vm1197, %v3302
        %3391 = vst.msk [vmem:[#allocation2 + $0x38] sm:$0xff] %vm1197, %v3304
        %3392 = vst.msk [vmem:[#allocation2 + $0x50] sm:$0xff] %vm1197, %v3306
        %3393 = vst.msk [vmem:[#allocation2 + $0x68] sm:$0xff] %vm1197, %v3308
        %3394 = vst.msk [vmem:[#allocation2 + $0x80] sm:$0xff] %vm1197, %v3310
        %3395 = vst.msk [vmem:[#allocation2 + $0x98] sm:$0xff] %vm1197, %v3312
        %3396 = vst.msk [vmem:[#allocation2 + $0xb0] sm:$0xff] %vm1197, %v3314
        %3397 = vst.msk [vmem:[#allocation2 + $0xc8] sm:$0xff] %vm1197, %v3316
        %3398 = vst.msk [vmem:[#allocation2 + $0xe0] sm:$0xff] %vm1197, %v3318
        %3399 = vst.msk [vmem:[#allocation2 + $0xf8] sm:$0xff] %vm1197, %v3320
        %3400 = vst.msk [vmem:[#allocation2 + $0x110] sm:$0xff] %vm1197, %v3322
        %3401 = vst.msk [vmem:[#allocation2 + $0x128] sm:$0xff] %vm1197, %v3324
        %3402 = vst.msk [vmem:[#allocation2 + $0x140] sm:$0xff] %vm1197, %v3326
        %3403 = vst.msk [vmem:[#allocation2 + $0x158] sm:$0xff] %vm1197, %v3328
        %3404 = vst.msk [vmem:[#allocation2 + $0x170] sm:$0xff] %vm1197, %v3330
        %3405 = vst.msk [vmem:[#allocation2 + $0x188] sm:$0xff] %vm1197, %v3332
        %3406 = vst.msk [vmem:[#allocation2 + $0x1a0] sm:$0xff] %vm1197, %v3334
        %3407 = vst.msk [vmem:[#allocation2 + $0x1b8] sm:$0xff] %vm1197, %v3336
        %3408 = vst.msk [vmem:[#allocation2 + $0x1d0] sm:$0xff] %vm1197, %v3338
        %3409 = vst.msk [vmem:[#allocation2 + $0x1e8] sm:$0xff] %vm1197, %v3340
        %3410 = vst.msk [vmem:[#allocation2 + $0x200] sm:$0xff] %vm1197, %v3342
        %3411 = vst.msk [vmem:[#allocation2 + $0x218] sm:$0xff] %vm1197, %v3344
        %3412 = vst.msk [vmem:[#allocation2 + $0x230] sm:$0xff] %vm1197, %v3346
        %3413 = vst.msk [vmem:[#allocation2 + $0x248] sm:$0xff] %vm1197, %v3348
        %3414 = vst.msk [vmem:[#allocation2 + $0x260] sm:$0xff] %vm1197, %v3350
        %3415 = vst.msk [vmem:[#allocation2 + $0x278] sm:$0xff] %vm1197, %v3352
        %3416 = vst.msk [vmem:[#allocation2 + $0x290] sm:$0xff] %vm1197, %v3354
        %3417 = vst.msk [vmem:[#allocation2 + $0x2a8] sm:$0xff] %vm1197, %v3356
        %3418 = vst.msk [vmem:[#allocation2 + $0x2c0] sm:$0xff] %vm1197, %v3358
        %3449 = vst.msk [vmem:[#allocation2 + $0x10] sm:$0xff] %vm462, %v2723
        %3450 = vst.msk [vmem:[#allocation2 + $0x28] sm:$0x7f] %vm1665, %v2722
        %3451 = vst.msk [vmem:[#allocation2 + $0x40] sm:$0xff] %vm462, %v2726
        %3452 = vst.msk [vmem:[#allocation2 + $0x58] sm:$0x7f] %vm1665, %v2725
        %3453 = vst.msk [vmem:[#allocation2 + $0x70] sm:$0xff] %vm462, %v2729
        %3454 = vst.msk [vmem:[#allocation2 + $0x88] sm:$0x7f] %vm1665, %v2728
        %3455 = vst.msk [vmem:[#allocation2 + $0xa0] sm:$0xff] %vm462, %v2732
        %3456 = vst.msk [vmem:[#allocation2 + $0xb8] sm:$0x7f] %vm1665, %v2731
        %3457 = vst.msk [vmem:[#allocation2 + $0xd0] sm:$0xff] %vm462, %v2735
        %3458 = vst.msk [vmem:[#allocation2 + $0xe8] sm:$0x7f] %vm1665, %v2734
        %3459 = vst.msk [vmem:[#allocation2 + $0x100] sm:$0xff] %vm462, %v2738
        %3460 = vst.msk [vmem:[#allocation2 + $0x118] sm:$0x7f] %vm1665, %v2737
        %3461 = vst.msk [vmem:[#allocation2 + $0x130] sm:$0xff] %vm462, %v2741
        %3462 = vst.msk [vmem:[#allocation2 + $0x148] sm:$0x7f] %vm1665, %v2740
        %3463 = vst.msk [vmem:[#allocation2 + $0x160] sm:$0xff] %vm462, %v2744
        %3464 = vst.msk [vmem:[#allocation2 + $0x178] sm:$0x7f] %vm1665, %v2743
        %3465 = vst.msk [vmem:[#allocation2 + $0x190] sm:$0xff] %vm462, %v2747
        %3466 = vst.msk [vmem:[#allocation2 + $0x1a8] sm:$0x7f] %vm1665, %v2746
        %3467 = vst.msk [vmem:[#allocation2 + $0x1c0] sm:$0xff] %vm462, %v2750
        %3468 = vst.msk [vmem:[#allocation2 + $0x1d8] sm:$0x7f] %vm1665, %v2749
        %3469 = vst.msk [vmem:[#allocation2 + $0x1f0] sm:$0xff] %vm462, %v2753
        %3470 = vst.msk [vmem:[#allocation2 + $0x208] sm:$0x7f] %vm1665, %v2752
        %3471 = vst.msk [vmem:[#allocation2 + $0x220] sm:$0xff] %vm462, %v2756
        %3472 = vst.msk [vmem:[#allocation2 + $0x238] sm:$0x7f] %vm1665, %v2755
        %3473 = vst.msk [vmem:[#allocation2 + $0x250] sm:$0xff] %vm462, %v2759
        %3474 = vst.msk [vmem:[#allocation2 + $0x268] sm:$0x7f] %vm1665, %v2758
        %3475 = vst.msk [vmem:[#allocation2 + $0x280] sm:$0xff] %vm462, %v2762
        %3476 = vst.msk [vmem:[#allocation2 + $0x298] sm:$0x7f] %vm1665, %v2761
        %3477 = vst.msk [vmem:[#allocation2 + $0x2b0] sm:$0xff] %vm462, %v3050
        %3478 = vst.msk [vmem:[#allocation2 + $0x2c8] sm:$0x7f] %vm1665, %v3049
        %v3479 = vld [vmem:[#allocation2] sm:$0xff]
        %v3480 = vld [vmem:[#allocation2 + $0x8] sm:$0xff]
        %v3481 = vld [vmem:[#allocation2 + $0x10] sm:$0xff]
        %v3482 = vld [vmem:[#allocation2 + $0x18] sm:$0xff]
        %v3483 = vld [vmem:[#allocation2 + $0x20] sm:$0xff]
        %v3484 = vld [vmem:[#allocation2 + $0x28] sm:$0xff]
        %v3485 = vld [vmem:[#allocation2 + $0x30] sm:$0xff]
        %v3486 = vld [vmem:[#allocation2 + $0x38] sm:$0xff]
        %v3487 = vld [vmem:[#allocation2 + $0x40] sm:$0xff]
        %v3488 = vld [vmem:[#allocation2 + $0x48] sm:$0xff]
        %v3489 = vld [vmem:[#allocation2 + $0x50] sm:$0xff]
        %v3490 = vld [vmem:[#allocation2 + $0x58] sm:$0xff]
        %v3491 = vld [vmem:[#allocation2 + $0x60] sm:$0xff]
        %v3492 = vld [vmem:[#allocation2 + $0x68] sm:$0xff]
        %v3493 = vld [vmem:[#allocation2 + $0x70] sm:$0xff]
        %v3494 = vld [vmem:[#allocation2 + $0x78] sm:$0xff]
        %v3495 = vld [vmem:[#allocation2 + $0x80] sm:$0xff]
        %v3496 = vld [vmem:[#allocation2 + $0x88] sm:$0xff]
        %v3497 = vld [vmem:[#allocation2 + $0x90] sm:$0xff]
        %v3498 = vld [vmem:[#allocation2 + $0x98] sm:$0xff]
        %v3499 = vld [vmem:[#allocation2 + $0xa0] sm:$0xff]
        %v3500 = vld [vmem:[#allocation2 + $0xa8] sm:$0xff]
        %v3501 = vld [vmem:[#allocation2 + $0xb0] sm:$0xff]
        %v3502 = vld [vmem:[#allocation2 + $0xb8] sm:$0xff]
        %v3503 = vld [vmem:[#allocation2 + $0xc0] sm:$0xff]
        %v3504 = vld [vmem:[#allocation2 + $0xc8] sm:$0xff]
        %v3505 = vld [vmem:[#allocation2 + $0xd0] sm:$0xff]
        %v3506 = vld [vmem:[#allocation2 + $0xd8] sm:$0xff]
        %v3507 = vld [vmem:[#allocation2 + $0xe0] sm:$0xff]
        %v3508 = vld [vmem:[#allocation2 + $0xe8] sm:$0xff]
        %v3509 = vld [vmem:[#allocation2 + $0xf0] sm:$0xff]
        %v3510 = vld [vmem:[#allocation2 + $0xf8] sm:$0xff]
        %v3511 = vld [vmem:[#allocation2 + $0x100] sm:$0xff]
        %v3512 = vld [vmem:[#allocation2 + $0x108] sm:$0xff]
        %v3513 = vld [vmem:[#allocation2 + $0x110] sm:$0xff]
        %v3514 = vld [vmem:[#allocation2 + $0x118] sm:$0xff]
        %v3515 = vld [vmem:[#allocation2 + $0x120] sm:$0xff]
        %v3516 = vld [vmem:[#allocation2 + $0x128] sm:$0xff]
        %v3517 = vld [vmem:[#allocation2 + $0x130] sm:$0xff]
        %v3518 = vld [vmem:[#allocation2 + $0x138] sm:$0xff]
        %v3519 = vld [vmem:[#allocation2 + $0x140] sm:$0xff]
        %v3520 = vld [vmem:[#allocation2 + $0x148] sm:$0xff]
        %v3521 = vld [vmem:[#allocation2 + $0x150] sm:$0xff]
        %v3522 = vld [vmem:[#allocation2 + $0x158] sm:$0xff]
        %v3523 = vld [vmem:[#allocation2 + $0x160] sm:$0xff]
        %v3524 = vld [vmem:[#allocation2 + $0x168] sm:$0xff]
        %v3525 = vld [vmem:[#allocation2 + $0x170] sm:$0xff]
        %v3526 = vld [vmem:[#allocation2 + $0x178] sm:$0xff]
        %v3527 = vld [vmem:[#allocation2 + $0x180] sm:$0xff]
        %v3528 = vld [vmem:[#allocation2 + $0x188] sm:$0xff]
        %v3529 = vld [vmem:[#allocation2 + $0x190] sm:$0xff]
        %v3530 = vld [vmem:[#allocation2 + $0x198] sm:$0xff]
        %v3531 = vld [vmem:[#allocation2 + $0x1a0] sm:$0xff]
        %v3532 = vld [vmem:[#allocation2 + $0x1a8] sm:$0xff]
        %v3533 = vld [vmem:[#allocation2 + $0x1b0] sm:$0xff]
        %v3534 = vld [vmem:[#allocation2 + $0x1b8] sm:$0xff]
        %v3535 = vld [vmem:[#allocation2 + $0x1c0] sm:$0xff]
        %v3536 = vld [vmem:[#allocation2 + $0x1c8] sm:$0xff]
        %v3537 = vld [vmem:[#allocation2 + $0x1d0] sm:$0xff]
        %v3538 = vld [vmem:[#allocation2 + $0x1d8] sm:$0xff]
        %v3539 = vld [vmem:[#allocation2 + $0x1e0] sm:$0xff]
        %v3540 = vld [vmem:[#allocation2 + $0x1e8] sm:$0xff]
        %v3541 = vld [vmem:[#allocation2 + $0x1f0] sm:$0xff]
        %v3542 = vld [vmem:[#allocation2 + $0x1f8] sm:$0xff]
        %v3543 = vld [vmem:[#allocation2 + $0x200] sm:$0xff]
        %v3544 = vld [vmem:[#allocation2 + $0x208] sm:$0xff]
        %v3545 = vld [vmem:[#allocation2 + $0x210] sm:$0xff]
        %v3546 = vld [vmem:[#allocation2 + $0x218] sm:$0xff]
        %v3547 = vld [vmem:[#allocation2 + $0x220] sm:$0xff]
        %v3548 = vld [vmem:[#allocation2 + $0x228] sm:$0xff]
        %v3549 = vld [vmem:[#allocation2 + $0x230] sm:$0xff]
        %v3550 = vld [vmem:[#allocation2 + $0x238] sm:$0xff]
        %v3551 = vld [vmem:[#allocation2 + $0x240] sm:$0xff]
        %v3552 = vld [vmem:[#allocation2 + $0x248] sm:$0xff]
        %v3553 = vld [vmem:[#allocation2 + $0x250] sm:$0xff]
        %v3554 = vld [vmem:[#allocation2 + $0x258] sm:$0xff]
        %v3555 = vld [vmem:[#allocation2 + $0x260] sm:$0xff]
        %v3556 = vld [vmem:[#allocation2 + $0x268] sm:$0xff]
        %v3557 = vld [vmem:[#allocation2 + $0x270] sm:$0xff]
        %v3558 = vld [vmem:[#allocation2 + $0x278] sm:$0xff]
        %v3559 = vld [vmem:[#allocation2 + $0x280] sm:$0xff]
        %v3560 = vld [vmem:[#allocation2 + $0x288] sm:$0xff]
        %v3561 = vld [vmem:[#allocation2 + $0x290] sm:$0xff]
        %v3562 = vld [vmem:[#allocation2 + $0x298] sm:$0xff]
        %v3563 = vld [vmem:[#allocation2 + $0x2a0] sm:$0xff]
        %v3564 = vld [vmem:[#allocation2 + $0x2a8] sm:$0xff]
        %v3565 = vld [vmem:[#allocation2 + $0x2b0] sm:$0xff]
        %v3566 = vld [vmem:[#allocation2 + $0x2b8] sm:$0xff]
        %v3567 = vld [vmem:[#allocation2 + $0x2c0] sm:$0xff]
        %v3568 = vld [vmem:[#allocation2 + $0x2c8] sm:$0xff]
        %v3569 = vld [vmem:[#allocation2 + $0x2d0] sm:$0xff]
        %v3570 = vld [vmem:[#allocation2 + $0x2d8] sm:$0xff]
        %v3571 = vld [vmem:[#allocation2 + $0x2e0] sm:$0xff]
        %v3572 = vld [vmem:[#allocation2 + $0x2e8] sm:$0xff]
        %v3573 = vld [vmem:[#allocation2 + $0x2f0] sm:$0xff]
        %v3574 = vld [vmem:[#allocation2 + $0x2f8] sm:$0xff]
        %v3575 = vpack.c.bf16 %v3482, %v3479
        %v3576 = vpack.c.bf16 %v3483, %v3480
        %v3577 = vpack.c.bf16 %v3484, %v3481
        %v3578 = vpack.c.bf16 %v3488, %v3485
        %v3579 = vpack.c.bf16 %v3489, %v3486
        %v3580 = vpack.c.bf16 %v3490, %v3487
        %v3581 = vpack.c.bf16 %v3494, %v3491
        %v3582 = vpack.c.bf16 %v3495, %v3492
        %v3583 = vpack.c.bf16 %v3496, %v3493
        %v3584 = vpack.c.bf16 %v3500, %v3497
        %v3585 = vpack.c.bf16 %v3501, %v3498
        %v3586 = vpack.c.bf16 %v3502, %v3499
        %v3587 = vpack.c.bf16 %v3506, %v3503
        %v3588 = vpack.c.bf16 %v3507, %v3504
        %v3589 = vpack.c.bf16 %v3508, %v3505
        %v3590 = vpack.c.bf16 %v3512, %v3509
        %v3591 = vpack.c.bf16 %v3513, %v3510
        %v3592 = vpack.c.bf16 %v3514, %v3511
        %v3593 = vpack.c.bf16 %v3518, %v3515
        %v3594 = vpack.c.bf16 %v3519, %v3516
        %v3595 = vpack.c.bf16 %v3520, %v3517
        %v3596 = vpack.c.bf16 %v3524, %v3521
        %v3597 = vpack.c.bf16 %v3525, %v3522
        %v3598 = vpack.c.bf16 %v3526, %v3523
        %v3599 = vpack.c.bf16 %v3530, %v3527
        %v3600 = vpack.c.bf16 %v3531, %v3528
        %v3601 = vpack.c.bf16 %v3532, %v3529
        %v3602 = vpack.c.bf16 %v3536, %v3533
        %v3603 = vpack.c.bf16 %v3537, %v3534
        %v3604 = vpack.c.bf16 %v3538, %v3535
        %v3605 = vpack.c.bf16 %v3542, %v3539
        %v3606 = vpack.c.bf16 %v3543, %v3540
        %v3607 = vpack.c.bf16 %v3544, %v3541
        %v3608 = vpack.c.bf16 %v3548, %v3545
        %v3609 = vpack.c.bf16 %v3549, %v3546
        %v3610 = vpack.c.bf16 %v3550, %v3547
        %v3611 = vpack.c.bf16 %v3554, %v3551
        %v3612 = vpack.c.bf16 %v3555, %v3552
        %v3613 = vpack.c.bf16 %v3556, %v3553
        %v3614 = vpack.c.bf16 %v3560, %v3557
        %v3615 = vpack.c.bf16 %v3561, %v3558
        %v3616 = vpack.c.bf16 %v3562, %v3559
        %v3617 = vpack.c.bf16 %v3566, %v3563
        %v3618 = vpack.c.bf16 %v3567, %v3564
        %v3619 = vpack.c.bf16 %v3568, %v3565
        %v3620 = vpack.c.bf16 %v3572, %v3569
        %v3621 = vpack.c.bf16 %v3573, %v3570
        %v3622 = vpack.c.bf16 %v3574, %v3571
        %v3623 = vld [vmem:[%s2] sm:$0xf]
        %v3624 = vld [vmem:[%s2 + $0x4] sm:$0xf]
        %v3625 = vld [vmem:[%s2 + $0x8] sm:$0xf]
        %v3626 = vld [vmem:[%s2 + $0xc] sm:$0xf]
        %v3627 = vld [vmem:[%s2 + $0x10] sm:$0xf]
        %v3628 = vld [vmem:[%s2 + $0x14] sm:$0xf]
        %v3629 = vld [vmem:[%s2 + $0x18] sm:$0xf]
        %v3630 = vld [vmem:[%s2 + $0x1c] sm:$0xf]
        %v3631 = vld [vmem:[%s2 + $0x20] sm:$0xf]
        %v3632 = vld [vmem:[%s2 + $0x24] sm:$0xf]
        %v3633 = vld [vmem:[%s2 + $0x28] sm:$0xf]
        %v3634 = vld [vmem:[%s2 + $0x2c] sm:$0xf]
        %v3635 = vld [vmem:[%s2 + $0x30] sm:$0xf]
        %v3636 = vld [vmem:[%s2 + $0x34] sm:$0xf]
        %v3637 = vld [vmem:[%s2 + $0x38] sm:$0xf]
        %v3638 = vld [vmem:[%s2 + $0x3c] sm:$0xf]
        %v3639 = vld [vmem:[%s2 + $0x40] sm:$0xf]
        %v3640 = vld [vmem:[%s2 + $0x44] sm:$0xf]
        %v3641 = vld [vmem:[%s2 + $0x48] sm:$0xf]
        %v3642 = vld [vmem:[%s2 + $0x4c] sm:$0xf]
        %v3643 = vld [vmem:[%s2 + $0x50] sm:$0xf]
        %v3644 = vld [vmem:[%s2 + $0x54] sm:$0xf]
        %v3645 = vld [vmem:[%s2 + $0x58] sm:$0xf]
        %v3646 = vld [vmem:[%s2 + $0x5c] sm:$0xf]
        %v3647 = vld [vmem:[%s2 + $0x60] sm:$0xf]
        %v3648 = vld [vmem:[%s2 + $0x64] sm:$0xf]
        %v3649 = vld [vmem:[%s2 + $0x68] sm:$0xf]
        %v3650 = vld [vmem:[%s2 + $0x6c] sm:$0xf]
        %v3651 = vld [vmem:[%s2 + $0x70] sm:$0xf]
        %v3652 = vld [vmem:[%s2 + $0x74] sm:$0xf]
        %v3653 = vld [vmem:[%s2 + $0x78] sm:$0xf]
        %v3654 = vld [vmem:[%s2 + $0x7c] sm:$0xf]
        %v3655 = vld [vmem:[%s2 + $0x80] sm:$0xf]
        %v3656 = vld [vmem:[%s2 + $0x84] sm:$0xf]
        %v3657 = vld [vmem:[%s2 + $0x88] sm:$0xf]
        %v3658 = vld [vmem:[%s2 + $0x8c] sm:$0xf]
        %v3695 = vunpack.c.l.b16 %v3623
        %v3696 = vunpack.c.l.b16 %v3624
        %v3697 = vunpack.c.l.b16 %v3625
        %v3698 = vunpack.c.l.b16 %v3626
        %v3699 = vunpack.c.l.b16 %v3627
        %v3700 = vunpack.c.l.b16 %v3628
        %v3701 = vunpack.c.l.b16 %v3629
        %v3702 = vunpack.c.l.b16 %v3630
        %v3703 = vunpack.c.l.b16 %v3631
        %v3704 = vunpack.c.l.b16 %v3632
        %v3705 = vunpack.c.l.b16 %v3633
        %v3706 = vunpack.c.l.b16 %v3634
        %v3707 = vunpack.c.l.b16 %v3635
        %v3708 = vunpack.c.l.b16 %v3636
        %v3709 = vunpack.c.l.b16 %v3637
        %v3710 = vunpack.c.l.b16 %v3638
        %v3711 = vunpack.c.l.b16 %v3639
        %v3712 = vunpack.c.l.b16 %v3640
        %v3713 = vunpack.c.l.b16 %v3641
        %v3714 = vunpack.c.l.b16 %v3642
        %v3715 = vunpack.c.l.b16 %v3643
        %v3716 = vunpack.c.l.b16 %v3644
        %v3717 = vunpack.c.l.b16 %v3645
        %v3718 = vunpack.c.l.b16 %v3646
        %v3719 = vunpack.c.l.b16 %v3647
        %v3720 = vunpack.c.l.b16 %v3648
        %v3721 = vunpack.c.l.b16 %v3649
        %v3722 = vunpack.c.l.b16 %v3650
        %v3723 = vunpack.c.l.b16 %v3651
        %v3724 = vunpack.c.l.b16 %v3652
        %v3725 = vunpack.c.l.b16 %v3653
        %v3726 = vunpack.c.l.b16 %v3654
        %v3727 = vunpack.c.l.b16 %v3655
        %v3728 = vunpack.c.l.b16 %v3656
        %v3729 = vunpack.c.l.b16 %v3657
        %v3730 = vunpack.c.l.b16 %v3658
        %v3731 = vpack.c.b16 %v3696, %v3695
        %v3732 = vpack.c.b16 %v3698, %v3697
        %v3733 = vpack.c.b16 %v3700, %v3699
        %v3734 = vpack.c.b16 %v3702, %v3701
        %v3735 = vpack.c.b16 %v3704, %v3703
        %v3736 = vpack.c.b16 %v3706, %v3705
        %v3737 = vpack.c.b16 %v3708, %v3707
        %v3738 = vpack.c.b16 %v3710, %v3709
        %v3739 = vpack.c.b16 %v3712, %v3711
        %v3740 = vpack.c.b16 %v3714, %v3713
        %v3741 = vpack.c.b16 %v3716, %v3715
        %v3742 = vpack.c.b16 %v3718, %v3717
        %v3743 = vpack.c.b16 %v3720, %v3719
        %v3744 = vpack.c.b16 %v3722, %v3721
        %v3745 = vpack.c.b16 %v3724, %v3723
        %v3746 = vpack.c.b16 %v3726, %v3725
        %v3747 = vpack.c.b16 %v3728, %v3727
        %v3748 = vpack.c.b16 %v3730, %v3729
        %v3768 = vsel %vm462, %v3577, 0
        %v3771 = vsel %vm462, %v3580, 0
        %v3774 = vsel %vm462, %v3583, 0
        %v3777 = vsel %vm462, %v3586, 0
        %v3780 = vsel %vm462, %v3589, 0
        %v3783 = vsel %vm462, %v3592, 0
        %v3786 = vsel %vm462, %v3595, 0
        %v3789 = vsel %vm462, %v3598, 0
        %v3792 = vsel %vm462, %v3601, 0
        %v3795 = vsel %vm462, %v3604, 0
        %v3798 = vsel %vm462, %v3607, 0
        %v3801 = vsel %vm462, %v3610, 0
        %v3804 = vsel %vm462, %v3613, 0
        %v3807 = vsel %vm462, %v3616, 0
        %v3810 = vsel %vm462, %v3619, 0
        %v3813 = vsel %vm462, %v3622, 0
        %3815 = vmatprep.subr.bf16.mxu0 0
        %3816 = vmatpush1.bf16.msra.mxu0 %v3731
        %3817 = vmatprep.subr.bf16.mxu0 0
        %3818 = vmatpush1.bf16.msra.mxu0 %v3732
        %3819 = vmatprep.subr.bf16.mxu0 0
        %3820 = vmatpush1.bf16.msra.mxu0 %v3733
        %3821 = vmatprep.subr.bf16.mxu0 0
        %3822 = vmatpush1.bf16.msra.mxu0 %v3734
        %3823 = vmatprep.subr.bf16.mxu0 0
        %3824 = vmatpush1.bf16.msra.mxu0 %v3735
        %3825 = vmatprep.subr.bf16.mxu0 0
        %3826 = vmatpush1.bf16.msra.mxu0 %v3736
        %3827 = vmatprep.subr.bf16.mxu0 0
        %3828 = vmatpush1.bf16.msra.mxu0 %v3737
        %3829 = vmatprep.subr.bf16.mxu0 0
        %3830 = vmatpush1.bf16.msra.mxu0 %v3738
        %3831 = vmatprep.subr.bf16.mxu0 0
        %3832 = vmatpush1.bf16.msra.mxu0 %v3739
        %3833 = vmatprep.subr.bf16.mxu0 0
        %3834 = vmatpush1.bf16.msra.mxu0 %v3740
        %3835 = vmatprep.subr.bf16.mxu0 0
        %3836 = vmatpush1.bf16.msra.mxu0 %v3741
        %3837 = vmatprep.subr.bf16.mxu0 0
        %3838 = vmatpush1.bf16.msra.mxu0 %v3742
        %3839 = vmatprep.subr.bf16.mxu0 0
        %3840 = vmatpush1.bf16.msra.mxu0 %v3743
        %3841 = vmatprep.subr.bf16.mxu0 0
        %3842 = vmatpush1.bf16.msra.mxu0 %v3744
        %3843 = vmatprep.subr.bf16.mxu0 0
        %3844 = vmatpush1.bf16.msra.mxu0 %v3745
        %3845 = vmatprep.subr.bf16.mxu0 0
        %3846 = vmatpush1.bf16.msra.mxu0 %v3746
        %3847 = vmatprep.mubr.bf16.mxu0 %v3576
        %3848 = vmatmul.mubr.bf16.gmra.mrb[0].mxu0 %v3575
        %v3849 = vpop.f32.mrb[0].mxu0
        %v3850 = vadd.f32 0.0, %v3849
        %v3851 = vpop.f32.mrb[0].mxu0
        %v3852 = vpop.f32.mrb[0].mxu0
        %v3853 = vadd.f32 0.0, %v3852
        %v3854 = vpop.f32.mrb[0].mxu0
        %3855 = vmatprep.mubr.bf16.mxu0 %v3579
        %3856 = vmatmul.mubr.bf16.gmra.mrb[0].mxu0 %v3578
        %v3857 = vpop.f32.mrb[0].mxu0
        %v3858 = vadd.f32 0.0, %v3857
        %v3859 = vpop.f32.mrb[0].mxu0
        %v3860 = vpop.f32.mrb[0].mxu0
        %v3861 = vadd.f32 0.0, %v3860
        %v3862 = vpop.f32.mrb[0].mxu0
        %3863 = vmatprep.mubr.bf16.mxu0 %v3582
        %3864 = vmatmul.mubr.bf16.gmra.mrb[0].mxu0 %v3581
        %v3865 = vpop.f32.mrb[0].mxu0
        %v3866 = vadd.f32 0.0, %v3865
        %v3867 = vpop.f32.mrb[0].mxu0
        %v3868 = vpop.f32.mrb[0].mxu0
        %v3869 = vadd.f32 0.0, %v3868
        %v3870 = vpop.f32.mrb[0].mxu0
        %3871 = vmatprep.mubr.bf16.mxu0 %v3585
        %3872 = vmatmul.mubr.bf16.gmra.mrb[0].mxu0 %v3584
        %v3873 = vpop.f32.mrb[0].mxu0
        %v3874 = vadd.f32 0.0, %v3873
        %v3875 = vpop.f32.mrb[0].mxu0
        %v3876 = vpop.f32.mrb[0].mxu0
        %v3877 = vadd.f32 0.0, %v3876
        %v3878 = vpop.f32.mrb[0].mxu0
        %3879 = vmatprep.mubr.bf16.mxu0 %v3588
        %3880 = vmatmul.mubr.bf16.gmra.mrb[0].mxu0 %v3587
        %v3881 = vpop.f32.mrb[0].mxu0
        %v3882 = vadd.f32 0.0, %v3881
        %v3883 = vpop.f32.mrb[0].mxu0
        %v3884 = vpop.f32.mrb[0].mxu0
        %v3885 = vadd.f32 0.0, %v3884
        %v3886 = vpop.f32.mrb[0].mxu0
        %3887 = vmatprep.mubr.bf16.mxu0 %v3591
        %3888 = vmatmul.mubr.bf16.gmra.mrb[0].mxu0 %v3590
        %v3889 = vpop.f32.mrb[0].mxu0
        %v3890 = vadd.f32 0.0, %v3889
        %v3891 = vpop.f32.mrb[0].mxu0
        %v3892 = vpop.f32.mrb[0].mxu0
        %v3893 = vadd.f32 0.0, %v3892
        %v3894 = vpop.f32.mrb[0].mxu0
        %3895 = vmatprep.mubr.bf16.mxu0 %v3594
        %3896 = vmatmul.mubr.bf16.gmra.mrb[0].mxu0 %v3593
        %v3897 = vpop.f32.mrb[0].mxu0
        %v3898 = vadd.f32 0.0, %v3897
        %v3899 = vpop.f32.mrb[0].mxu0
        %v3900 = vpop.f32.mrb[0].mxu0
        %v3901 = vadd.f32 0.0, %v3900
        %v3902 = vpop.f32.mrb[0].mxu0
        %3903 = vmatprep.mubr.bf16.mxu0 %v3597
        %3904 = vmatmul.mubr.bf16.gmra.mrb[0].mxu0 %v3596
        %v3905 = vpop.f32.mrb[0].mxu0
        %v3906 = vadd.f32 0.0, %v3905
        %v3907 = vpop.f32.mrb[0].mxu0
        %v3908 = vpop.f32.mrb[0].mxu0
        %v3909 = vadd.f32 0.0, %v3908
        %v3910 = vpop.f32.mrb[0].mxu0
        %3911 = vmatprep.mubr.bf16.mxu0 %v3600
        %3912 = vmatmul.mubr.bf16.gmra.mrb[0].mxu0 %v3599
        %v3913 = vpop.f32.mrb[0].mxu0
        %v3914 = vadd.f32 0.0, %v3913
        %v3915 = vpop.f32.mrb[0].mxu0
        %v3916 = vpop.f32.mrb[0].mxu0
        %v3917 = vadd.f32 0.0, %v3916
        %v3918 = vpop.f32.mrb[0].mxu0
        %3919 = vmatprep.mubr.bf16.mxu0 %v3603
        %3920 = vmatmul.mubr.bf16.gmra.mrb[0].mxu0 %v3602
        %v3921 = vpop.f32.mrb[0].mxu0
        %v3922 = vadd.f32 0.0, %v3921
        %v3923 = vpop.f32.mrb[0].mxu0
        %v3924 = vpop.f32.mrb[0].mxu0
        %v3925 = vadd.f32 0.0, %v3924
        %v3926 = vpop.f32.mrb[0].mxu0
        %3927 = vmatprep.mubr.bf16.mxu0 %v3606
        %3928 = vmatmul.mubr.bf16.gmra.mrb[0].mxu0 %v3605
        %v3929 = vpop.f32.mrb[0].mxu0
        %v3930 = vadd.f32 0.0, %v3929
        %v3931 = vpop.f32.mrb[0].mxu0
        %v3932 = vpop.f32.mrb[0].mxu0
        %v3933 = vadd.f32 0.0, %v3932
        %v3934 = vpop.f32.mrb[0].mxu0
        %3935 = vmatprep.mubr.bf16.mxu0 %v3609
        %3936 = vmatmul.mubr.bf16.gmra.mrb[0].mxu0 %v3608
        %v3937 = vpop.f32.mrb[0].mxu0
        %v3938 = vadd.f32 0.0, %v3937
        %v3939 = vpop.f32.mrb[0].mxu0
        %v3940 = vpop.f32.mrb[0].mxu0
        %v3941 = vadd.f32 0.0, %v3940
        %v3942 = vpop.f32.mrb[0].mxu0
        %3943 = vmatprep.mubr.bf16.mxu0 %v3612
        %3944 = vmatmul.mubr.bf16.gmra.mrb[0].mxu0 %v3611
        %v3945 = vpop.f32.mrb[0].mxu0
        %v3946 = vadd.f32 0.0, %v3945
        %v3947 = vpop.f32.mrb[0].mxu0
        %v3948 = vpop.f32.mrb[0].mxu0
        %v3949 = vadd.f32 0.0, %v3948
        %v3950 = vpop.f32.mrb[0].mxu0
        %3951 = vmatprep.mubr.bf16.mxu0 %v3615
        %3952 = vmatmul.mubr.bf16.gmra.mrb[0].mxu0 %v3614
        %v3953 = vpop.f32.mrb[0].mxu0
        %v3954 = vadd.f32 0.0, %v3953
        %v3955 = vpop.f32.mrb[0].mxu0
        %v3956 = vpop.f32.mrb[0].mxu0
        %v3957 = vadd.f32 0.0, %v3956
        %v3958 = vpop.f32.mrb[0].mxu0
        %3959 = vmatprep.mubr.bf16.mxu0 %v3618
        %3960 = vmatmul.mubr.bf16.gmra.mrb[0].mxu0 %v3617
        %v3961 = vpop.f32.mrb[0].mxu0
        %v3962 = vadd.f32 0.0, %v3961
        %v3963 = vpop.f32.mrb[0].mxu0
        %v3964 = vpop.f32.mrb[0].mxu0
        %v3965 = vadd.f32 0.0, %v3964
        %v3966 = vpop.f32.mrb[0].mxu0
        %3967 = vmatprep.mubr.bf16.mxu0 %v3621
        %3968 = vmatmul.mubr.bf16.gmra.mrb[0].mxu0 %v3620
        %v3969 = vpop.f32.mrb[0].mxu0
        %v3970 = vadd.f32 0.0, %v3969
        %v3971 = vpop.f32.mrb[0].mxu0
        %v3972 = vpop.f32.mrb[0].mxu0
        %v3973 = vadd.f32 0.0, %v3972
        %v3974 = vpop.f32.mrb[0].mxu0
        %3975 = vdwg.mxu0
        %3976 = vmatprep.subr.bf16.mxu0 0
        %3977 = vmatpush1.bf16.msra.mxu0 %v3747
        %3978 = vmatprep.subr.bf16.mxu0 0
        %3979 = vmatpush1.bf16.msra.mxu0 %v3748
        %3980 = vmatprep.subr.bf16.mxu0 0
        %3981 = vmatpush1.bf16.msra.mxu0 0
        %3982 = vmatprep.subr.bf16.mxu0 0
        %3983 = vmatpush1.bf16.msra.mxu0 0
        %3984 = vmatprep.subr.bf16.mxu0 0
        %3985 = vmatpush1.bf16.msra.mxu0 0
        %3986 = vmatprep.subr.bf16.mxu0 0
        %3987 = vmatpush1.bf16.msra.mxu0 0
        %3988 = vmatprep.subr.bf16.mxu0 0
        %3989 = vmatpush1.bf16.msra.mxu0 0
        %3990 = vmatprep.subr.bf16.mxu0 0
        %3991 = vmatpush1.bf16.msra.mxu0 0
        %3992 = vmatprep.subr.bf16.mxu0 0
        %3993 = vmatpush1.bf16.msra.mxu0 0
        %3994 = vmatprep.subr.bf16.mxu0 0
        %3995 = vmatpush1.bf16.msra.mxu0 0
        %3996 = vmatprep.subr.bf16.mxu0 0
        %3997 = vmatpush1.bf16.msra.mxu0 0
        %3998 = vmatprep.subr.bf16.mxu0 0
        %3999 = vmatpush1.bf16.msra.mxu0 0
        %4000 = vmatprep.subr.bf16.mxu0 0
        %4001 = vmatpush1.bf16.msra.mxu0 0
        %4002 = vmatprep.subr.bf16.mxu0 0
        %4003 = vmatpush1.bf16.msra.mxu0 0
        %4004 = vmatprep.subr.bf16.mxu0 0
        %4005 = vmatpush1.bf16.msra.mxu0 0
        %4006 = vmatprep.subr.bf16.mxu0 0
        %4007 = vmatpush1.bf16.msra.mxu0 0
        %4008 = vmatprep.mubr.bf16.mxu0 0
        %4009 = vmatmul.mubr.bf16.gmra.mrb[0].mxu0 %v3768
        %v4010 = vpop.f32.mrb[0].mxu0
        %v4011 = vadd.f32 %v3850, %v4010
        %v4012 = vpop.f32.mrb[0].mxu0
        %v4013 = vpop.f32.mrb[0].mxu0
        %v4014 = vadd.f32 %v3853, %v4013
        %v4015 = vpop.f32.mrb[0].mxu0
        %4016 = vmatprep.mubr.bf16.mxu0 0
        %4017 = vmatmul.mubr.bf16.gmra.mrb[0].mxu0 %v3771
        %v4018 = vpop.f32.mrb[0].mxu0
        %v4019 = vadd.f32 %v3858, %v4018
        %v4020 = vpop.f32.mrb[0].mxu0
        %v4021 = vpop.f32.mrb[0].mxu0
        %v4022 = vadd.f32 %v3861, %v4021
        %v4023 = vpop.f32.mrb[0].mxu0
        %4024 = vmatprep.mubr.bf16.mxu0 0
        %4025 = vmatmul.mubr.bf16.gmra.mrb[0].mxu0 %v3774
        %v4026 = vpop.f32.mrb[0].mxu0
        %v4027 = vadd.f32 %v3866, %v4026
        %v4028 = vpop.f32.mrb[0].mxu0
        %v4029 = vpop.f32.mrb[0].mxu0
        %v4030 = vadd.f32 %v3869, %v4029
        %v4031 = vpop.f32.mrb[0].mxu0
        %4032 = vmatprep.mubr.bf16.mxu0 0
        %4033 = vmatmul.mubr.bf16.gmra.mrb[0].mxu0 %v3777
        %v4034 = vpop.f32.mrb[0].mxu0
        %v4035 = vadd.f32 %v3874, %v4034
        %v4036 = vpop.f32.mrb[0].mxu0
        %v4037 = vpop.f32.mrb[0].mxu0
        %v4038 = vadd.f32 %v3877, %v4037
        %v4039 = vpop.f32.mrb[0].mxu0
        %4040 = vmatprep.mubr.bf16.mxu0 0
        %4041 = vmatmul.mubr.bf16.gmra.mrb[0].mxu0 %v3780
        %v4042 = vpop.f32.mrb[0].mxu0
        %v4043 = vadd.f32 %v3882, %v4042
        %v4044 = vpop.f32.mrb[0].mxu0
        %v4045 = vpop.f32.mrb[0].mxu0
        %v4046 = vadd.f32 %v3885, %v4045
        %v4047 = vpop.f32.mrb[0].mxu0
        %4048 = vmatprep.mubr.bf16.mxu0 0
        %4049 = vmatmul.mubr.bf16.gmra.mrb[0].mxu0 %v3783
        %v4050 = vpop.f32.mrb[0].mxu0
        %v4051 = vadd.f32 %v3890, %v4050
        %v4052 = vpop.f32.mrb[0].mxu0
        %v4053 = vpop.f32.mrb[0].mxu0
        %v4054 = vadd.f32 %v3893, %v4053
        %v4055 = vpop.f32.mrb[0].mxu0
        %4056 = vmatprep.mubr.bf16.mxu0 0
        %4057 = vmatmul.mubr.bf16.gmra.mrb[0].mxu0 %v3786
        %v4058 = vpop.f32.mrb[0].mxu0
        %v4059 = vadd.f32 %v3898, %v4058
        %v4060 = vpop.f32.mrb[0].mxu0
        %v4061 = vpop.f32.mrb[0].mxu0
        %v4062 = vadd.f32 %v3901, %v4061
        %v4063 = vpop.f32.mrb[0].mxu0
        %4064 = vmatprep.mubr.bf16.mxu0 0
        %4065 = vmatmul.mubr.bf16.gmra.mrb[0].mxu0 %v3789
        %v4066 = vpop.f32.mrb[0].mxu0
        %v4067 = vadd.f32 %v3906, %v4066
        %v4068 = vpop.f32.mrb[0].mxu0
        %v4069 = vpop.f32.mrb[0].mxu0
        %v4070 = vadd.f32 %v3909, %v4069
        %v4071 = vpop.f32.mrb[0].mxu0
        %4072 = vmatprep.mubr.bf16.mxu0 0
        %4073 = vmatmul.mubr.bf16.gmra.mrb[0].mxu0 %v3792
        %v4074 = vpop.f32.mrb[0].mxu0
        %v4075 = vadd.f32 %v3914, %v4074
        %v4076 = vpop.f32.mrb[0].mxu0
        %v4077 = vpop.f32.mrb[0].mxu0
        %v4078 = vadd.f32 %v3917, %v4077
        %v4079 = vpop.f32.mrb[0].mxu0
        %4080 = vmatprep.mubr.bf16.mxu0 0
        %4081 = vmatmul.mubr.bf16.gmra.mrb[0].mxu0 %v3795
        %v4082 = vpop.f32.mrb[0].mxu0
        %v4083 = vadd.f32 %v3922, %v4082
        %v4084 = vpop.f32.mrb[0].mxu0
        %v4085 = vpop.f32.mrb[0].mxu0
        %v4086 = vadd.f32 %v3925, %v4085
        %v4087 = vpop.f32.mrb[0].mxu0
        %4088 = vmatprep.mubr.bf16.mxu0 0
        %4089 = vmatmul.mubr.bf16.gmra.mrb[0].mxu0 %v3798
        %v4090 = vpop.f32.mrb[0].mxu0
        %v4091 = vadd.f32 %v3930, %v4090
        %v4092 = vpop.f32.mrb[0].mxu0
        %v4093 = vpop.f32.mrb[0].mxu0
        %v4094 = vadd.f32 %v3933, %v4093
        %v4095 = vpop.f32.mrb[0].mxu0
        %4096 = vmatprep.mubr.bf16.mxu0 0
        %4097 = vmatmul.mubr.bf16.gmra.mrb[0].mxu0 %v3801
        %v4098 = vpop.f32.mrb[0].mxu0
        %v4099 = vadd.f32 %v3938, %v4098
        %v4100 = vpop.f32.mrb[0].mxu0
        %v4101 = vpop.f32.mrb[0].mxu0
        %v4102 = vadd.f32 %v3941, %v4101
        %v4103 = vpop.f32.mrb[0].mxu0
        %4104 = vmatprep.mubr.bf16.mxu0 0
        %4105 = vmatmul.mubr.bf16.gmra.mrb[0].mxu0 %v3804
        %v4106 = vpop.f32.mrb[0].mxu0
        %v4107 = vadd.f32 %v3946, %v4106
        %v4108 = vpop.f32.mrb[0].mxu0
        %v4109 = vpop.f32.mrb[0].mxu0
        %v4110 = vadd.f32 %v3949, %v4109
        %v4111 = vpop.f32.mrb[0].mxu0
        %4112 = vmatprep.mubr.bf16.mxu0 0
        %4113 = vmatmul.mubr.bf16.gmra.mrb[0].mxu0 %v3807
        %v4114 = vpop.f32.mrb[0].mxu0
        %v4115 = vadd.f32 %v3954, %v4114
        %v4116 = vpop.f32.mrb[0].mxu0
        %v4117 = vpop.f32.mrb[0].mxu0
        %v4118 = vadd.f32 %v3957, %v4117
        %v4119 = vpop.f32.mrb[0].mxu0
        %4120 = vmatprep.mubr.bf16.mxu0 0
        %4121 = vmatmul.mubr.bf16.gmra.mrb[0].mxu0 %v3810
        %v4122 = vpop.f32.mrb[0].mxu0
        %v4123 = vadd.f32 %v3962, %v4122
        %v4124 = vpop.f32.mrb[0].mxu0
        %v4125 = vpop.f32.mrb[0].mxu0
        %v4126 = vadd.f32 %v3965, %v4125
        %v4127 = vpop.f32.mrb[0].mxu0
        %4128 = vmatprep.mubr.bf16.mxu0 0
        %4129 = vmatmul.mubr.bf16.gmra.mrb[0].mxu0 %v3813
        %v4130 = vpop.f32.mrb[0].mxu0
        %v4131 = vadd.f32 %v3970, %v4130
        %v4132 = vpop.f32.mrb[0].mxu0
        %v4133 = vpop.f32.mrb[0].mxu0
        %v4134 = vadd.f32 %v3973, %v4133
        %v4135 = vpop.f32.mrb[0].mxu0
        %4136 = vdwg.mxu0
        %v4137 = vld [vmem:[%s7] sm:$0x1]
        %v4139 = vlaneseq
        %v4140 = vshrl.u32 %v4139, 7
        %v4141 = vsub.s32 0, %v4140
        %v4142 = vrot.slane %v4137, %v4141
        %v4144 = vmul.f32 %v4011, %v4142
        %v4145 = vmul.f32 %v4014, %v4142
        %v4146 = vmul.f32 %v4019, %v4142
        %v4147 = vmul.f32 %v4022, %v4142
        %v4148 = vmul.f32 %v4027, %v4142
        %v4149 = vmul.f32 %v4030, %v4142
        %v4150 = vmul.f32 %v4035, %v4142
        %v4151 = vmul.f32 %v4038, %v4142
        %v4152 = vmul.f32 %v4043, %v4142
        %v4153 = vmul.f32 %v4046, %v4142
        %v4154 = vmul.f32 %v4051, %v4142
        %v4155 = vmul.f32 %v4054, %v4142
        %v4156 = vmul.f32 %v4059, %v4142
        %v4157 = vmul.f32 %v4062, %v4142
        %v4158 = vmul.f32 %v4067, %v4142
        %v4159 = vmul.f32 %v4070, %v4142
        %v4160 = vmul.f32 %v4075, %v4142
        %v4161 = vmul.f32 %v4078, %v4142
        %v4162 = vmul.f32 %v4083, %v4142
        %v4163 = vmul.f32 %v4086, %v4142
        %v4164 = vmul.f32 %v4091, %v4142
        %v4165 = vmul.f32 %v4094, %v4142
        %v4166 = vmul.f32 %v4099, %v4142
        %v4167 = vmul.f32 %v4102, %v4142
        %v4168 = vmul.f32 %v4107, %v4142
        %v4169 = vmul.f32 %v4110, %v4142
        %v4170 = vmul.f32 %v4115, %v4142
        %v4171 = vmul.f32 %v4118, %v4142
        %v4172 = vmul.f32 %v4123, %v4142
        %v4173 = vmul.f32 %v4126, %v4142
        %v4174 = vmul.f32 %v4131, %v4142
        %v4175 = vmul.f32 %v4134, %v4142
        %v4176 = vld [vmem:[%s8] sm:$0x1]
        %v4178 = vlaneseq
        %v4179 = vshrl.u32 %v4178, 7
        %v4180 = vsub.s32 0, %v4179
        %v4181 = vrot.slane %v4176, %v4180
        %v4183 = vadd.f32 %v4144, %v4181
        %v4184 = vadd.f32 %v4145, %v4181
        %v4185 = vadd.f32 %v4146, %v4181
        %v4186 = vadd.f32 %v4147, %v4181
        %v4187 = vadd.f32 %v4148, %v4181
        %v4188 = vadd.f32 %v4149, %v4181
        %v4189 = vadd.f32 %v4150, %v4181
        %v4190 = vadd.f32 %v4151, %v4181
        %v4191 = vadd.f32 %v4152, %v4181
        %v4192 = vadd.f32 %v4153, %v4181
        %v4193 = vadd.f32 %v4154, %v4181
        %v4194 = vadd.f32 %v4155, %v4181
        %v4195 = vadd.f32 %v4156, %v4181
        %v4196 = vadd.f32 %v4157, %v4181
        %v4197 = vadd.f32 %v4158, %v4181
        %v4198 = vadd.f32 %v4159, %v4181
        %v4199 = vadd.f32 %v4160, %v4181
        %v4200 = vadd.f32 %v4161, %v4181
        %v4201 = vadd.f32 %v4162, %v4181
        %v4202 = vadd.f32 %v4163, %v4181
        %v4203 = vadd.f32 %v4164, %v4181
        %v4204 = vadd.f32 %v4165, %v4181
        %v4205 = vadd.f32 %v4166, %v4181
        %v4206 = vadd.f32 %v4167, %v4181
        %v4207 = vadd.f32 %v4168, %v4181
        %v4208 = vadd.f32 %v4169, %v4181
        %v4209 = vadd.f32 %v4170, %v4181
        %v4210 = vadd.f32 %v4171, %v4181
        %v4211 = vadd.f32 %v4172, %v4181
        %v4212 = vadd.f32 %v4173, %v4181
        %v4213 = vadd.f32 %v4174, %v4181
        %v4214 = vadd.f32 %v4175, %v4181
        %v4215 = vsel %vm462, %v4183, 0.0
        %v4216 = vsel %vm462, %v4184, 0.0
        %v4217 = vadd.f32 %v4215, %v4216
        %v4218 = vsel %vm462, %v4185, 0.0
        %v4219 = vadd.f32 %v4217, %v4218
        %v4220 = vsel %vm462, %v4186, 0.0
        %v4221 = vadd.f32 %v4219, %v4220
        %v4222 = vsel %vm462, %v4187, 0.0
        %v4223 = vadd.f32 %v4221, %v4222
        %v4224 = vsel %vm462, %v4188, 0.0
        %v4225 = vadd.f32 %v4223, %v4224
        %v4226 = vsel %vm462, %v4189, 0.0
        %v4227 = vadd.f32 %v4225, %v4226
        %v4228 = vsel %vm462, %v4190, 0.0
        %v4229 = vadd.f32 %v4227, %v4228
        %v4230 = vsel %vm462, %v4191, 0.0
        %v4231 = vadd.f32 %v4229, %v4230
        %v4232 = vsel %vm462, %v4192, 0.0
        %v4233 = vadd.f32 %v4231, %v4232
        %v4234 = vsel %vm462, %v4193, 0.0
        %v4235 = vadd.f32 %v4233, %v4234
        %v4236 = vsel %vm462, %v4194, 0.0
        %v4237 = vadd.f32 %v4235, %v4236
        %v4238 = vsel %vm462, %v4195, 0.0
        %v4239 = vadd.f32 %v4237, %v4238
        %v4240 = vsel %vm462, %v4196, 0.0
        %v4241 = vadd.f32 %v4239, %v4240
        %v4242 = vsel %vm462, %v4197, 0.0
        %v4243 = vadd.f32 %v4241, %v4242
        %v4244 = vsel %vm462, %v4198, 0.0
        %v4245 = vadd.f32 %v4243, %v4244
        %v4246 = vsel %vm462, %v4199, 0.0
        %v4247 = vadd.f32 %v4245, %v4246
        %v4248 = vsel %vm462, %v4200, 0.0
        %v4249 = vadd.f32 %v4247, %v4248
        %v4250 = vsel %vm462, %v4201, 0.0
        %v4251 = vadd.f32 %v4249, %v4250
        %v4252 = vsel %vm462, %v4202, 0.0
        %v4253 = vadd.f32 %v4251, %v4252
        %v4254 = vsel %vm462, %v4203, 0.0
        %v4255 = vadd.f32 %v4253, %v4254
        %v4256 = vsel %vm462, %v4204, 0.0
        %v4257 = vadd.f32 %v4255, %v4256
        %v4258 = vsel %vm462, %v4205, 0.0
        %v4259 = vadd.f32 %v4257, %v4258
        %v4260 = vsel %vm462, %v4206, 0.0
        %v4261 = vadd.f32 %v4259, %v4260
        %v4262 = vsel %vm462, %v4207, 0.0
        %v4263 = vadd.f32 %v4261, %v4262
        %v4264 = vsel %vm462, %v4208, 0.0
        %v4265 = vadd.f32 %v4263, %v4264
        %v4266 = vsel %vm462, %v4209, 0.0
        %v4267 = vadd.f32 %v4265, %v4266
        %v4268 = vsel %vm462, %v4210, 0.0
        %v4269 = vadd.f32 %v4267, %v4268
        %v4270 = vsel %vm462, %v4211, 0.0
        %v4271 = vadd.f32 %v4269, %v4270
        %v4272 = vsel %vm462, %v4212, 0.0
        %v4273 = vadd.f32 %v4271, %v4272
        %v4274 = vsel %vm462, %v4213, 0.0
        %v4275 = vadd.f32 %v4273, %v4274
        %v4276 = vsel %vm462, %v4214, 0.0
        %v4277 = vadd.f32 %v4275, %v4276
        %v4278 = vrot.slane %v4277, 4
        %v4279 = vadd.f32 %v4277, %v4278
        %v4280 = vrot.slane %v4279, 2
        %v4281 = vadd.f32 %v4279, %v4280
        %v4282 = vrot.slane %v4281, 1
        %v4283 = vadd.f32 %v4281, %v4282
        %v4284 = vrcp.pop 256.0
        %v4285 = vmul.f32 %v4283, %v4284
        %v4286 = vld [vmem:[%s9] sm:$0x3]
        %v4287 = vld [vmem:[%s10] sm:$0x1]
        %v4288 = vld [vmem:[%s11] sm:$0x3]
        %v4289 = vld [vmem:[%s12] sm:$0x1]
        %v4290 = vmul.f32 %v4285, %v4286
        %vm4291 = vcmask 253952
        %v4292 = vsel %vm4291, %v4290, 0.0
        %4293 = vadd.xlane.f32.xlu0 %v4292
        %v4294 = vpop.xlane.xlu0 %4293
        %v4295 = vadd.f32 %v4294, %v4287
        %v4296 = vmax.f32 %v4295, 0.0
        %4298 = vset.pattern.permute.xlu0 0
        %4299 = vperm.xlu0 %4298, %v4296
        %v4300 = vpop.permute.xlu0 %4299
        %v4302 = vmul.f32 %v4300, %v4288
        %v4303 = vadd.f32 %v4289, %v4302
        %vm4304 = vcmask 254977
        %v4305 = vsel %vm4304, %v4290, 0.0
        %4306 = vadd.xlane.f32.xlu0 %v4305
        %v4307 = vpop.xlane.xlu0 %4306
        %v4309 = vlaneseq
        %v4310 = vshrl.u32 %v4309, 7
        %v4311 = vsub.s32 0, %v4310
        %v4312 = vrot.slane %v4287, %v4311
        %4313 = vrot.lane.b32.xlu0 %v4312, 127
        %v4314 = vpop.permute.xlu0 %4313
        %v4316 = vadd.f32 %v4307, %v4314
        %v4317 = vmax.f32 %v4316, 0.0
        %4319 = vset.pattern.permute.xlu0 0
        %4320 = vperm.xlu0 %4319, %v4317
        %v4321 = vpop.permute.xlu0 %4320
        %v4323 = vmul.f32 %v4321, %v4288
        %v4326 = vunpack.c.l.s4 1966171168
        %v4327 = vunpack.c.0.s8 %v4326
        %v4328 = vlaneseq
        %v4329 = vshrl.u32 %v4328, 7
        %v4330 = vsub.s32 %v4327, %v4329
        %v4331 = vrot.slane %v4323, %v4330
        %v4332 = vcombine.high %v4331, %v4331
        %v4334 = vunpack.c.l.s4 1966171168
        %v4335 = vunpack.c.0.s8 %v4334
        %v4336 = vlaneseq
        %v4337 = vshrl.u32 %v4336, 7
        %v4338 = vsub.s32 %v4335, %v4337
        %v4339 = vrot.slane %v4332, %v4338
        %v4341 = vadd.f32 %v4303, %v4339
        %v4342 = vxor.u32 %v4341, 2147483648
        %v4343 = vmul.f32 %v4342, 1.442695
        %v4344 = vpow.pop %v4343
        %v4345 = vadd.f32 %v4344, 1.0
        %v4346 = vrcp.pop %v4345
        %v4347 = vmul.f32 1.0, %v4346
        %v4349 = vlaneseq
        %v4350 = vshrl.u32 %v4349, 7
        %v4351 = vsub.s32 0, %v4350
        %v4352 = vrot.slane %v4347, %v4351
        %v4354 = vmul.f32 %v4183, %v4352
        %v4355 = vmul.f32 %v4184, %v4352
        %v4356 = vmul.f32 %v4185, %v4352
        %v4357 = vmul.f32 %v4186, %v4352
        %v4358 = vmul.f32 %v4187, %v4352
        %v4359 = vmul.f32 %v4188, %v4352
        %v4360 = vmul.f32 %v4189, %v4352
        %v4361 = vmul.f32 %v4190, %v4352
        %v4362 = vmul.f32 %v4191, %v4352
        %v4363 = vmul.f32 %v4192, %v4352
        %v4364 = vmul.f32 %v4193, %v4352
        %v4365 = vmul.f32 %v4194, %v4352
        %v4366 = vmul.f32 %v4195, %v4352
        %v4367 = vmul.f32 %v4196, %v4352
        %v4368 = vmul.f32 %v4197, %v4352
        %v4369 = vmul.f32 %v4198, %v4352
        %v4370 = vmul.f32 %v4199, %v4352
        %v4371 = vmul.f32 %v4200, %v4352
        %v4372 = vmul.f32 %v4201, %v4352
        %v4373 = vmul.f32 %v4202, %v4352
        %v4374 = vmul.f32 %v4203, %v4352
        %v4375 = vmul.f32 %v4204, %v4352
        %v4376 = vmul.f32 %v4205, %v4352
        %v4377 = vmul.f32 %v4206, %v4352
        %v4378 = vmul.f32 %v4207, %v4352
        %v4379 = vmul.f32 %v4208, %v4352
        %v4380 = vmul.f32 %v4209, %v4352
        %v4381 = vmul.f32 %v4210, %v4352
        %v4382 = vmul.f32 %v4211, %v4352
        %v4383 = vmul.f32 %v4212, %v4352
        %v4384 = vmul.f32 %v4213, %v4352
        %v4385 = vmul.f32 %v4214, %v4352
        %v4386 = vadd.f32 %v4354, %v557
        %v4387 = vadd.f32 %v4355, %v558
        %v4388 = vadd.f32 %v4356, %v559
        %v4389 = vadd.f32 %v4357, %v560
        %v4390 = vadd.f32 %v4358, %v561
        %v4391 = vadd.f32 %v4359, %v562
        %v4392 = vadd.f32 %v4360, %v563
        %v4393 = vadd.f32 %v4361, %v564
        %v4394 = vadd.f32 %v4362, %v565
        %v4395 = vadd.f32 %v4363, %v566
        %v4396 = vadd.f32 %v4364, %v567
        %v4397 = vadd.f32 %v4365, %v568
        %v4398 = vadd.f32 %v4366, %v569
        %v4399 = vadd.f32 %v4367, %v570
        %v4400 = vadd.f32 %v4368, %v571
        %v4401 = vadd.f32 %v4369, %v572
        %v4402 = vadd.f32 %v4370, %v573
        %v4403 = vadd.f32 %v4371, %v574
        %v4404 = vadd.f32 %v4372, %v575
        %v4405 = vadd.f32 %v4373, %v576
        %v4406 = vadd.f32 %v4374, %v577
        %v4407 = vadd.f32 %v4375, %v578
        %v4408 = vadd.f32 %v4376, %v579
        %v4409 = vadd.f32 %v4377, %v580
        %v4410 = vadd.f32 %v4378, %v581
        %v4411 = vadd.f32 %v4379, %v582
        %v4412 = vadd.f32 %v4380, %v583
        %v4413 = vadd.f32 %v4381, %v584
        %v4414 = vadd.f32 %v4382, %v585
        %v4415 = vadd.f32 %v4383, %v586
        %v4416 = vadd.f32 %v4384, %v587
        %v4417 = vadd.f32 %v4385, %v588
        %v4418 = vmax.f32 %v4386, 0.0
        %v4419 = vmax.f32 %v4387, 0.0
        %v4420 = vmax.f32 %v4388, 0.0
        %v4421 = vmax.f32 %v4389, 0.0
        %v4422 = vmax.f32 %v4390, 0.0
        %v4423 = vmax.f32 %v4391, 0.0
        %v4424 = vmax.f32 %v4392, 0.0
        %v4425 = vmax.f32 %v4393, 0.0
        %v4426 = vmax.f32 %v4394, 0.0
        %v4427 = vmax.f32 %v4395, 0.0
        %v4428 = vmax.f32 %v4396, 0.0
        %v4429 = vmax.f32 %v4397, 0.0
        %v4430 = vmax.f32 %v4398, 0.0
        %v4431 = vmax.f32 %v4399, 0.0
        %v4432 = vmax.f32 %v4400, 0.0
        %v4433 = vmax.f32 %v4401, 0.0
        %v4434 = vmax.f32 %v4402, 0.0
        %v4435 = vmax.f32 %v4403, 0.0
        %v4436 = vmax.f32 %v4404, 0.0
        %v4437 = vmax.f32 %v4405, 0.0
        %v4438 = vmax.f32 %v4406, 0.0
        %v4439 = vmax.f32 %v4407, 0.0
        %v4440 = vmax.f32 %v4408, 0.0
        %v4441 = vmax.f32 %v4409, 0.0
        %v4442 = vmax.f32 %v4410, 0.0
        %v4443 = vmax.f32 %v4411, 0.0
        %v4444 = vmax.f32 %v4412, 0.0
        %v4445 = vmax.f32 %v4413, 0.0
        %v4446 = vmax.f32 %v4414, 0.0
        %v4447 = vmax.f32 %v4415, 0.0
        %v4448 = vmax.f32 %v4416, 0.0
        %v4449 = vmax.f32 %v4417, 0.0
        %4450 = vst.msk [vmem:[%s458] sm:$0xff] %vm462, %v4418
        %4451 = vst.msk [vmem:[%s458 + $0x8] sm:$0xff] %vm462, %v4419
        %4452 = vst.msk [vmem:[%s458 + $0x10] sm:$0xff] %vm462, %v4420
        %4453 = vst.msk [vmem:[%s458 + $0x18] sm:$0xff] %vm462, %v4421
        %4454 = vst.msk [vmem:[%s458 + $0x20] sm:$0xff] %vm462, %v4422
        %4455 = vst.msk [vmem:[%s458 + $0x28] sm:$0xff] %vm462, %v4423
        %4456 = vst.msk [vmem:[%s458 + $0x30] sm:$0xff] %vm462, %v4424
        %4457 = vst.msk [vmem:[%s458 + $0x38] sm:$0xff] %vm462, %v4425
        %4458 = vst.msk [vmem:[%s458 + $0x40] sm:$0xff] %vm462, %v4426
        %4459 = vst.msk [vmem:[%s458 + $0x48] sm:$0xff] %vm462, %v4427
        %4460 = vst.msk [vmem:[%s458 + $0x50] sm:$0xff] %vm462, %v4428
        %4461 = vst.msk [vmem:[%s458 + $0x58] sm:$0xff] %vm462, %v4429
        %4462 = vst.msk [vmem:[%s458 + $0x60] sm:$0xff] %vm462, %v4430
        %4463 = vst.msk [vmem:[%s458 + $0x68] sm:$0xff] %vm462, %v4431
        %4464 = vst.msk [vmem:[%s458 + $0x70] sm:$0xff] %vm462, %v4432
        %4465 = vst.msk [vmem:[%s458 + $0x78] sm:$0xff] %vm462, %v4433
        %4466 = vst.msk [vmem:[%s458 + $0x80] sm:$0xff] %vm462, %v4434
        %4467 = vst.msk [vmem:[%s458 + $0x88] sm:$0xff] %vm462, %v4435
        %4468 = vst.msk [vmem:[%s458 + $0x90] sm:$0xff] %vm462, %v4436
        %4469 = vst.msk [vmem:[%s458 + $0x98] sm:$0xff] %vm462, %v4437
        %4470 = vst.msk [vmem:[%s458 + $0xa0] sm:$0xff] %vm462, %v4438
        %4471 = vst.msk [vmem:[%s458 + $0xa8] sm:$0xff] %vm462, %v4439
        %4472 = vst.msk [vmem:[%s458 + $0xb0] sm:$0xff] %vm462, %v4440
        %4473 = vst.msk [vmem:[%s458 + $0xb8] sm:$0xff] %vm462, %v4441
        %4474 = vst.msk [vmem:[%s458 + $0xc0] sm:$0xff] %vm462, %v4442
        %4475 = vst.msk [vmem:[%s458 + $0xc8] sm:$0xff] %vm462, %v4443
        %4476 = vst.msk [vmem:[%s458 + $0xd0] sm:$0xff] %vm462, %v4444
        %4477 = vst.msk [vmem:[%s458 + $0xd8] sm:$0xff] %vm462, %v4445
        %4478 = vst.msk [vmem:[%s458 + $0xe0] sm:$0xff] %vm462, %v4446
        %4479 = vst.msk [vmem:[%s458 + $0xe8] sm:$0xff] %vm462, %v4447
        %4480 = vst.msk [vmem:[%s458 + $0xf0] sm:$0xff] %vm462, %v4448
        %4481 = vst.msk [vmem:[%s458 + $0xf8] sm:$0xff] %vm462, %v4449
        %s4482 = sand.u32 %s316, 1
        %s4483 = scalar_lea.sflag [#allocation5], %s4482
        %s4484 = sand.u32 %s316, 1
        %s4485 = smul.addr %s4484, 256
        %s4486 = scalar_lea.vmem [#allocation6], %s4485
        // Predicated region
        $region77: #{tpu_custom_call.1} parent=71 // pred_check
          %p4487 = pneg %p326
        $region78: #{tpu_custom_call.1} parent=71 // pred_check_branch
          %4489 = sbr.rel (%p4487) target = $region80
        $region79: #{tpu_custom_call.1} parent=71 // pred_region
          %s4491 = ssub.s32 4096, 4096
          %4492 = vsyncadd %s4483, %s4491
          %s4493 = smul.addr %s30, 32
          %s4494 = smul.addr %s4493, 128
          %s4495 = scalar_lea.hbm %s13, %s4494
          %s4496 = sshll.u32 %s4486, 4
          %s4497 = int_to_ptr.vmem [resolvable:$true] %s4496
          %4502 = dma.vmem_to_hbm [thread:$0]  %s4497, 4096, %s4495, %s4483, 128, 128, 8
        $region80: #{tpu_custom_call.1} parent=71 // pred_fallthru
          _
      $region72: #{tpu_custom_call.1} parent=5 // pred_fallthru
        _
      %p4503 = scmp.le.s32.totalorder 2, %s25
      // Predicated region
      $region81: #{tpu_custom_call.1} parent=5 // pred_check
        %p4504 = pneg %p4503
      $region82: #{tpu_custom_call.1} parent=5 // pred_check_branch
        %4506 = sbr.rel (%p4504) target = $region84
      $region83: #{tpu_custom_call.1} parent=5 // pred_region
        %s4507 = ssub.s32 %s25, 2
        // Predicated region
        $region85: #{tpu_custom_call.1} parent=83 // pred_check
          %p4508 = pneg %p332
        $region86: #{tpu_custom_call.1} parent=83 // pred_check_branch
          %4510 = sbr.rel (%p4508) target = $region88
        $region87: #{tpu_custom_call.1} parent=83 // pred_region
          %s4511 = sand.u32 %s317, 1
          %s4512 = scalar_lea.sflag [#allocation5], %s4511
          %s4513 = sand.u32 %s317, 1
          %s4514 = smul.addr %s4513, 256
          %s4515 = scalar_lea.vmem [#allocation6], %s4514
          %4516 = dma.done %s4512, 4096
        $region88: #{tpu_custom_call.1} parent=83 // pred_fallthru
          _
      $region84: #{tpu_custom_call.1} parent=5 // pred_fallthru
        _
    $region6: #{tpu_custom_call.1} parent=1 // loop_footer
      %s29 = sadd.s32 1, %s25
    $region7: #{tpu_custom_call.1} parent=1 // loop_footer_branch
      %24 = sbr.rel target = $region3
    $region8: #{tpu_custom_call.1} parent=1 // loop_exit
      _
    %4517 = vsyncpa [#allocation4], 1
    %s4518 = scalar_lea.sflag [#allocation4], 1
    %4519 = vsyncpa %s4518, 1
    %4520 = vsyncpa [#allocation5], 1
    %s4521 = scalar_lea.sflag [#allocation5], 1
    %4522 = vsyncpa %s4521, 1

</llo_original>
